<compile_context>
chip_gen: v5e
topology: v5e:2x2
jax: 0.10.0
libtpu: 0.0.40
codegen_flags: <defaults>
</compile_context>

<pallas_src>
import numpy as np

import jax
import jax.numpy as jnp
from jax.experimental import pallas as pl
from jax.experimental.pallas import tpu as pltpu

# ---------------- static network geometry ----------------
H0 = W0 = 28            # input image side
K = 3                   # conv kernel size
C1, C2 = 32, 64         # conv output channels
HO1 = H0 - K + 1        # 26  conv1 output side
P1 = HO1 // 2           # 13  pool1 output side
HO2 = P1 - K + 1        # 11  conv2 output side
P2 = HO2 // 2           # 5   pool2 output side
FC1_IN = C2 * P2 * P2   # 1600
FC1_OUT = 128
NCLASS = 26
NCLASS_PAD = 128        # fc2 lanes padded to 128 for dense stores

# CHW-flat layouts (row-major with the *input* row width, so a 3x3 conv is 9
# contiguous-slab accumulations; columns past the valid width are garbage that
# never reaches a valid output and is dropped by the pool-selection matmul).
X1_COLS = H0 * W0 + (K - 1)          # 786  zero-padded flat 28x28 image
ACC1_COLS = HO1 * W0                 # 728  conv1 accumulator width
HMAX1_COLS = ACC1_COLS - W0 - 1      # 699  2x2-window-max width
P1_COLS = P1 * P1 + (K - 1)          # 171  zero-padded flat 13x13 map
ACC2_COLS = HO2 * P1                 # 143
HMAX2_COLS = ACC2_COLS - P1 - 1      # 129
P2_COLS = P2 * P2                    # 25


def _pool_select(hp, wp, wrow, in_cols, out_cols):
    """0/1 matrix S with (hmax @ S)[c, ph*wp + pw] = hmax[c, 2*ph*wrow + 2*pw]."""
    s = np.zeros((in_cols, out_cols), np.float32)
    for ph in range(hp):
        for pw in range(wp):
            s[2 * ph * wrow + 2 * pw, ph * wp + pw] = 1.0
    return s


_S1_NP = _pool_select(P1, P1, W0, HMAX1_COLS, P1_COLS)   # (699, 171); cols>=169 stay 0
_S2_NP = _pool_select(P2, P2, P1, HMAX2_COLS, P2_COLS)   # (129, 25)


# ---------------- Pallas kernels ----------------

def conv1_pool_kernel(x_ref, w_ref, b_ref, s_ref, o_ref):
    # x_ref: (1, 1, 786) f32  — one zero-padded CHW-flat 28x28 image
    # w_ref: (9, 32, 1) f32, b_ref: (32, 1) f32, s_ref: (699, 171) bf16
    x = x_ref[0]                                        # (1, 786)
    acc = jnp.zeros((C1, ACC1_COLS), jnp.float32)
    for k in range(K * K):                              # 9 shifted-slab rank-1 updates (VPU, f32)
        off = (k // K) * W0 + (k % K)
        acc = acc + w_ref[k] * x[:, off:off + ACC1_COLS]
    acc = jnp.maximum(acc + b_ref[...], 0.0)            # bias + relu (f32)
    # fused 2x2/stride-2 maxpool: two shifted maxima + 0/1 selection matmul
    wmax = jnp.maximum(acc[:, :-1], acc[:, 1:])         # (32, 727)
    hmax = jnp.maximum(wmax[:, :-W0], wmax[:, W0:])     # (32, 699)
    pooled = jnp.dot(hmax.astype(jnp.bfloat16), s_ref[...],
                     preferred_element_type=jnp.float32)
    o_ref[0] = pooled.astype(jnp.bfloat16)              # (32, 171)


def conv2_pool_kernel(x_ref, w_ref, b_ref, s_ref, o_ref):
    # x_ref: (1, 32, 171) bf16, w_ref: (9, 64, 32) bf16, b_ref: (64, 1) f32,
    # s_ref: (129, 25) bf16
    x = x_ref[0]                                        # (32, 171)
    acc = jnp.zeros((C2, ACC2_COLS), jnp.float32)
    for k in range(K * K):                              # 9 shifted-slab matmuls (MXU, bf16 -> f32)
        off = (k // K) * P1 + (k % K)
        acc = acc + jnp.dot(w_ref[k], x[:, off:off + ACC2_COLS],
                            preferred_element_type=jnp.float32)
    acc = jnp.maximum(acc + b_ref[...], 0.0)
    wmax = jnp.maximum(acc[:, :-1], acc[:, 1:])         # (64, 142)
    hmax = jnp.maximum(wmax[:, :-P1], wmax[:, P1:])     # (64, 129)
    pooled = jnp.dot(hmax.astype(jnp.bfloat16), s_ref[...],
                     preferred_element_type=jnp.float32)
    o_ref[0] = pooled.astype(jnp.bfloat16)              # (64, 25)


def fc_head_kernel(x_ref, w1_ref, b1_ref, w2_ref, b2_ref, o_ref):
    # x_ref: (tm, 1600) bf16, w1: (1600, 128) bf16, b1: (1, 128) f32,
    # w2: (128, 128) bf16 (cols >= 26 zero), b2: (1, 128) f32 (cols >= 26 = -1e30)
    h = jnp.dot(x_ref[...], w1_ref[...], preferred_element_type=jnp.float32)
    h = jnp.maximum(h + b1_ref[...], 0.0)
    logits = jnp.dot(h.astype(jnp.bfloat16), w2_ref[...],
                     preferred_element_type=jnp.float32) + b2_ref[...]
    m = jnp.max(logits, axis=-1, keepdims=True)
    z = logits - m
    lse = jnp.log(jnp.sum(jnp.exp(z), axis=-1, keepdims=True))
    o_ref[...] = z - lse


# ---------------- pallas_call wrappers ----------------

def _parallel(n_axes):
    return pltpu.CompilerParams(dimension_semantics=("parallel",) * n_axes)


def conv1_pool(xflat, w1k, b1k, s1):
    n = xflat.shape[0]
    return pl.pallas_call(
        conv1_pool_kernel,
        out_shape=jax.ShapeDtypeStruct((n, C1, P1_COLS), jnp.bfloat16),
        grid=(n,),
        in_specs=[
            pl.BlockSpec((1, 1, X1_COLS), lambda i: (i, 0, 0)),
            pl.BlockSpec((K * K, C1, 1), lambda i: (0, 0, 0)),
            pl.BlockSpec((C1, 1), lambda i: (0, 0)),
            pl.BlockSpec((HMAX1_COLS, P1_COLS), lambda i: (0, 0)),
        ],
        out_specs=pl.BlockSpec((1, C1, P1_COLS), lambda i: (i, 0, 0)),
        compiler_params=_parallel(1),
    )(xflat, w1k, b1k, s1)


def conv2_pool(p1, w2k, b2k, s2):
    n = p1.shape[0]
    return pl.pallas_call(
        conv2_pool_kernel,
        out_shape=jax.ShapeDtypeStruct((n, C2, P2_COLS), jnp.bfloat16),
        grid=(n,),
        in_specs=[
            pl.BlockSpec((1, C1, P1_COLS), lambda i: (i, 0, 0)),
            pl.BlockSpec((K * K, C2, C1), lambda i: (0, 0, 0)),
            pl.BlockSpec((C2, 1), lambda i: (0, 0)),
            pl.BlockSpec((HMAX2_COLS, P2_COLS), lambda i: (0, 0)),
        ],
        out_specs=pl.BlockSpec((1, C2, P2_COLS), lambda i: (i, 0, 0)),
        compiler_params=_parallel(1),
    )(p1, w2k, b2k, s2)


def fc_head(xf, w1, b1, w2, b2):
    n0 = xf.shape[0]
    tile_m = 256                       # conservative row tile (fits v7x 64 MiB easily)
    if n0 > tile_m:
        n_pad = pl.cdiv(n0, tile_m) * tile_m
        if n_pad != n0:
            xf = jnp.pad(xf, ((0, n_pad - n0), (0, 0)))
        tm = tile_m
    else:
        n_pad, tm = n0, n0             # single block == full array dims (always legal)
    out = pl.pallas_call(
        fc_head_kernel,
        out_shape=jax.ShapeDtypeStruct((n_pad, NCLASS_PAD), jnp.float32),
        grid=(n_pad // tm,),
        in_specs=[
            pl.BlockSpec((tm, FC1_IN), lambda i: (i, 0)),
            pl.BlockSpec((FC1_IN, FC1_OUT), lambda i: (0, 0)),
            pl.BlockSpec((1, FC1_OUT), lambda i: (0, 0)),
            pl.BlockSpec((FC1_OUT, NCLASS_PAD), lambda i: (0, 0)),
            pl.BlockSpec((1, NCLASS_PAD), lambda i: (0, 0)),
        ],
        out_specs=pl.BlockSpec((tm, NCLASS_PAD), lambda i: (i, 0)),
        compiler_params=_parallel(1),
    )(xf, w1, b1, w2, b2)
    return out[:n0, :NCLASS]


# ---------------- parameters (deterministic, synthetic) ----------------

def init_params(key):
    ks = jax.random.split(key, 8)
    s = 0.05
    return {
        "conv1_w": jax.random.normal(ks[0], (C1, 1, K, K), jnp.float32) * s,
        "conv1_b": jax.random.normal(ks[1], (C1,), jnp.float32) * s,
        "conv2_w": jax.random.normal(ks[2], (C2, C1, K, K), jnp.float32) * s,
        "conv2_b": jax.random.normal(ks[3], (C2,), jnp.float32) * s,
        # stored as (in, out); equivalent to PyTorch nn.Linear weight.T
        "fc1_w": jax.random.normal(ks[4], (FC1_IN, FC1_OUT), jnp.float32) * s,
        "fc1_b": jax.random.normal(ks[5], (FC1_OUT,), jnp.float32) * s,
        "fc2_w": jax.random.normal(ks[6], (FC1_OUT, NCLASS), jnp.float32) * s,
        "fc2_b": jax.random.normal(ks[7], (NCLASS,), jnp.float32) * s,
    }


def prepare_params(params):
    """One-time conversion of PyTorch-layout parameters to kernel layouts."""
    w1k = jnp.transpose(params["conv1_w"], (2, 3, 0, 1)).reshape(K * K, C1, 1)
    w1k = w1k.astype(jnp.float32)                       # conv1 runs on the VPU in f32
    b1k = params["conv1_b"].reshape(C1, 1).astype(jnp.float32)
    w2k = jnp.transpose(params["conv2_w"], (2, 3, 0, 1)).reshape(K * K, C2, C1)
    w2k = w2k.astype(jnp.bfloat16)                      # MXU operands in bf16
    b2k = params["conv2_b"].reshape(C2, 1).astype(jnp.float32)
    fc1w = params["fc1_w"].astype(jnp.bfloat16)         # (1600, 128)
    fc1b = params["fc1_b"].reshape(1, FC1_OUT).astype(jnp.float32)
    fc2w = jnp.zeros((FC1_OUT, NCLASS_PAD), jnp.bfloat16)
    fc2w = fc2w.at[:, :NCLASS].set(params["fc2_w"].astype(jnp.bfloat16))
    fc2b = jnp.full((1, NCLASS_PAD), -1e30, jnp.float32)
    fc2b = fc2b.at[0, :NCLASS].set(params["fc2_b"].astype(jnp.float32))
    s1 = jnp.asarray(_S1_NP).astype(jnp.bfloat16)
    s2 = jnp.asarray(_S2_NP).astype(jnp.bfloat16)
    return dict(w1k=w1k, b1k=b1k, w2k=w2k, b2k=b2k, fc1w=fc1w, fc1b=fc1b,
                fc2w=fc2w, fc2b=fc2b, s1=s1, s2=s2)


# ---------------- forward pass ----------------

def letter_cnn_forward(params, x_nchw):
    assert x_nchw.shape[1:] == (1, H0, W0), x_nchw.shape
    kp = prepare_params(params)
    n = x_nchw.shape[0]
    # NCHW (N,1,28,28) -> zero-padded CHW-flat rows (N, 1, 786)   (free-ish XLA glue)
    x = x_nchw.astype(jnp.float32).reshape(n, 1, H0 * W0)
    x = jnp.pad(x, ((0, 0), (0, 0), (0, X1_COLS - H0 * W0)))
    p1 = conv1_pool(x, kp["w1k"], kp["b1k"], kp["s1"])        # (N, 32, 171) bf16
    p2 = conv2_pool(p1, kp["w2k"], kp["b2k"], kp["s2"])       # (N, 64, 25)  bf16
    # PyTorch NCHW flatten: (N, C, H*W) -> (N, C*H*W); contiguous, free reshape
    xf = p2.reshape(n, FC1_IN)
    return fc_head(xf, kp["fc1w"], kp["fc1b"], kp["fc2w"], kp["fc2b"])  # (N, 26)


# ---------------- pure-XLA reference (for self-check) ----------------

def reference_forward(params, x_nchw):
    x = x_nchw.astype(jnp.float32)

    def conv_relu(x, w, b):
        y = jax.lax.conv_general_dilated(
            x, w, window_strides=(1, 1), padding="VALID",
            dimension_numbers=("NCHW", "OIHW", "NCHW"))
        return jax.nn.relu(y + b[None, :, None, None])

    def pool(x):
        return jax.lax.reduce_window(x, -jnp.inf, jax.lax.max,
                                     (1, 1, 2, 2), (1, 1, 2, 2), "VALID")

    x = pool(conv_relu(x, params["conv1_w"], params["conv1_b"]))
    x = pool(conv_relu(x, params["conv2_w"], params["conv2_b"]))
    x = x.reshape(x.shape[0], -1)
    x = jax.nn.relu(x @ params["fc1_w"] + params["fc1_b"])
    x = x @ params["fc2_w"] + params["fc2_b"]
    return jax.nn.log_softmax(x, axis=-1)


if __name__ == "__main__":
    key = jax.random.PRNGKey(0)
    pkey, xkey = jax.random.split(key)
    params = init_params(pkey)
    # batch=2, 1 channel, 28x28 — the only spatial size consistent with fc1 = 64*5*5.
    x = jax.random.normal(xkey, (2, 1, 28, 28), jnp.float32)

    out = jax.jit(letter_cnn_forward)(params, x)
    out = jax.block_until_ready(out)
    assert out.shape == (2, NCLASS), out.shape
    # each log_softmax row exponentiates and sums to ~1
    assert bool(jnp.allclose(jnp.sum(jnp.exp(out), axis=1), 1.0, atol=1e-4))
    # cross-check against a pure-XLA f32 reference (bf16 MXU operands => loose tol)
    ref = jax.jit(reference_forward)(params, x)
    assert bool(jnp.allclose(out, ref, atol=5e-2)), float(jnp.max(jnp.abs(out - ref)))
    print("KERNEL_OK")
</pallas_src>

<mosaic_0001>
module attributes {stable_mosaic.version = 11 : i64} {
  func.func @conv2_pool_kernel(%arg0: i32, %arg1: memref<1x32x171xbf16, #tpu.memory_space<vmem>>, %arg2: memref<9x64x32xbf16, #tpu.memory_space<vmem>>, %arg3: memref<64x1xf32, #tpu.memory_space<vmem>>, %arg4: memref<129x25xbf16, #tpu.memory_space<vmem>>, %arg5: memref<1x64x25xbf16, #tpu.memory_space<vmem>>) attributes {dimension_semantics = [#tpu.dimension_semantics<parallel>], iteration_bounds = array<i64: 2>, scalar_prefetch = 0 : i64, scratch_operands = 0 : i64, tpu.core_type = #tpu.core_type<tc>, window_params = [{transform_indices = @transform_0, window_bounds = array<i64: 1, 32, 171>}, {pipeline_mode = #tpu.pipeline_mode<synchronous>, transform_indices = @transform_1, window_bounds = array<i64: 9, 64, 32>}, {pipeline_mode = #tpu.pipeline_mode<synchronous>, transform_indices = @transform_2, window_bounds = array<i64: 64, 1>}, {pipeline_mode = #tpu.pipeline_mode<synchronous>, transform_indices = @transform_3, window_bounds = array<i64: 129, 25>}, {transform_indices = @transform_4, window_bounds = array<i64: 1, 64, 25>}]} {
    %c0 = arith.constant 0 : index
    %c0_0 = arith.constant 0 : index
    %c0_1 = arith.constant 0 : index
    %0 = vector.load %arg1[%c0, %c0_0, %c0_1] : memref<1x32x171xbf16, #tpu.memory_space<vmem>>, vector<1x32x171xbf16>
    %1 = vector.shape_cast %0 : vector<1x32x171xbf16> to vector<32x171xbf16>
    %cst = arith.constant 0.000000e+00 : f32
    %2 = vector.broadcast %cst : f32 to vector<64x143xf32>
    %c0_2 = arith.constant 0 : index
    %c0_3 = arith.constant 0 : index
    %c0_4 = arith.constant 0 : index
    %3 = vector.load %arg2[%c0_2, %c0_3, %c0_4] : memref<9x64x32xbf16, #tpu.memory_space<vmem>>, vector<1x64x32xbf16>
    %4 = vector.shape_cast %3 : vector<1x64x32xbf16> to vector<64x32xbf16>
    %5 = vector.extract_strided_slice %1 {offsets = [0, 0], sizes = [32, 143], strides = [1, 1]} : vector<32x171xbf16> to vector<32x143xbf16>
    %cst_5 = arith.constant dense<0.000000e+00> : vector<64x143xf32>
    %6 = tpu.matmul %4, %5, %cst_5 {dimension_numbers = #tpu.dot_dimension_numbers<[1], [0], [0], [1], [0, 0, 1, 1], [], []>} : vector<64x32xbf16>, vector<32x143xbf16>, vector<64x143xf32> -> vector<64x143xf32>
    %7 = arith.addf %2, %6 : vector<64x143xf32>
    %c1 = arith.constant 1 : index
    %c0_6 = arith.constant 0 : index
    %c0_7 = arith.constant 0 : index
    %8 = vector.load %arg2[%c1, %c0_6, %c0_7] : memref<9x64x32xbf16, #tpu.memory_space<vmem>>, vector<1x64x32xbf16>
    %9 = vector.shape_cast %8 : vector<1x64x32xbf16> to vector<64x32xbf16>
    %10 = vector.extract_strided_slice %1 {offsets = [0, 1], sizes = [32, 143], strides = [1, 1]} : vector<32x171xbf16> to vector<32x143xbf16>
    %cst_8 = arith.constant dense<0.000000e+00> : vector<64x143xf32>
    %11 = tpu.matmul %9, %10, %cst_8 {dimension_numbers = #tpu.dot_dimension_numbers<[1], [0], [0], [1], [0, 0, 1, 1], [], []>} : vector<64x32xbf16>, vector<32x143xbf16>, vector<64x143xf32> -> vector<64x143xf32>
    %12 = arith.addf %7, %11 : vector<64x143xf32>
    %c2 = arith.constant 2 : index
    %c0_9 = arith.constant 0 : index
    %c0_10 = arith.constant 0 : index
    %13 = vector.load %arg2[%c2, %c0_9, %c0_10] : memref<9x64x32xbf16, #tpu.memory_space<vmem>>, vector<1x64x32xbf16>
    %14 = vector.shape_cast %13 : vector<1x64x32xbf16> to vector<64x32xbf16>
    %15 = vector.extract_strided_slice %1 {offsets = [0, 2], sizes = [32, 143], strides = [1, 1]} : vector<32x171xbf16> to vector<32x143xbf16>
    %cst_11 = arith.constant dense<0.000000e+00> : vector<64x143xf32>
    %16 = tpu.matmul %14, %15, %cst_11 {dimension_numbers = #tpu.dot_dimension_numbers<[1], [0], [0], [1], [0, 0, 1, 1], [], []>} : vector<64x32xbf16>, vector<32x143xbf16>, vector<64x143xf32> -> vector<64x143xf32>
    %17 = arith.addf %12, %16 : vector<64x143xf32>
    %c3 = arith.constant 3 : index
    %c0_12 = arith.constant 0 : index
    %c0_13 = arith.constant 0 : index
    %18 = vector.load %arg2[%c3, %c0_12, %c0_13] : memref<9x64x32xbf16, #tpu.memory_space<vmem>>, vector<1x64x32xbf16>
    %19 = vector.shape_cast %18 : vector<1x64x32xbf16> to vector<64x32xbf16>
    %20 = vector.extract_strided_slice %1 {offsets = [0, 13], sizes = [32, 143], strides = [1, 1]} : vector<32x171xbf16> to vector<32x143xbf16>
    %cst_14 = arith.constant dense<0.000000e+00> : vector<64x143xf32>
    %21 = tpu.matmul %19, %20, %cst_14 {dimension_numbers = #tpu.dot_dimension_numbers<[1], [0], [0], [1], [0, 0, 1, 1], [], []>} : vector<64x32xbf16>, vector<32x143xbf16>, vector<64x143xf32> -> vector<64x143xf32>
    %22 = arith.addf %17, %21 : vector<64x143xf32>
    %c4 = arith.constant 4 : index
    %c0_15 = arith.constant 0 : index
    %c0_16 = arith.constant 0 : index
    %23 = vector.load %arg2[%c4, %c0_15, %c0_16] : memref<9x64x32xbf16, #tpu.memory_space<vmem>>, vector<1x64x32xbf16>
    %24 = vector.shape_cast %23 : vector<1x64x32xbf16> to vector<64x32xbf16>
    %25 = vector.extract_strided_slice %1 {offsets = [0, 14], sizes = [32, 143], strides = [1, 1]} : vector<32x171xbf16> to vector<32x143xbf16>
    %cst_17 = arith.constant dense<0.000000e+00> : vector<64x143xf32>
    %26 = tpu.matmul %24, %25, %cst_17 {dimension_numbers = #tpu.dot_dimension_numbers<[1], [0], [0], [1], [0, 0, 1, 1], [], []>} : vector<64x32xbf16>, vector<32x143xbf16>, vector<64x143xf32> -> vector<64x143xf32>
    %27 = arith.addf %22, %26 : vector<64x143xf32>
    %c5 = arith.constant 5 : index
    %c0_18 = arith.constant 0 : index
    %c0_19 = arith.constant 0 : index
    %28 = vector.load %arg2[%c5, %c0_18, %c0_19] : memref<9x64x32xbf16, #tpu.memory_space<vmem>>, vector<1x64x32xbf16>
    %29 = vector.shape_cast %28 : vector<1x64x32xbf16> to vector<64x32xbf16>
    %30 = vector.extract_strided_slice %1 {offsets = [0, 15], sizes = [32, 143], strides = [1, 1]} : vector<32x171xbf16> to vector<32x143xbf16>
    %cst_20 = arith.constant dense<0.000000e+00> : vector<64x143xf32>
    %31 = tpu.matmul %29, %30, %cst_20 {dimension_numbers = #tpu.dot_dimension_numbers<[1], [0], [0], [1], [0, 0, 1, 1], [], []>} : vector<64x32xbf16>, vector<32x143xbf16>, vector<64x143xf32> -> vector<64x143xf32>
    %32 = arith.addf %27, %31 : vector<64x143xf32>
    %c6 = arith.constant 6 : index
    %c0_21 = arith.constant 0 : index
    %c0_22 = arith.constant 0 : index
    %33 = vector.load %arg2[%c6, %c0_21, %c0_22] : memref<9x64x32xbf16, #tpu.memory_space<vmem>>, vector<1x64x32xbf16>
    %34 = vector.shape_cast %33 : vector<1x64x32xbf16> to vector<64x32xbf16>
    %35 = vector.extract_strided_slice %1 {offsets = [0, 26], sizes = [32, 143], strides = [1, 1]} : vector<32x171xbf16> to vector<32x143xbf16>
    %cst_23 = arith.constant dense<0.000000e+00> : vector<64x143xf32>
    %36 = tpu.matmul %34, %35, %cst_23 {dimension_numbers = #tpu.dot_dimension_numbers<[1], [0], [0], [1], [0, 0, 1, 1], [], []>} : vector<64x32xbf16>, vector<32x143xbf16>, vector<64x143xf32> -> vector<64x143xf32>
    %37 = arith.addf %32, %36 : vector<64x143xf32>
    %c7 = arith.constant 7 : index
    %c0_24 = arith.constant 0 : index
    %c0_25 = arith.constant 0 : index
    %38 = vector.load %arg2[%c7, %c0_24, %c0_25] : memref<9x64x32xbf16, #tpu.memory_space<vmem>>, vector<1x64x32xbf16>
    %39 = vector.shape_cast %38 : vector<1x64x32xbf16> to vector<64x32xbf16>
    %40 = vector.extract_strided_slice %1 {offsets = [0, 27], sizes = [32, 143], strides = [1, 1]} : vector<32x171xbf16> to vector<32x143xbf16>
    %cst_26 = arith.constant dense<0.000000e+00> : vector<64x143xf32>
    %41 = tpu.matmul %39, %40, %cst_26 {dimension_numbers = #tpu.dot_dimension_numbers<[1], [0], [0], [1], [0, 0, 1, 1], [], []>} : vector<64x32xbf16>, vector<32x143xbf16>, vector<64x143xf32> -> vector<64x143xf32>
    %42 = arith.addf %37, %41 : vector<64x143xf32>
    %c8 = arith.constant 8 : index
    %c0_27 = arith.constant 0 : index
    %c0_28 = arith.constant 0 : index
    %43 = vector.load %arg2[%c8, %c0_27, %c0_28] : memref<9x64x32xbf16, #tpu.memory_space<vmem>>, vector<1x64x32xbf16>
    %44 = vector.shape_cast %43 : vector<1x64x32xbf16> to vector<64x32xbf16>
    %45 = vector.extract_strided_slice %1 {offsets = [0, 28], sizes = [32, 143], strides = [1, 1]} : vector<32x171xbf16> to vector<32x143xbf16>
    %cst_29 = arith.constant dense<0.000000e+00> : vector<64x143xf32>
    %46 = tpu.matmul %44, %45, %cst_29 {dimension_numbers = #tpu.dot_dimension_numbers<[1], [0], [0], [1], [0, 0, 1, 1], [], []>} : vector<64x32xbf16>, vector<32x143xbf16>, vector<64x143xf32> -> vector<64x143xf32>
    %47 = arith.addf %42, %46 : vector<64x143xf32>
    %c0_30 = arith.constant 0 : index
    %c0_31 = arith.constant 0 : index
    %48 = vector.load %arg3[%c0_30, %c0_31] : memref<64x1xf32, #tpu.memory_space<vmem>>, vector<64x1xf32>
    %49 = vector.broadcast %48 : vector<64x1xf32> to vector<64x143xf32>
    %50 = arith.addf %47, %49 : vector<64x143xf32>
    %cst_32 = arith.constant 0.000000e+00 : f32
    %51 = vector.broadcast %cst_32 : f32 to vector<64x143xf32>
    %52 = arith.maximumf %50, %51 : vector<64x143xf32>
    %53 = vector.extract_strided_slice %52 {offsets = [0, 0], sizes = [64, 142], strides = [1, 1]} : vector<64x143xf32> to vector<64x142xf32>
    %54 = vector.extract_strided_slice %52 {offsets = [0, 1], sizes = [64, 142], strides = [1, 1]} : vector<64x143xf32> to vector<64x142xf32>
    %55 = arith.maximumf %53, %54 : vector<64x142xf32>
    %56 = vector.extract_strided_slice %55 {offsets = [0, 0], sizes = [64, 129], strides = [1, 1]} : vector<64x142xf32> to vector<64x129xf32>
    %57 = vector.extract_strided_slice %55 {offsets = [0, 13], sizes = [64, 129], strides = [1, 1]} : vector<64x142xf32> to vector<64x129xf32>
    %58 = arith.maximumf %56, %57 : vector<64x129xf32>
    %59 = arith.truncf %58 : vector<64x129xf32> to vector<64x129xbf16>
    %c0_33 = arith.constant 0 : index
    %c0_34 = arith.constant 0 : index
    %60 = vector.load %arg4[%c0_33, %c0_34] : memref<129x25xbf16, #tpu.memory_space<vmem>>, vector<129x25xbf16>
    %cst_35 = arith.constant dense<0.000000e+00> : vector<64x25xf32>
    %61 = tpu.matmul %59, %60, %cst_35 {dimension_numbers = #tpu.dot_dimension_numbers<[1], [0], [0], [1], [0, 0, 1, 1], [], []>} : vector<64x129xbf16>, vector<129x25xbf16>, vector<64x25xf32> -> vector<64x25xf32>
    %62 = arith.truncf %61 : vector<64x25xf32> to vector<64x25xbf16>
    %c0_36 = arith.constant 0 : index
    %c0_37 = arith.constant 0 : index
    %c0_38 = arith.constant 0 : index
    %63 = vector.load %arg5[%c0_36, %c0_37, %c0_38] : memref<1x64x25xbf16, #tpu.memory_space<vmem>>, vector<1x64x25xbf16>
    %64 = vector.shape_cast %63 : vector<1x64x25xbf16> to vector<64x25xbf16>
    %65 = vector.shape_cast %62 : vector<64x25xbf16> to vector<1x64x25xbf16>
    tpu.vector_store %arg5[%c0_36, %c0_37, %c0_38], %65 {strides = array<i32>} : memref<1x64x25xbf16, #tpu.memory_space<vmem>>, vector<1x64x25xbf16>,
    return
  }
  func.func @transform_0(%arg0: i32) -> (i32, i32, i32) {
    %c0_i32 = arith.constant 0 : i32
    %c0_i32_0 = arith.constant 0 : i32
    %c0_i32_1 = arith.constant 0 : i32
    return %arg0, %c0_i32, %c0_i32_0 : i32, i32, i32
  }
  func.func @transform_1(%arg0: i32) -> (i32, i32, i32) {
    %c0_i32 = arith.constant 0 : i32
    %c0_i32_0 = arith.constant 0 : i32
    %c0_i32_1 = arith.constant 0 : i32
    %c0_i32_2 = arith.constant 0 : i32
    return %c0_i32, %c0_i32_0, %c0_i32_1 : i32, i32, i32
  }
  func.func @transform_2(%arg0: i32) -> (i32, i32) {
    %c0_i32 = arith.constant 0 : i32
    %c0_i32_0 = arith.constant 0 : i32
    %c0_i32_1 = arith.constant 0 : i32
    return %c0_i32, %c0_i32_0 : i32, i32
  }
  func.func @transform_3(%arg0: i32) -> (i32, i32) {
    %c0_i32 = arith.constant 0 : i32
    %c0_i32_0 = arith.constant 0 : i32
    %c0_i32_1 = arith.constant 0 : i32
    return %c0_i32, %c0_i32_0 : i32, i32
  }
  func.func @transform_4(%arg0: i32) -> (i32, i32, i32) {
    %c0_i32 = arith.constant 0 : i32
    %c0_i32_0 = arith.constant 0 : i32
    %c0_i32_1 = arith.constant 0 : i32
    return %arg0, %c0_i32, %c0_i32_0 : i32, i32, i32
  }
}

module attributes {stable_mosaic.version = 11 : i64} {
  func.func @conv1_pool_kernel(%arg0: i32, %arg1: memref<1x1x786xf32, #tpu.memory_space<vmem>>, %arg2: memref<9x32x1xf32, #tpu.memory_space<vmem>>, %arg3: memref<32x1xf32, #tpu.memory_space<vmem>>, %arg4: memref<699x171xbf16, #tpu.memory_space<vmem>>, %arg5: memref<1x32x171xbf16, #tpu.memory_space<vmem>>) attributes {dimension_semantics = [#tpu.dimension_semantics<parallel>], iteration_bounds = array<i64: 2>, scalar_prefetch = 0 : i64, scratch_operands = 0 : i64, tpu.core_type = #tpu.core_type<tc>, window_params = [{transform_indices = @transform_0, window_bounds = array<i64: 1, 1, 786>}, {pipeline_mode = #tpu.pipeline_mode<synchronous>, transform_indices = @transform_1, window_bounds = array<i64: 9, 32, 1>}, {pipeline_mode = #tpu.pipeline_mode<synchronous>, transform_indices = @transform_2, window_bounds = array<i64: 32, 1>}, {pipeline_mode = #tpu.pipeline_mode<synchronous>, transform_indices = @transform_3, window_bounds = array<i64: 699, 171>}, {transform_indices = @transform_4, window_bounds = array<i64: 1, 32, 171>}]} {
    %c0 = arith.constant 0 : index
    %c0_0 = arith.constant 0 : index
    %c0_1 = arith.constant 0 : index
    %0 = vector.load %arg1[%c0, %c0_0, %c0_1] : memref<1x1x786xf32, #tpu.memory_space<vmem>>, vector<1x1x786xf32>
    %1 = vector.shape_cast %0 : vector<1x1x786xf32> to vector<1x786xf32>
    %cst = arith.constant 0.000000e+00 : f32
    %2 = vector.broadcast %cst : f32 to vector<32x728xf32>
    %c0_2 = arith.constant 0 : index
    %c0_3 = arith.constant 0 : index
    %c0_4 = arith.constant 0 : index
    %3 = vector.load %arg2[%c0_2, %c0_3, %c0_4] : memref<9x32x1xf32, #tpu.memory_space<vmem>>, vector<1x32x1xf32>
    %4 = vector.shape_cast %3 : vector<1x32x1xf32> to vector<32x1xf32>
    %5 = vector.extract_strided_slice %1 {offsets = [0, 0], sizes = [1, 728], strides = [1, 1]} : vector<1x786xf32> to vector<1x728xf32>
    %6 = vector.broadcast %4 : vector<32x1xf32> to vector<32x728xf32>
    %7 = vector.broadcast %5 : vector<1x728xf32> to vector<32x728xf32>
    %8 = arith.mulf %6, %7 : vector<32x728xf32>
    %9 = arith.addf %2, %8 : vector<32x728xf32>
    %c1 = arith.constant 1 : index
    %c0_5 = arith.constant 0 : index
    %c0_6 = arith.constant 0 : index
    %10 = vector.load %arg2[%c1, %c0_5, %c0_6] : memref<9x32x1xf32, #tpu.memory_space<vmem>>, vector<1x32x1xf32>
    %11 = vector.shape_cast %10 : vector<1x32x1xf32> to vector<32x1xf32>
    %12 = vector.extract_strided_slice %1 {offsets = [0, 1], sizes = [1, 728], strides = [1, 1]} : vector<1x786xf32> to vector<1x728xf32>
    %13 = vector.broadcast %11 : vector<32x1xf32> to vector<32x728xf32>
    %14 = vector.broadcast %12 : vector<1x728xf32> to vector<32x728xf32>
    %15 = arith.mulf %13, %14 : vector<32x728xf32>
    %16 = arith.addf %9, %15 : vector<32x728xf32>
    %c2 = arith.constant 2 : index
    %c0_7 = arith.constant 0 : index
    %c0_8 = arith.constant 0 : index
    %17 = vector.load %arg2[%c2, %c0_7, %c0_8] : memref<9x32x1xf32, #tpu.memory_space<vmem>>, vector<1x32x1xf32>
    %18 = vector.shape_cast %17 : vector<1x32x1xf32> to vector<32x1xf32>
    %19 = vector.extract_strided_slice %1 {offsets = [0, 2], sizes = [1, 728], strides = [1, 1]} : vector<1x786xf32> to vector<1x728xf32>
    %20 = vector.broadcast %18 : vector<32x1xf32> to vector<32x728xf32>
    %21 = vector.broadcast %19 : vector<1x728xf32> to vector<32x728xf32>
    %22 = arith.mulf %20, %21 : vector<32x728xf32>
    %23 = arith.addf %16, %22 : vector<32x728xf32>
    %c3 = arith.constant 3 : index
    %c0_9 = arith.constant 0 : index
    %c0_10 = arith.constant 0 : index
    %24 = vector.load %arg2[%c3, %c0_9, %c0_10] : memref<9x32x1xf32, #tpu.memory_space<vmem>>, vector<1x32x1xf32>
    %25 = vector.shape_cast %24 : vector<1x32x1xf32> to vector<32x1xf32>
    %26 = vector.extract_strided_slice %1 {offsets = [0, 28], sizes = [1, 728], strides = [1, 1]} : vector<1x786xf32> to vector<1x728xf32>
    %27 = vector.broadcast %25 : vector<32x1xf32> to vector<32x728xf32>
    %28 = vector.broadcast %26 : vector<1x728xf32> to vector<32x728xf32>
    %29 = arith.mulf %27, %28 : vector<32x728xf32>
    %30 = arith.addf %23, %29 : vector<32x728xf32>
    %c4 = arith.constant 4 : index
    %c0_11 = arith.constant 0 : index
    %c0_12 = arith.constant 0 : index
    %31 = vector.load %arg2[%c4, %c0_11, %c0_12] : memref<9x32x1xf32, #tpu.memory_space<vmem>>, vector<1x32x1xf32>
    %32 = vector.shape_cast %31 : vector<1x32x1xf32> to vector<32x1xf32>
    %33 = vector.extract_strided_slice %1 {offsets = [0, 29], sizes = [1, 728], strides = [1, 1]} : vector<1x786xf32> to vector<1x728xf32>
    %34 = vector.broadcast %32 : vector<32x1xf32> to vector<32x728xf32>
    %35 = vector.broadcast %33 : vector<1x728xf32> to vector<32x728xf32>
    %36 = arith.mulf %34, %35 : vector<32x728xf32>
    %37 = arith.addf %30, %36 : vector<32x728xf32>
    %c5 = arith.constant 5 : index
    %c0_13 = arith.constant 0 : index
    %c0_14 = arith.constant 0 : index
    %38 = vector.load %arg2[%c5, %c0_13, %c0_14] : memref<9x32x1xf32, #tpu.memory_space<vmem>>, vector<1x32x1xf32>
    %39 = vector.shape_cast %38 : vector<1x32x1xf32> to vector<32x1xf32>
    %40 = vector.extract_strided_slice %1 {offsets = [0, 30], sizes = [1, 728], strides = [1, 1]} : vector<1x786xf32> to vector<1x728xf32>
    %41 = vector.broadcast %39 : vector<32x1xf32> to vector<32x728xf32>
    %42 = vector.broadcast %40 : vector<1x728xf32> to vector<32x728xf32>
    %43 = arith.mulf %41, %42 : vector<32x728xf32>
    %44 = arith.addf %37, %43 : vector<32x728xf32>
    %c6 = arith.constant 6 : index
    %c0_15 = arith.constant 0 : index
    %c0_16 = arith.constant 0 : index
    %45 = vector.load %arg2[%c6, %c0_15, %c0_16] : memref<9x32x1xf32, #tpu.memory_space<vmem>>, vector<1x32x1xf32>
    %46 = vector.shape_cast %45 : vector<1x32x1xf32> to vector<32x1xf32>
    %47 = vector.extract_strided_slice %1 {offsets = [0, 56], sizes = [1, 728], strides = [1, 1]} : vector<1x786xf32> to vector<1x728xf32>
    %48 = vector.broadcast %46 : vector<32x1xf32> to vector<32x728xf32>
    %49 = vector.broadcast %47 : vector<1x728xf32> to vector<32x728xf32>
    %50 = arith.mulf %48, %49 : vector<32x728xf32>
    %51 = arith.addf %44, %50 : vector<32x728xf32>
    %c7 = arith.constant 7 : index
    %c0_17 = arith.constant 0 : index
    %c0_18 = arith.constant 0 : index
    %52 = vector.load %arg2[%c7, %c0_17, %c0_18] : memref<9x32x1xf32, #tpu.memory_space<vmem>>, vector<1x32x1xf32>
    %53 = vector.shape_cast %52 : vector<1x32x1xf32> to vector<32x1xf32>
    %54 = vector.extract_strided_slice %1 {offsets = [0, 57], sizes = [1, 728], strides = [1, 1]} : vector<1x786xf32> to vector<1x728xf32>
    %55 = vector.broadcast %53 : vector<32x1xf32> to vector<32x728xf32>
    %56 = vector.broadcast %54 : vector<1x728xf32> to vector<32x728xf32>
    %57 = arith.mulf %55, %56 : vector<32x728xf32>
    %58 = arith.addf %51, %57 : vector<32x728xf32>
    %c8 = arith.constant 8 : index
    %c0_19 = arith.constant 0 : index
    %c0_20 = arith.constant 0 : index
    %59 = vector.load %arg2[%c8, %c0_19, %c0_20] : memref<9x32x1xf32, #tpu.memory_space<vmem>>, vector<1x32x1xf32>
    %60 = vector.shape_cast %59 : vector<1x32x1xf32> to vector<32x1xf32>
    %61 = vector.extract_strided_slice %1 {offsets = [0, 58], sizes = [1, 728], strides = [1, 1]} : vector<1x786xf32> to vector<1x728xf32>
    %62 = vector.broadcast %60 : vector<32x1xf32> to vector<32x728xf32>
    %63 = vector.broadcast %61 : vector<1x728xf32> to vector<32x728xf32>
    %64 = arith.mulf %62, %63 : vector<32x728xf32>
    %65 = arith.addf %58, %64 : vector<32x728xf32>
    %c0_21 = arith.constant 0 : index
    %c0_22 = arith.constant 0 : index
    %66 = vector.load %arg3[%c0_21, %c0_22] : memref<32x1xf32, #tpu.memory_space<vmem>>, vector<32x1xf32>
    %67 = vector.broadcast %66 : vector<32x1xf32> to vector<32x728xf32>
    %68 = arith.addf %65, %67 : vector<32x728xf32>
    %cst_23 = arith.constant 0.000000e+00 : f32
    %69 = vector.broadcast %cst_23 : f32 to vector<32x728xf32>
    %70 = arith.maximumf %68, %69 : vector<32x728xf32>
    %71 = vector.extract_strided_slice %70 {offsets = [0, 0], sizes = [32, 727], strides = [1, 1]} : vector<32x728xf32> to vector<32x727xf32>
    %72 = vector.extract_strided_slice %70 {offsets = [0, 1], sizes = [32, 727], strides = [1, 1]} : vector<32x728xf32> to vector<32x727xf32>
    %73 = arith.maximumf %71, %72 : vector<32x727xf32>
    %74 = vector.extract_strided_slice %73 {offsets = [0, 0], sizes = [32, 699], strides = [1, 1]} : vector<32x727xf32> to vector<32x699xf32>
    %75 = vector.extract_strided_slice %73 {offsets = [0, 28], sizes = [32, 699], strides = [1, 1]} : vector<32x727xf32> to vector<32x699xf32>
    %76 = arith.maximumf %74, %75 : vector<32x699xf32>
    %77 = arith.truncf %76 : vector<32x699xf32> to vector<32x699xbf16>
    %c0_24 = arith.constant 0 : index
    %c0_25 = arith.constant 0 : index
    %78 = vector.load %arg4[%c0_24, %c0_25] : memref<699x171xbf16, #tpu.memory_space<vmem>>, vector<699x171xbf16>
    %cst_26 = arith.constant dense<0.000000e+00> : vector<32x171xf32>
    %79 = tpu.matmul %77, %78, %cst_26 {dimension_numbers = #tpu.dot_dimension_numbers<[1], [0], [0], [1], [0, 0, 1, 1], [], []>} : vector<32x699xbf16>, vector<699x171xbf16>, vector<32x171xf32> -> vector<32x171xf32>
    %80 = arith.truncf %79 : vector<32x171xf32> to vector<32x171xbf16>
    %c0_27 = arith.constant 0 : index
    %c0_28 = arith.constant 0 : index
    %c0_29 = arith.constant 0 : index
    %81 = vector.load %arg5[%c0_27, %c0_28, %c0_29] : memref<1x32x171xbf16, #tpu.memory_space<vmem>>, vector<1x32x171xbf16>
    %82 = vector.shape_cast %81 : vector<1x32x171xbf16> to vector<32x171xbf16>
    %83 = vector.shape_cast %80 : vector<32x171xbf16> to vector<1x32x171xbf16>
    tpu.vector_store %arg5[%c0_27, %c0_28, %c0_29], %83 {strides = array<i32>} : memref<1x32x171xbf16, #tpu.memory_space<vmem>>, vector<1x32x171xbf16>,
    return
  }
  func.func @transform_0(%arg0: i32) -> (i32, i32, i32) {
    %c0_i32 = arith.constant 0 : i32
    %c0_i32_0 = arith.constant 0 : i32
    %c0_i32_1 = arith.constant 0 : i32
    return %arg0, %c0_i32, %c0_i32_0 : i32, i32, i32
  }
  func.func @transform_1(%arg0: i32) -> (i32, i32, i32) {
    %c0_i32 = arith.constant 0 : i32
    %c0_i32_0 = arith.constant 0 : i32
    %c0_i32_1 = arith.constant 0 : i32
    %c0_i32_2 = arith.constant 0 : i32
    return %c0_i32, %c0_i32_0, %c0_i32_1 : i32, i32, i32
  }
  func.func @transform_2(%arg0: i32) -> (i32, i32) {
    %c0_i32 = arith.constant 0 : i32
    %c0_i32_0 = arith.constant 0 : i32
    %c0_i32_1 = arith.constant 0 : i32
    return %c0_i32, %c0_i32_0 : i32, i32
  }
  func.func @transform_3(%arg0: i32) -> (i32, i32) {
    %c0_i32 = arith.constant 0 : i32
    %c0_i32_0 = arith.constant 0 : i32
    %c0_i32_1 = arith.constant 0 : i32
    return %c0_i32, %c0_i32_0 : i32, i32
  }
  func.func @transform_4(%arg0: i32) -> (i32, i32, i32) {
    %c0_i32 = arith.constant 0 : i32
    %c0_i32_0 = arith.constant 0 : i32
    %c0_i32_1 = arith.constant 0 : i32
    return %arg0, %c0_i32, %c0_i32_0 : i32, i32, i32
  }
}

module attributes {stable_mosaic.version = 11 : i64} {
  func.func @fc_head_kernel(%arg0: i32, %arg1: memref<2x1600xbf16, #tpu.memory_space<vmem>>, %arg2: memref<1600x128xbf16, #tpu.memory_space<vmem>>, %arg3: memref<1x128xf32, #tpu.memory_space<vmem>>, %arg4: memref<128x128xbf16, #tpu.memory_space<vmem>>, %arg5: memref<1x128xf32, #tpu.memory_space<vmem>>, %arg6: memref<2x128xf32, #tpu.memory_space<vmem>>) attributes {dimension_semantics = [#tpu.dimension_semantics<parallel>], iteration_bounds = array<i64: 1>, scalar_prefetch = 0 : i64, scratch_operands = 0 : i64, tpu.core_type = #tpu.core_type<tc>, window_params = [{transform_indices = @transform_0, window_bounds = array<i64: 2, 1600>}, {pipeline_mode = #tpu.pipeline_mode<synchronous>, transform_indices = @transform_1, window_bounds = array<i64: 1600, 128>}, {pipeline_mode = #tpu.pipeline_mode<synchronous>, transform_indices = @transform_2, window_bounds = array<i64: 1, 128>}, {pipeline_mode = #tpu.pipeline_mode<synchronous>, transform_indices = @transform_3, window_bounds = array<i64: 128, 128>}, {pipeline_mode = #tpu.pipeline_mode<synchronous>, transform_indices = @transform_4, window_bounds = array<i64: 1, 128>}, {transform_indices = @transform_5, window_bounds = array<i64: 2, 128>}]} {
    %c0 = arith.constant 0 : index
    %c0_0 = arith.constant 0 : index
    %0 = vector.load %arg1[%c0, %c0_0] : memref<2x1600xbf16, #tpu.memory_space<vmem>>, vector<2x1600xbf16>
    %c0_1 = arith.constant 0 : index
    %c0_2 = arith.constant 0 : index
    %1 = vector.load %arg2[%c0_1, %c0_2] : memref<1600x128xbf16, #tpu.memory_space<vmem>>, vector<1600x128xbf16>
    %cst = arith.constant dense<0.000000e+00> : vector<2x128xf32>
    %2 = tpu.matmul %0, %1, %cst {dimension_numbers = #tpu.dot_dimension_numbers<[1], [0], [0], [1], [0, 0, 1, 1], [], []>} : vector<2x1600xbf16>, vector<1600x128xbf16>, vector<2x128xf32> -> vector<2x128xf32>
    %c0_3 = arith.constant 0 : index
    %c0_4 = arith.constant 0 : index
    %3 = vector.load %arg3[%c0_3, %c0_4] : memref<1x128xf32, #tpu.memory_space<vmem>>, vector<1x128xf32>
    %4 = vector.broadcast %3 : vector<1x128xf32> to vector<2x128xf32>
    %5 = arith.addf %2, %4 : vector<2x128xf32>
    %cst_5 = arith.constant 0.000000e+00 : f32
    %6 = vector.broadcast %cst_5 : f32 to vector<2x128xf32>
    %7 = arith.maximumf %5, %6 : vector<2x128xf32>
    %8 = arith.truncf %7 : vector<2x128xf32> to vector<2x128xbf16>
    %c0_6 = arith.constant 0 : index
    %c0_7 = arith.constant 0 : index
    %9 = vector.load %arg4[%c0_6, %c0_7] : memref<128x128xbf16, #tpu.memory_space<vmem>>, vector<128x128xbf16>
    %cst_8 = arith.constant dense<0.000000e+00> : vector<2x128xf32>
    %10 = tpu.matmul %8, %9, %cst_8 {dimension_numbers = #tpu.dot_dimension_numbers<[1], [0], [0], [1], [0, 0, 1, 1], [], []>} : vector<2x128xbf16>, vector<128x128xbf16>, vector<2x128xf32> -> vector<2x128xf32>
    %c0_9 = arith.constant 0 : index
    %c0_10 = arith.constant 0 : index
    %11 = vector.load %arg5[%c0_9, %c0_10] : memref<1x128xf32, #tpu.memory_space<vmem>>, vector<1x128xf32>
    %12 = vector.broadcast %11 : vector<1x128xf32> to vector<2x128xf32>
    %13 = arith.addf %10, %12 : vector<2x128xf32>
    %cst_11 = arith.constant dense<0xFF800000> : vector<2xf32>
    %14 = vector.multi_reduction <maximumf>, %13, %cst_11 [1] : vector<2x128xf32> to vector<2xf32>
    %15 = vector.shape_cast %14 : vector<2xf32> to vector<2x1xf32>
    %16 = vector.broadcast %15 : vector<2x1xf32> to vector<2x128xf32>
    %17 = arith.subf %13, %16 : vector<2x128xf32>
    %18 = math.exp %17 : vector<2x128xf32>
    %cst_12 = arith.constant dense<0.000000e+00> : vector<2xf32>
    %19 = vector.multi_reduction <add>, %18, %cst_12 [1] : vector<2x128xf32> to vector<2xf32>
    %20 = vector.shape_cast %19 : vector<2xf32> to vector<2x1xf32>
    %21 = math.log %20 : vector<2x1xf32>
    %22 = vector.broadcast %21 : vector<2x1xf32> to vector<2x128xf32>
    %23 = arith.subf %17, %22 : vector<2x128xf32>
    %c0_13 = arith.constant 0 : index
    %c0_14 = arith.constant 0 : index
    %24 = vector.load %arg6[%c0_13, %c0_14] : memref<2x128xf32, #tpu.memory_space<vmem>>, vector<2x128xf32>
    tpu.vector_store %arg6[%c0_13, %c0_14], %23 {strides = array<i32>} : memref<2x128xf32, #tpu.memory_space<vmem>>, vector<2x128xf32>,
    return
  }
  func.func @transform_0(%arg0: i32) -> (i32, i32) {
    %c0_i32 = arith.constant 0 : i32
    %c0_i32_0 = arith.constant 0 : i32
    return %arg0, %c0_i32 : i32, i32
  }
  func.func @transform_1(%arg0: i32) -> (i32, i32) {
    %c0_i32 = arith.constant 0 : i32
    %c0_i32_0 = arith.constant 0 : i32
    %c0_i32_1 = arith.constant 0 : i32
    return %c0_i32, %c0_i32_0 : i32, i32
  }
  func.func @transform_2(%arg0: i32) -> (i32, i32) {
    %c0_i32 = arith.constant 0 : i32
    %c0_i32_0 = arith.constant 0 : i32
    %c0_i32_1 = arith.constant 0 : i32
    return %c0_i32, %c0_i32_0 : i32, i32
  }
  func.func @transform_3(%arg0: i32) -> (i32, i32) {
    %c0_i32 = arith.constant 0 : i32
    %c0_i32_0 = arith.constant 0 : i32
    %c0_i32_1 = arith.constant 0 : i32
    return %c0_i32, %c0_i32_0 : i32, i32
  }
  func.func @transform_4(%arg0: i32) -> (i32, i32) {
    %c0_i32 = arith.constant 0 : i32
    %c0_i32_0 = arith.constant 0 : i32
    %c0_i32_1 = arith.constant 0 : i32
    return %c0_i32, %c0_i32_0 : i32, i32
  }
  func.func @transform_5(%arg0: i32) -> (i32, i32) {
    %c0_i32 = arith.constant 0 : i32
    %c0_i32_0 = arith.constant 0 : i32
    return %arg0, %c0_i32 : i32, i32
  }
}

</mosaic_0001>

<llo_original>
// kernel: letter_cnn_forward.5
$region0: #{letter_cnn_forward.5}
  #allocation0 [shape = 'u32[]', space=smem, size = 0x4, offset = 0x4, fixed_abs, tag = 'smem constant byte address 0x4 - core index']
  #allocation1 [shape = 'u32[72,128]{1,0:T(1,128)}', space=vmem, size = 0x9000, scoped, tag = 'internal scratch']
  %s0 = inlined_call_operand.vmem [shape: bf16[2,1600], index: 0, kind: input, shape index: {}]
  %s1 = inlined_call_operand.vmem [shape: bf16[1600,128], index: 1, kind: input, shape index: {}]
  %s2 = inlined_call_operand.vmem [shape: f32[1,128], index: 2, kind: input, shape index: {}]
  %s3 = inlined_call_operand.vmem [shape: bf16[128,128], index: 3, kind: input, shape index: {}]
  %s4 = inlined_call_operand.vmem [shape: f32[1,128], index: 4, kind: input, shape index: {}]
  %s5 = inlined_call_operand.hbm [shape: f32[2,128], index: 5, kind: output, shape index: {}]
  %s6 = sld [smem:[#allocation0]]
  $region30: #{letter_cnn_forward.5} parent=0
    _
  %s8 = ssub.s32 1, %s6
  %s9 = scalar_select 0, %s8, %s6
  $region1: #{letter_cnn_forward.5} parent=0
    #allocation2 [shape = 'u8[1024]{0}', space=vmem, size = 0x400, scoped, tag = 'output window, operand 0, single buffered']
    #allocation3 [shape = 's32[1]{0}', space=sflag, size = 0x4, scoped, tag = 'scoped memory for letter_cnn_forward.5']
    %10 = vsyncpa [#allocation3], 0
    // Predicated region
    $region2: #{letter_cnn_forward.5} parent=1 // pred_check
      _
    $region3: #{letter_cnn_forward.5} parent=1 // pred_check_branch
      %12 = sbr.rel (0) target = $region5
    $region4: #{letter_cnn_forward.5} parent=1 // pred_region
      _
    $region5: #{letter_cnn_forward.5} parent=1 // pred_fallthru
      _
    // Predicated region
    $region6: #{letter_cnn_forward.5} parent=1 // pred_check
      _
    $region7: #{letter_cnn_forward.5} parent=1 // pred_check_branch
      %14 = sbr.rel (0) target = $region9
    $region8: #{letter_cnn_forward.5} parent=1 // pred_region
      _
    $region9: #{letter_cnn_forward.5} parent=1 // pred_fallthru
      _
    // Predicated region
    $region10: #{letter_cnn_forward.5} parent=1 // pred_check
      _
    $region11: #{letter_cnn_forward.5} parent=1 // pred_check_branch
      %16 = sbr.rel (0) target = $region13
    $region12: #{letter_cnn_forward.5} parent=1 // pred_region
      _
    $region13: #{letter_cnn_forward.5} parent=1 // pred_fallthru
      _
    // Predicated region
    $region14: #{letter_cnn_forward.5} parent=1 // pred_check
      _
    $region15: #{letter_cnn_forward.5} parent=1 // pred_check_branch
      %18 = sbr.rel (0) target = $region17
    $region16: #{letter_cnn_forward.5} parent=1 // pred_region
      _
    $region17: #{letter_cnn_forward.5} parent=1 // pred_fallthru
      _
    // Predicated region
    $region18: #{letter_cnn_forward.5} parent=1 // pred_check
      _
    $region19: #{letter_cnn_forward.5} parent=1 // pred_check_branch
      %20 = sbr.rel (0) target = $region21
    $region20: #{letter_cnn_forward.5} parent=1 // pred_region
      _
    $region21: #{letter_cnn_forward.5} parent=1 // pred_fallthru
      _
    %v22 = vld [vmem:[%s0] sm:$0xff]
    %v23 = vld [vmem:[%s0 + $0x8] sm:$0x1f]
    %v24 = vld [vmem:[%s1] sm:$0xf]
    %v25 = vld [vmem:[%s1 + $0x4] sm:$0xf]
    %v26 = vld [vmem:[%s1 + $0x8] sm:$0xf]
    %v27 = vld [vmem:[%s1 + $0xc] sm:$0xf]
    %v28 = vld [vmem:[%s1 + $0x10] sm:$0xf]
    %v29 = vld [vmem:[%s1 + $0x14] sm:$0xf]
    %v30 = vld [vmem:[%s1 + $0x18] sm:$0xf]
    %v31 = vld [vmem:[%s1 + $0x1c] sm:$0xf]
    %v32 = vld [vmem:[%s1 + $0x20] sm:$0xf]
    %v33 = vld [vmem:[%s1 + $0x24] sm:$0xf]
    %v34 = vld [vmem:[%s1 + $0x28] sm:$0xf]
    %v35 = vld [vmem:[%s1 + $0x2c] sm:$0xf]
    %v36 = vld [vmem:[%s1 + $0x30] sm:$0xf]
    %v37 = vld [vmem:[%s1 + $0x34] sm:$0xf]
    %v38 = vld [vmem:[%s1 + $0x38] sm:$0xf]
    %v39 = vld [vmem:[%s1 + $0x3c] sm:$0xf]
    %v40 = vld [vmem:[%s1 + $0x40] sm:$0xf]
    %v41 = vld [vmem:[%s1 + $0x44] sm:$0xf]
    %v42 = vld [vmem:[%s1 + $0x48] sm:$0xf]
    %v43 = vld [vmem:[%s1 + $0x4c] sm:$0xf]
    %v44 = vld [vmem:[%s1 + $0x50] sm:$0xf]
    %v45 = vld [vmem:[%s1 + $0x54] sm:$0xf]
    %v46 = vld [vmem:[%s1 + $0x58] sm:$0xf]
    %v47 = vld [vmem:[%s1 + $0x5c] sm:$0xf]
    %v48 = vld [vmem:[%s1 + $0x60] sm:$0xf]
    %v49 = vld [vmem:[%s1 + $0x64] sm:$0xf]
    %v50 = vld [vmem:[%s1 + $0x68] sm:$0xf]
    %v51 = vld [vmem:[%s1 + $0x6c] sm:$0xf]
    %v52 = vld [vmem:[%s1 + $0x70] sm:$0xf]
    %v53 = vld [vmem:[%s1 + $0x74] sm:$0xf]
    %v54 = vld [vmem:[%s1 + $0x78] sm:$0xf]
    %v55 = vld [vmem:[%s1 + $0x7c] sm:$0xf]
    %v56 = vld [vmem:[%s1 + $0x80] sm:$0xf]
    %v57 = vld [vmem:[%s1 + $0x84] sm:$0xf]
    %v58 = vld [vmem:[%s1 + $0x88] sm:$0xf]
    %v59 = vld [vmem:[%s1 + $0x8c] sm:$0xf]
    %v60 = vld [vmem:[%s1 + $0x90] sm:$0xf]
    %v61 = vld [vmem:[%s1 + $0x94] sm:$0xf]
    %v62 = vld [vmem:[%s1 + $0x98] sm:$0xf]
    %v63 = vld [vmem:[%s1 + $0x9c] sm:$0xf]
    %v64 = vld [vmem:[%s1 + $0xa0] sm:$0xf]
    %v65 = vld [vmem:[%s1 + $0xa4] sm:$0xf]
    %v66 = vld [vmem:[%s1 + $0xa8] sm:$0xf]
    %v67 = vld [vmem:[%s1 + $0xac] sm:$0xf]
    %v68 = vld [vmem:[%s1 + $0xb0] sm:$0xf]
    %v69 = vld [vmem:[%s1 + $0xb4] sm:$0xf]
    %v70 = vld [vmem:[%s1 + $0xb8] sm:$0xf]
    %v71 = vld [vmem:[%s1 + $0xbc] sm:$0xf]
    %v72 = vld [vmem:[%s1 + $0xc0] sm:$0xf]
    %v73 = vld [vmem:[%s1 + $0xc4] sm:$0xf]
    %v74 = vld [vmem:[%s1 + $0xc8] sm:$0xf]
    %v75 = vld [vmem:[%s1 + $0xcc] sm:$0xf]
    %v76 = vld [vmem:[%s1 + $0xd0] sm:$0xf]
    %v77 = vld [vmem:[%s1 + $0xd4] sm:$0xf]
    %v78 = vld [vmem:[%s1 + $0xd8] sm:$0xf]
    %v79 = vld [vmem:[%s1 + $0xdc] sm:$0xf]
    %v80 = vld [vmem:[%s1 + $0xe0] sm:$0xf]
    %v81 = vld [vmem:[%s1 + $0xe4] sm:$0xf]
    %v82 = vld [vmem:[%s1 + $0xe8] sm:$0xf]
    %v83 = vld [vmem:[%s1 + $0xec] sm:$0xf]
    %v84 = vld [vmem:[%s1 + $0xf0] sm:$0xf]
    %v85 = vld [vmem:[%s1 + $0xf4] sm:$0xf]
    %v86 = vld [vmem:[%s1 + $0xf8] sm:$0xf]
    %v87 = vld [vmem:[%s1 + $0xfc] sm:$0xf]
    %v88 = vld [vmem:[%s1 + $0x100] sm:$0xf]
    %v89 = vld [vmem:[%s1 + $0x104] sm:$0xf]
    %v90 = vld [vmem:[%s1 + $0x108] sm:$0xf]
    %v91 = vld [vmem:[%s1 + $0x10c] sm:$0xf]
    %v92 = vld [vmem:[%s1 + $0x110] sm:$0xf]
    %v93 = vld [vmem:[%s1 + $0x114] sm:$0xf]
    %v94 = vld [vmem:[%s1 + $0x118] sm:$0xf]
    %v95 = vld [vmem:[%s1 + $0x11c] sm:$0xf]
    %v96 = vld [vmem:[%s1 + $0x120] sm:$0xf]
    %v97 = vld [vmem:[%s1 + $0x124] sm:$0xf]
    %v98 = vld [vmem:[%s1 + $0x128] sm:$0xf]
    %v99 = vld [vmem:[%s1 + $0x12c] sm:$0xf]
    %v100 = vld [vmem:[%s1 + $0x130] sm:$0xf]
    %v101 = vld [vmem:[%s1 + $0x134] sm:$0xf]
    %v102 = vld [vmem:[%s1 + $0x138] sm:$0xf]
    %v103 = vld [vmem:[%s1 + $0x13c] sm:$0xf]
    %v104 = vld [vmem:[%s1 + $0x140] sm:$0xf]
    %v105 = vld [vmem:[%s1 + $0x144] sm:$0xf]
    %v106 = vld [vmem:[%s1 + $0x148] sm:$0xf]
    %v107 = vld [vmem:[%s1 + $0x14c] sm:$0xf]
    %v108 = vld [vmem:[%s1 + $0x150] sm:$0xf]
    %v109 = vld [vmem:[%s1 + $0x154] sm:$0xf]
    %v110 = vld [vmem:[%s1 + $0x158] sm:$0xf]
    %v111 = vld [vmem:[%s1 + $0x15c] sm:$0xf]
    %v112 = vld [vmem:[%s1 + $0x160] sm:$0xf]
    %v113 = vld [vmem:[%s1 + $0x164] sm:$0xf]
    %v114 = vld [vmem:[%s1 + $0x168] sm:$0xf]
    %v115 = vld [vmem:[%s1 + $0x16c] sm:$0xf]
    %v116 = vld [vmem:[%s1 + $0x170] sm:$0xf]
    %v117 = vld [vmem:[%s1 + $0x174] sm:$0xf]
    %v118 = vld [vmem:[%s1 + $0x178] sm:$0xf]
    %v119 = vld [vmem:[%s1 + $0x17c] sm:$0xf]
    %v120 = vld [vmem:[%s1 + $0x180] sm:$0xf]
    %v121 = vld [vmem:[%s1 + $0x184] sm:$0xf]
    %v122 = vld [vmem:[%s1 + $0x188] sm:$0xf]
    %v123 = vld [vmem:[%s1 + $0x18c] sm:$0xf]
    %v124 = vld [vmem:[%s1 + $0x190] sm:$0xf]
    %v125 = vld [vmem:[%s1 + $0x194] sm:$0xf]
    %v126 = vld [vmem:[%s1 + $0x198] sm:$0xf]
    %v127 = vld [vmem:[%s1 + $0x19c] sm:$0xf]
    %v128 = vld [vmem:[%s1 + $0x1a0] sm:$0xf]
    %v129 = vld [vmem:[%s1 + $0x1a4] sm:$0xf]
    %v130 = vld [vmem:[%s1 + $0x1a8] sm:$0xf]
    %v131 = vld [vmem:[%s1 + $0x1ac] sm:$0xf]
    %v132 = vld [vmem:[%s1 + $0x1b0] sm:$0xf]
    %v133 = vld [vmem:[%s1 + $0x1b4] sm:$0xf]
    %v134 = vld [vmem:[%s1 + $0x1b8] sm:$0xf]
    %v135 = vld [vmem:[%s1 + $0x1bc] sm:$0xf]
    %v136 = vld [vmem:[%s1 + $0x1c0] sm:$0xf]
    %v137 = vld [vmem:[%s1 + $0x1c4] sm:$0xf]
    %v138 = vld [vmem:[%s1 + $0x1c8] sm:$0xf]
    %v139 = vld [vmem:[%s1 + $0x1cc] sm:$0xf]
    %v140 = vld [vmem:[%s1 + $0x1d0] sm:$0xf]
    %v141 = vld [vmem:[%s1 + $0x1d4] sm:$0xf]
    %v142 = vld [vmem:[%s1 + $0x1d8] sm:$0xf]
    %v143 = vld [vmem:[%s1 + $0x1dc] sm:$0xf]
    %v144 = vld [vmem:[%s1 + $0x1e0] sm:$0xf]
    %v145 = vld [vmem:[%s1 + $0x1e4] sm:$0xf]
    %v146 = vld [vmem:[%s1 + $0x1e8] sm:$0xf]
    %v147 = vld [vmem:[%s1 + $0x1ec] sm:$0xf]
    %v148 = vld [vmem:[%s1 + $0x1f0] sm:$0xf]
    %v149 = vld [vmem:[%s1 + $0x1f4] sm:$0xf]
    %v150 = vld [vmem:[%s1 + $0x1f8] sm:$0xf]
    %v151 = vld [vmem:[%s1 + $0x1fc] sm:$0xf]
    %v152 = vld [vmem:[%s1 + $0x200] sm:$0xf]
    %v153 = vld [vmem:[%s1 + $0x204] sm:$0xf]
    %v154 = vld [vmem:[%s1 + $0x208] sm:$0xf]
    %v155 = vld [vmem:[%s1 + $0x20c] sm:$0xf]
    %v156 = vld [vmem:[%s1 + $0x210] sm:$0xf]
    %v157 = vld [vmem:[%s1 + $0x214] sm:$0xf]
    %v158 = vld [vmem:[%s1 + $0x218] sm:$0xf]
    %v159 = vld [vmem:[%s1 + $0x21c] sm:$0xf]
    %v160 = vld [vmem:[%s1 + $0x220] sm:$0xf]
    %v161 = vld [vmem:[%s1 + $0x224] sm:$0xf]
    %v162 = vld [vmem:[%s1 + $0x228] sm:$0xf]
    %v163 = vld [vmem:[%s1 + $0x22c] sm:$0xf]
    %v164 = vld [vmem:[%s1 + $0x230] sm:$0xf]
    %v165 = vld [vmem:[%s1 + $0x234] sm:$0xf]
    %v166 = vld [vmem:[%s1 + $0x238] sm:$0xf]
    %v167 = vld [vmem:[%s1 + $0x23c] sm:$0xf]
    %v168 = vld [vmem:[%s1 + $0x240] sm:$0xf]
    %v169 = vld [vmem:[%s1 + $0x244] sm:$0xf]
    %v170 = vld [vmem:[%s1 + $0x248] sm:$0xf]
    %v171 = vld [vmem:[%s1 + $0x24c] sm:$0xf]
    %v172 = vld [vmem:[%s1 + $0x250] sm:$0xf]
    %v173 = vld [vmem:[%s1 + $0x254] sm:$0xf]
    %v174 = vld [vmem:[%s1 + $0x258] sm:$0xf]
    %v175 = vld [vmem:[%s1 + $0x25c] sm:$0xf]
    %v176 = vld [vmem:[%s1 + $0x260] sm:$0xf]
    %v177 = vld [vmem:[%s1 + $0x264] sm:$0xf]
    %v178 = vld [vmem:[%s1 + $0x268] sm:$0xf]
    %v179 = vld [vmem:[%s1 + $0x26c] sm:$0xf]
    %v180 = vld [vmem:[%s1 + $0x270] sm:$0xf]
    %v181 = vld [vmem:[%s1 + $0x274] sm:$0xf]
    %v182 = vld [vmem:[%s1 + $0x278] sm:$0xf]
    %v183 = vld [vmem:[%s1 + $0x27c] sm:$0xf]
    %v184 = vld [vmem:[%s1 + $0x280] sm:$0xf]
    %v185 = vld [vmem:[%s1 + $0x284] sm:$0xf]
    %v186 = vld [vmem:[%s1 + $0x288] sm:$0xf]
    %v187 = vld [vmem:[%s1 + $0x28c] sm:$0xf]
    %v188 = vld [vmem:[%s1 + $0x290] sm:$0xf]
    %v189 = vld [vmem:[%s1 + $0x294] sm:$0xf]
    %v190 = vld [vmem:[%s1 + $0x298] sm:$0xf]
    %v191 = vld [vmem:[%s1 + $0x29c] sm:$0xf]
    %v192 = vld [vmem:[%s1 + $0x2a0] sm:$0xf]
    %v193 = vld [vmem:[%s1 + $0x2a4] sm:$0xf]
    %v194 = vld [vmem:[%s1 + $0x2a8] sm:$0xf]
    %v195 = vld [vmem:[%s1 + $0x2ac] sm:$0xf]
    %v196 = vld [vmem:[%s1 + $0x2b0] sm:$0xf]
    %v197 = vld [vmem:[%s1 + $0x2b4] sm:$0xf]
    %v198 = vld [vmem:[%s1 + $0x2b8] sm:$0xf]
    %v199 = vld [vmem:[%s1 + $0x2bc] sm:$0xf]
    %v200 = vld [vmem:[%s1 + $0x2c0] sm:$0xf]
    %v201 = vld [vmem:[%s1 + $0x2c4] sm:$0xf]
    %v202 = vld [vmem:[%s1 + $0x2c8] sm:$0xf]
    %v203 = vld [vmem:[%s1 + $0x2cc] sm:$0xf]
    %v204 = vld [vmem:[%s1 + $0x2d0] sm:$0xf]
    %v205 = vld [vmem:[%s1 + $0x2d4] sm:$0xf]
    %v206 = vld [vmem:[%s1 + $0x2d8] sm:$0xf]
    %v207 = vld [vmem:[%s1 + $0x2dc] sm:$0xf]
    %v208 = vld [vmem:[%s1 + $0x2e0] sm:$0xf]
    %v209 = vld [vmem:[%s1 + $0x2e4] sm:$0xf]
    %v210 = vld [vmem:[%s1 + $0x2e8] sm:$0xf]
    %v211 = vld [vmem:[%s1 + $0x2ec] sm:$0xf]
    %v212 = vld [vmem:[%s1 + $0x2f0] sm:$0xf]
    %v213 = vld [vmem:[%s1 + $0x2f4] sm:$0xf]
    %v214 = vld [vmem:[%s1 + $0x2f8] sm:$0xf]
    %v215 = vld [vmem:[%s1 + $0x2fc] sm:$0xf]
    %v216 = vld [vmem:[%s1 + $0x300] sm:$0xf]
    %v217 = vld [vmem:[%s1 + $0x304] sm:$0xf]
    %v218 = vld [vmem:[%s1 + $0x308] sm:$0xf]
    %v219 = vld [vmem:[%s1 + $0x30c] sm:$0xf]
    %v220 = vld [vmem:[%s1 + $0x310] sm:$0xf]
    %v221 = vld [vmem:[%s1 + $0x314] sm:$0xf]
    %v222 = vld [vmem:[%s1 + $0x318] sm:$0xf]
    %v223 = vld [vmem:[%s1 + $0x31c] sm:$0xf]
    %v224 = vld [vmem:[%s2] sm:$0x1]
    %v226 = vperm.slane %v224, 0
    %229 = vst [vmem:[#allocation1] ss:$9 sm:$0xff] %v22
    %v230 = vld [vmem:[#allocation1] sm:$0xff]
    %v231 = vld [vmem:[#allocation1 + $0x9] sm:$0xff]
    %v232 = vld [vmem:[#allocation1 + $0x12] sm:$0xff]
    %v233 = vld [vmem:[#allocation1 + $0x1b] sm:$0xff]
    %v234 = vld [vmem:[#allocation1 + $0x24] sm:$0xff]
    %v235 = vld [vmem:[#allocation1 + $0x2d] sm:$0xff]
    %v236 = vld [vmem:[#allocation1 + $0x36] sm:$0xff]
    %v237 = vld [vmem:[#allocation1 + $0x3f] sm:$0xff]
    %239 = vst [vmem:[#allocation1] ss:$9 sm:$0xff] %v23
    %v240 = vld [vmem:[#allocation1] sm:$0xff]
    %v241 = vld [vmem:[#allocation1 + $0x9] sm:$0xff]
    %v242 = vld [vmem:[#allocation1 + $0x12] sm:$0xff]
    %v243 = vld [vmem:[#allocation1 + $0x1b] sm:$0xff]
    %v244 = vld [vmem:[#allocation1 + $0x24] sm:$0xff]
    %v457 = vunpack.c.l.b16 %v24
    %v458 = vunpack.c.l.b16 %v25
    %v459 = vunpack.c.l.b16 %v26
    %v460 = vunpack.c.l.b16 %v27
    %v461 = vunpack.c.l.b16 %v28
    %v462 = vunpack.c.l.b16 %v29
    %v463 = vunpack.c.l.b16 %v30
    %v464 = vunpack.c.l.b16 %v31
    %v465 = vunpack.c.l.b16 %v32
    %v466 = vunpack.c.l.b16 %v33
    %v467 = vunpack.c.l.b16 %v34
    %v468 = vunpack.c.l.b16 %v35
    %v469 = vunpack.c.l.b16 %v36
    %v470 = vunpack.c.l.b16 %v37
    %v471 = vunpack.c.l.b16 %v38
    %v472 = vunpack.c.l.b16 %v39
    %v473 = vunpack.c.l.b16 %v40
    %v474 = vunpack.c.l.b16 %v41
    %v475 = vunpack.c.l.b16 %v42
    %v476 = vunpack.c.l.b16 %v43
    %v477 = vunpack.c.l.b16 %v44
    %v478 = vunpack.c.l.b16 %v45
    %v479 = vunpack.c.l.b16 %v46
    %v480 = vunpack.c.l.b16 %v47
    %v481 = vunpack.c.l.b16 %v48
    %v482 = vunpack.c.l.b16 %v49
    %v483 = vunpack.c.l.b16 %v50
    %v484 = vunpack.c.l.b16 %v51
    %v485 = vunpack.c.l.b16 %v52
    %v486 = vunpack.c.l.b16 %v53
    %v487 = vunpack.c.l.b16 %v54
    %v488 = vunpack.c.l.b16 %v55
    %v489 = vunpack.c.l.b16 %v56
    %v490 = vunpack.c.l.b16 %v57
    %v491 = vunpack.c.l.b16 %v58
    %v492 = vunpack.c.l.b16 %v59
    %v493 = vunpack.c.l.b16 %v60
    %v494 = vunpack.c.l.b16 %v61
    %v495 = vunpack.c.l.b16 %v62
    %v496 = vunpack.c.l.b16 %v63
    %v497 = vunpack.c.l.b16 %v64
    %v498 = vunpack.c.l.b16 %v65
    %v499 = vunpack.c.l.b16 %v66
    %v500 = vunpack.c.l.b16 %v67
    %v501 = vunpack.c.l.b16 %v68
    %v502 = vunpack.c.l.b16 %v69
    %v503 = vunpack.c.l.b16 %v70
    %v504 = vunpack.c.l.b16 %v71
    %v505 = vunpack.c.l.b16 %v72
    %v506 = vunpack.c.l.b16 %v73
    %v507 = vunpack.c.l.b16 %v74
    %v508 = vunpack.c.l.b16 %v75
    %v509 = vunpack.c.l.b16 %v76
    %v510 = vunpack.c.l.b16 %v77
    %v511 = vunpack.c.l.b16 %v78
    %v512 = vunpack.c.l.b16 %v79
    %v513 = vunpack.c.l.b16 %v80
    %v514 = vunpack.c.l.b16 %v81
    %v515 = vunpack.c.l.b16 %v82
    %v516 = vunpack.c.l.b16 %v83
    %v517 = vunpack.c.l.b16 %v84
    %v518 = vunpack.c.l.b16 %v85
    %v519 = vunpack.c.l.b16 %v86
    %v520 = vunpack.c.l.b16 %v87
    %v521 = vunpack.c.l.b16 %v88
    %v522 = vunpack.c.l.b16 %v89
    %v523 = vunpack.c.l.b16 %v90
    %v524 = vunpack.c.l.b16 %v91
    %v525 = vunpack.c.l.b16 %v92
    %v526 = vunpack.c.l.b16 %v93
    %v527 = vunpack.c.l.b16 %v94
    %v528 = vunpack.c.l.b16 %v95
    %v529 = vunpack.c.l.b16 %v96
    %v530 = vunpack.c.l.b16 %v97
    %v531 = vunpack.c.l.b16 %v98
    %v532 = vunpack.c.l.b16 %v99
    %v533 = vunpack.c.l.b16 %v100
    %v534 = vunpack.c.l.b16 %v101
    %v535 = vunpack.c.l.b16 %v102
    %v536 = vunpack.c.l.b16 %v103
    %v537 = vunpack.c.l.b16 %v104
    %v538 = vunpack.c.l.b16 %v105
    %v539 = vunpack.c.l.b16 %v106
    %v540 = vunpack.c.l.b16 %v107
    %v541 = vunpack.c.l.b16 %v108
    %v542 = vunpack.c.l.b16 %v109
    %v543 = vunpack.c.l.b16 %v110
    %v544 = vunpack.c.l.b16 %v111
    %v545 = vunpack.c.l.b16 %v112
    %v546 = vunpack.c.l.b16 %v113
    %v547 = vunpack.c.l.b16 %v114
    %v548 = vunpack.c.l.b16 %v115
    %v549 = vunpack.c.l.b16 %v116
    %v550 = vunpack.c.l.b16 %v117
    %v551 = vunpack.c.l.b16 %v118
    %v552 = vunpack.c.l.b16 %v119
    %v553 = vunpack.c.l.b16 %v120
    %v554 = vunpack.c.l.b16 %v121
    %v555 = vunpack.c.l.b16 %v122
    %v556 = vunpack.c.l.b16 %v123
    %v557 = vunpack.c.l.b16 %v124
    %v558 = vunpack.c.l.b16 %v125
    %v559 = vunpack.c.l.b16 %v126
    %v560 = vunpack.c.l.b16 %v127
    %v561 = vunpack.c.l.b16 %v128
    %v562 = vunpack.c.l.b16 %v129
    %v563 = vunpack.c.l.b16 %v130
    %v564 = vunpack.c.l.b16 %v131
    %v565 = vunpack.c.l.b16 %v132
    %v566 = vunpack.c.l.b16 %v133
    %v567 = vunpack.c.l.b16 %v134
    %v568 = vunpack.c.l.b16 %v135
    %v569 = vunpack.c.l.b16 %v136
    %v570 = vunpack.c.l.b16 %v137
    %v571 = vunpack.c.l.b16 %v138
    %v572 = vunpack.c.l.b16 %v139
    %v573 = vunpack.c.l.b16 %v140
    %v574 = vunpack.c.l.b16 %v141
    %v575 = vunpack.c.l.b16 %v142
    %v576 = vunpack.c.l.b16 %v143
    %v577 = vunpack.c.l.b16 %v144
    %v578 = vunpack.c.l.b16 %v145
    %v579 = vunpack.c.l.b16 %v146
    %v580 = vunpack.c.l.b16 %v147
    %v581 = vunpack.c.l.b16 %v148
    %v582 = vunpack.c.l.b16 %v149
    %v583 = vunpack.c.l.b16 %v150
    %v584 = vunpack.c.l.b16 %v151
    %v585 = vunpack.c.l.b16 %v152
    %v586 = vunpack.c.l.b16 %v153
    %v587 = vunpack.c.l.b16 %v154
    %v588 = vunpack.c.l.b16 %v155
    %v589 = vunpack.c.l.b16 %v156
    %v590 = vunpack.c.l.b16 %v157
    %v591 = vunpack.c.l.b16 %v158
    %v592 = vunpack.c.l.b16 %v159
    %v593 = vunpack.c.l.b16 %v160
    %v594 = vunpack.c.l.b16 %v161
    %v595 = vunpack.c.l.b16 %v162
    %v596 = vunpack.c.l.b16 %v163
    %v597 = vunpack.c.l.b16 %v164
    %v598 = vunpack.c.l.b16 %v165
    %v599 = vunpack.c.l.b16 %v166
    %v600 = vunpack.c.l.b16 %v167
    %v601 = vunpack.c.l.b16 %v168
    %v602 = vunpack.c.l.b16 %v169
    %v603 = vunpack.c.l.b16 %v170
    %v604 = vunpack.c.l.b16 %v171
    %v605 = vunpack.c.l.b16 %v172
    %v606 = vunpack.c.l.b16 %v173
    %v607 = vunpack.c.l.b16 %v174
    %v608 = vunpack.c.l.b16 %v175
    %v609 = vunpack.c.l.b16 %v176
    %v610 = vunpack.c.l.b16 %v177
    %v611 = vunpack.c.l.b16 %v178
    %v612 = vunpack.c.l.b16 %v179
    %v613 = vunpack.c.l.b16 %v180
    %v614 = vunpack.c.l.b16 %v181
    %v615 = vunpack.c.l.b16 %v182
    %v616 = vunpack.c.l.b16 %v183
    %v617 = vunpack.c.l.b16 %v184
    %v618 = vunpack.c.l.b16 %v185
    %v619 = vunpack.c.l.b16 %v186
    %v620 = vunpack.c.l.b16 %v187
    %v621 = vunpack.c.l.b16 %v188
    %v622 = vunpack.c.l.b16 %v189
    %v623 = vunpack.c.l.b16 %v190
    %v624 = vunpack.c.l.b16 %v191
    %v625 = vunpack.c.l.b16 %v192
    %v626 = vunpack.c.l.b16 %v193
    %v627 = vunpack.c.l.b16 %v194
    %v628 = vunpack.c.l.b16 %v195
    %v629 = vunpack.c.l.b16 %v196
    %v630 = vunpack.c.l.b16 %v197
    %v631 = vunpack.c.l.b16 %v198
    %v632 = vunpack.c.l.b16 %v199
    %v633 = vunpack.c.l.b16 %v200
    %v634 = vunpack.c.l.b16 %v201
    %v635 = vunpack.c.l.b16 %v202
    %v636 = vunpack.c.l.b16 %v203
    %v637 = vunpack.c.l.b16 %v204
    %v638 = vunpack.c.l.b16 %v205
    %v639 = vunpack.c.l.b16 %v206
    %v640 = vunpack.c.l.b16 %v207
    %v641 = vunpack.c.l.b16 %v208
    %v642 = vunpack.c.l.b16 %v209
    %v643 = vunpack.c.l.b16 %v210
    %v644 = vunpack.c.l.b16 %v211
    %v645 = vunpack.c.l.b16 %v212
    %v646 = vunpack.c.l.b16 %v213
    %v647 = vunpack.c.l.b16 %v214
    %v648 = vunpack.c.l.b16 %v215
    %v649 = vunpack.c.l.b16 %v216
    %v650 = vunpack.c.l.b16 %v217
    %v651 = vunpack.c.l.b16 %v218
    %v652 = vunpack.c.l.b16 %v219
    %v653 = vunpack.c.l.b16 %v220
    %v654 = vunpack.c.l.b16 %v221
    %v655 = vunpack.c.l.b16 %v222
    %v656 = vunpack.c.l.b16 %v223
    %v657 = vpack.c.b16 %v458, %v457
    %v658 = vpack.c.b16 %v460, %v459
    %v659 = vpack.c.b16 %v462, %v461
    %v660 = vpack.c.b16 %v464, %v463
    %v661 = vpack.c.b16 %v466, %v465
    %v662 = vpack.c.b16 %v468, %v467
    %v663 = vpack.c.b16 %v470, %v469
    %v664 = vpack.c.b16 %v472, %v471
    %v665 = vpack.c.b16 %v474, %v473
    %v666 = vpack.c.b16 %v476, %v475
    %v667 = vpack.c.b16 %v478, %v477
    %v668 = vpack.c.b16 %v480, %v479
    %v669 = vpack.c.b16 %v482, %v481
    %v670 = vpack.c.b16 %v484, %v483
    %v671 = vpack.c.b16 %v486, %v485
    %v672 = vpack.c.b16 %v488, %v487
    %v673 = vpack.c.b16 %v490, %v489
    %v674 = vpack.c.b16 %v492, %v491
    %v675 = vpack.c.b16 %v494, %v493
    %v676 = vpack.c.b16 %v496, %v495
    %v677 = vpack.c.b16 %v498, %v497
    %v678 = vpack.c.b16 %v500, %v499
    %v679 = vpack.c.b16 %v502, %v501
    %v680 = vpack.c.b16 %v504, %v503
    %v681 = vpack.c.b16 %v506, %v505
    %v682 = vpack.c.b16 %v508, %v507
    %v683 = vpack.c.b16 %v510, %v509
    %v684 = vpack.c.b16 %v512, %v511
    %v685 = vpack.c.b16 %v514, %v513
    %v686 = vpack.c.b16 %v516, %v515
    %v687 = vpack.c.b16 %v518, %v517
    %v688 = vpack.c.b16 %v520, %v519
    %v689 = vpack.c.b16 %v522, %v521
    %v690 = vpack.c.b16 %v524, %v523
    %v691 = vpack.c.b16 %v526, %v525
    %v692 = vpack.c.b16 %v528, %v527
    %v693 = vpack.c.b16 %v530, %v529
    %v694 = vpack.c.b16 %v532, %v531
    %v695 = vpack.c.b16 %v534, %v533
    %v696 = vpack.c.b16 %v536, %v535
    %v697 = vpack.c.b16 %v538, %v537
    %v698 = vpack.c.b16 %v540, %v539
    %v699 = vpack.c.b16 %v542, %v541
    %v700 = vpack.c.b16 %v544, %v543
    %v701 = vpack.c.b16 %v546, %v545
    %v702 = vpack.c.b16 %v548, %v547
    %v703 = vpack.c.b16 %v550, %v549
    %v704 = vpack.c.b16 %v552, %v551
    %v705 = vpack.c.b16 %v554, %v553
    %v706 = vpack.c.b16 %v556, %v555
    %v707 = vpack.c.b16 %v558, %v557
    %v708 = vpack.c.b16 %v560, %v559
    %v709 = vpack.c.b16 %v562, %v561
    %v710 = vpack.c.b16 %v564, %v563
    %v711 = vpack.c.b16 %v566, %v565
    %v712 = vpack.c.b16 %v568, %v567
    %v713 = vpack.c.b16 %v570, %v569
    %v714 = vpack.c.b16 %v572, %v571
    %v715 = vpack.c.b16 %v574, %v573
    %v716 = vpack.c.b16 %v576, %v575
    %v717 = vpack.c.b16 %v578, %v577
    %v718 = vpack.c.b16 %v580, %v579
    %v719 = vpack.c.b16 %v582, %v581
    %v720 = vpack.c.b16 %v584, %v583
    %v721 = vpack.c.b16 %v586, %v585
    %v722 = vpack.c.b16 %v588, %v587
    %v723 = vpack.c.b16 %v590, %v589
    %v724 = vpack.c.b16 %v592, %v591
    %v725 = vpack.c.b16 %v594, %v593
    %v726 = vpack.c.b16 %v596, %v595
    %v727 = vpack.c.b16 %v598, %v597
    %v728 = vpack.c.b16 %v600, %v599
    %v729 = vpack.c.b16 %v602, %v601
    %v730 = vpack.c.b16 %v604, %v603
    %v731 = vpack.c.b16 %v606, %v605
    %v732 = vpack.c.b16 %v608, %v607
    %v733 = vpack.c.b16 %v610, %v609
    %v734 = vpack.c.b16 %v612, %v611
    %v735 = vpack.c.b16 %v614, %v613
    %v736 = vpack.c.b16 %v616, %v615
    %v737 = vpack.c.b16 %v618, %v617
    %v738 = vpack.c.b16 %v620, %v619
    %v739 = vpack.c.b16 %v622, %v621
    %v740 = vpack.c.b16 %v624, %v623
    %v741 = vpack.c.b16 %v626, %v625
    %v742 = vpack.c.b16 %v628, %v627
    %v743 = vpack.c.b16 %v630, %v629
    %v744 = vpack.c.b16 %v632, %v631
    %v745 = vpack.c.b16 %v634, %v633
    %v746 = vpack.c.b16 %v636, %v635
    %v747 = vpack.c.b16 %v638, %v637
    %v748 = vpack.c.b16 %v640, %v639
    %v749 = vpack.c.b16 %v642, %v641
    %v750 = vpack.c.b16 %v644, %v643
    %v751 = vpack.c.b16 %v646, %v645
    %v752 = vpack.c.b16 %v648, %v647
    %v753 = vpack.c.b16 %v650, %v649
    %v754 = vpack.c.b16 %v652, %v651
    %v755 = vpack.c.b16 %v654, %v653
    %v756 = vpack.c.b16 %v656, %v655
    %vm857 = vcmask 523264
    %v858 = vsel %vm857, %v244, 0
    %860 = vmatpush.bf16.msra.mxu0 %v664
    %861 = vmatpush.bf16.msra.mxu0 %v663
    %862 = vmatpush.bf16.msra.mxu0 %v662
    %863 = vmatpush.bf16.msra.mxu0 %v661
    %864 = vmatpush.bf16.msra.mxu0 %v660
    %865 = vmatpush.bf16.msra.mxu0 %v659
    %866 = vmatpush.bf16.msra.mxu0 %v658
    %867 = vmatpush.bf16.msra.mxu0 %v657
    %868 = vmatmul.bf16.gmra.mxu0 %v230
    %v869 = vpop.f32.mrf.mxu0
    %v870 = vadd.f32 %v226, %v869
    %v871 = vpop.f32.mrf.mxu0
    %872 = vdwg.mxu0
    %873 = vmatpush.bf16.msra.mxu0 %v672
    %874 = vmatpush.bf16.msra.mxu0 %v671
    %875 = vmatpush.bf16.msra.mxu0 %v670
    %876 = vmatpush.bf16.msra.mxu0 %v669
    %877 = vmatpush.bf16.msra.mxu0 %v668
    %878 = vmatpush.bf16.msra.mxu0 %v667
    %879 = vmatpush.bf16.msra.mxu0 %v666
    %880 = vmatpush.bf16.msra.mxu0 %v665
    %881 = vmatmul.bf16.gmra.mxu0 %v231
    %v882 = vpop.f32.mrf.mxu0
    %v883 = vadd.f32 %v870, %v882
    %v884 = vpop.f32.mrf.mxu0
    %885 = vdwg.mxu0
    %886 = vmatpush.bf16.msra.mxu0 %v680
    %887 = vmatpush.bf16.msra.mxu0 %v679
    %888 = vmatpush.bf16.msra.mxu0 %v678
    %889 = vmatpush.bf16.msra.mxu0 %v677
    %890 = vmatpush.bf16.msra.mxu0 %v676
    %891 = vmatpush.bf16.msra.mxu0 %v675
    %892 = vmatpush.bf16.msra.mxu0 %v674
    %893 = vmatpush.bf16.msra.mxu0 %v673
    %894 = vmatmul.bf16.gmra.mxu0 %v232
    %v895 = vpop.f32.mrf.mxu0
    %v896 = vadd.f32 %v883, %v895
    %v897 = vpop.f32.mrf.mxu0
    %898 = vdwg.mxu0
    %899 = vmatpush.bf16.msra.mxu0 %v688
    %900 = vmatpush.bf16.msra.mxu0 %v687
    %901 = vmatpush.bf16.msra.mxu0 %v686
    %902 = vmatpush.bf16.msra.mxu0 %v685
    %903 = vmatpush.bf16.msra.mxu0 %v684
    %904 = vmatpush.bf16.msra.mxu0 %v683
    %905 = vmatpush.bf16.msra.mxu0 %v682
    %906 = vmatpush.bf16.msra.mxu0 %v681
    %907 = vmatmul.bf16.gmra.mxu0 %v233
    %v908 = vpop.f32.mrf.mxu0
    %v909 = vadd.f32 %v896, %v908
    %v910 = vpop.f32.mrf.mxu0
    %911 = vdwg.mxu0
    %912 = vmatpush.bf16.msra.mxu0 %v696
    %913 = vmatpush.bf16.msra.mxu0 %v695
    %914 = vmatpush.bf16.msra.mxu0 %v694
    %915 = vmatpush.bf16.msra.mxu0 %v693
    %916 = vmatpush.bf16.msra.mxu0 %v692
    %917 = vmatpush.bf16.msra.mxu0 %v691
    %918 = vmatpush.bf16.msra.mxu0 %v690
    %919 = vmatpush.bf16.msra.mxu0 %v689
    %920 = vmatmul.bf16.gmra.mxu0 %v234
    %v921 = vpop.f32.mrf.mxu0
    %v922 = vadd.f32 %v909, %v921
    %v923 = vpop.f32.mrf.mxu0
    %924 = vdwg.mxu0
    %925 = vmatpush.bf16.msra.mxu0 %v704
    %926 = vmatpush.bf16.msra.mxu0 %v703
    %927 = vmatpush.bf16.msra.mxu0 %v702
    %928 = vmatpush.bf16.msra.mxu0 %v701
    %929 = vmatpush.bf16.msra.mxu0 %v700
    %930 = vmatpush.bf16.msra.mxu0 %v699
    %931 = vmatpush.bf16.msra.mxu0 %v698
    %932 = vmatpush.bf16.msra.mxu0 %v697
    %933 = vmatmul.bf16.gmra.mxu0 %v235
    %v934 = vpop.f32.mrf.mxu0
    %v935 = vadd.f32 %v922, %v934
    %v936 = vpop.f32.mrf.mxu0
    %937 = vdwg.mxu0
    %938 = vmatpush.bf16.msra.mxu0 %v712
    %939 = vmatpush.bf16.msra.mxu0 %v711
    %940 = vmatpush.bf16.msra.mxu0 %v710
    %941 = vmatpush.bf16.msra.mxu0 %v709
    %942 = vmatpush.bf16.msra.mxu0 %v708
    %943 = vmatpush.bf16.msra.mxu0 %v707
    %944 = vmatpush.bf16.msra.mxu0 %v706
    %945 = vmatpush.bf16.msra.mxu0 %v705
    %946 = vmatmul.bf16.gmra.mxu0 %v236
    %v947 = vpop.f32.mrf.mxu0
    %v948 = vadd.f32 %v935, %v947
    %v949 = vpop.f32.mrf.mxu0
    %950 = vdwg.mxu0
    %951 = vmatpush.bf16.msra.mxu0 %v720
    %952 = vmatpush.bf16.msra.mxu0 %v719
    %953 = vmatpush.bf16.msra.mxu0 %v718
    %954 = vmatpush.bf16.msra.mxu0 %v717
    %955 = vmatpush.bf16.msra.mxu0 %v716
    %956 = vmatpush.bf16.msra.mxu0 %v715
    %957 = vmatpush.bf16.msra.mxu0 %v714
    %958 = vmatpush.bf16.msra.mxu0 %v713
    %959 = vmatmul.bf16.gmra.mxu0 %v237
    %v960 = vpop.f32.mrf.mxu0
    %v961 = vadd.f32 %v948, %v960
    %v962 = vpop.f32.mrf.mxu0
    %963 = vdwg.mxu0
    %964 = vmatpush.bf16.msra.mxu0 %v728
    %965 = vmatpush.bf16.msra.mxu0 %v727
    %966 = vmatpush.bf16.msra.mxu0 %v726
    %967 = vmatpush.bf16.msra.mxu0 %v725
    %968 = vmatpush.bf16.msra.mxu0 %v724
    %969 = vmatpush.bf16.msra.mxu0 %v723
    %970 = vmatpush.bf16.msra.mxu0 %v722
    %971 = vmatpush.bf16.msra.mxu0 %v721
    %972 = vmatmul.bf16.gmra.mxu0 %v240
    %v973 = vpop.f32.mrf.mxu0
    %v974 = vadd.f32 %v961, %v973
    %v975 = vpop.f32.mrf.mxu0
    %976 = vdwg.mxu0
    %977 = vmatpush.bf16.msra.mxu0 %v736
    %978 = vmatpush.bf16.msra.mxu0 %v735
    %979 = vmatpush.bf16.msra.mxu0 %v734
    %980 = vmatpush.bf16.msra.mxu0 %v733
    %981 = vmatpush.bf16.msra.mxu0 %v732
    %982 = vmatpush.bf16.msra.mxu0 %v731
    %983 = vmatpush.bf16.msra.mxu0 %v730
    %984 = vmatpush.bf16.msra.mxu0 %v729
    %985 = vmatmul.bf16.gmra.mxu0 %v241
    %v986 = vpop.f32.mrf.mxu0
    %v987 = vadd.f32 %v974, %v986
    %v988 = vpop.f32.mrf.mxu0
    %989 = vdwg.mxu0
    %990 = vmatpush.bf16.msra.mxu0 %v744
    %991 = vmatpush.bf16.msra.mxu0 %v743
    %992 = vmatpush.bf16.msra.mxu0 %v742
    %993 = vmatpush.bf16.msra.mxu0 %v741
    %994 = vmatpush.bf16.msra.mxu0 %v740
    %995 = vmatpush.bf16.msra.mxu0 %v739
    %996 = vmatpush.bf16.msra.mxu0 %v738
    %997 = vmatpush.bf16.msra.mxu0 %v737
    %998 = vmatmul.bf16.gmra.mxu0 %v242
    %v999 = vpop.f32.mrf.mxu0
    %v1000 = vadd.f32 %v987, %v999
    %v1001 = vpop.f32.mrf.mxu0
    %1002 = vdwg.mxu0
    %1003 = vmatpush.bf16.msra.mxu0 %v752
    %1004 = vmatpush.bf16.msra.mxu0 %v751
    %1005 = vmatpush.bf16.msra.mxu0 %v750
    %1006 = vmatpush.bf16.msra.mxu0 %v749
    %1007 = vmatpush.bf16.msra.mxu0 %v748
    %1008 = vmatpush.bf16.msra.mxu0 %v747
    %1009 = vmatpush.bf16.msra.mxu0 %v746
    %1010 = vmatpush.bf16.msra.mxu0 %v745
    %1011 = vmatmul.bf16.gmra.mxu0 %v243
    %v1012 = vpop.f32.mrf.mxu0
    %v1013 = vadd.f32 %v1000, %v1012
    %v1014 = vpop.f32.mrf.mxu0
    %1015 = vdwg.mxu0
    %1016 = vmatpush.bf16.msra.mxu0 0
    %1017 = vmatpush.bf16.msra.mxu0 0
    %1018 = vmatpush.bf16.msra.mxu0 0
    %1019 = vmatpush.bf16.msra.mxu0 0
    %1020 = vmatpush.bf16.msra.mxu0 %v756
    %1021 = vmatpush.bf16.msra.mxu0 %v755
    %1022 = vmatpush.bf16.msra.mxu0 %v754
    %1023 = vmatpush.bf16.msra.mxu0 %v753
    %1024 = vmatmul.bf16.gmra.mxu0 %v858
    %v1025 = vpop.f32.mrf.mxu0
    %v1026 = vadd.f32 %v1013, %v1025
    %v1027 = vpop.f32.mrf.mxu0
    %1028 = vdwg.mxu0
    %v1029 = vmax.f32 %v1026, 0.0
    %v1030 = vpack.c.bf16 %v1029, %v1029
    %v1031 = vld [vmem:[%s3] sm:$0xf]
    %v1032 = vld [vmem:[%s3 + $0x4] sm:$0xf]
    %v1033 = vld [vmem:[%s3 + $0x8] sm:$0xf]
    %v1034 = vld [vmem:[%s3 + $0xc] sm:$0xf]
    %v1035 = vld [vmem:[%s3 + $0x10] sm:$0xf]
    %v1036 = vld [vmem:[%s3 + $0x14] sm:$0xf]
    %v1037 = vld [vmem:[%s3 + $0x18] sm:$0xf]
    %v1038 = vld [vmem:[%s3 + $0x1c] sm:$0xf]
    %v1039 = vld [vmem:[%s3 + $0x20] sm:$0xf]
    %v1040 = vld [vmem:[%s3 + $0x24] sm:$0xf]
    %v1041 = vld [vmem:[%s3 + $0x28] sm:$0xf]
    %v1042 = vld [vmem:[%s3 + $0x2c] sm:$0xf]
    %v1043 = vld [vmem:[%s3 + $0x30] sm:$0xf]
    %v1044 = vld [vmem:[%s3 + $0x34] sm:$0xf]
    %v1045 = vld [vmem:[%s3 + $0x38] sm:$0xf]
    %v1046 = vld [vmem:[%s3 + $0x3c] sm:$0xf]
    %v1047 = vld [vmem:[%s4] sm:$0x1]
    %v1049 = vperm.slane %v1047, 0
    %v1067 = vunpack.c.l.b16 %v1031
    %v1068 = vunpack.c.l.b16 %v1032
    %v1069 = vunpack.c.l.b16 %v1033
    %v1070 = vunpack.c.l.b16 %v1034
    %v1071 = vunpack.c.l.b16 %v1035
    %v1072 = vunpack.c.l.b16 %v1036
    %v1073 = vunpack.c.l.b16 %v1037
    %v1074 = vunpack.c.l.b16 %v1038
    %v1075 = vunpack.c.l.b16 %v1039
    %v1076 = vunpack.c.l.b16 %v1040
    %v1077 = vunpack.c.l.b16 %v1041
    %v1078 = vunpack.c.l.b16 %v1042
    %v1079 = vunpack.c.l.b16 %v1043
    %v1080 = vunpack.c.l.b16 %v1044
    %v1081 = vunpack.c.l.b16 %v1045
    %v1082 = vunpack.c.l.b16 %v1046
    %v1083 = vpack.c.b16 %v1068, %v1067
    %v1084 = vpack.c.b16 %v1070, %v1069
    %v1085 = vpack.c.b16 %v1072, %v1071
    %v1086 = vpack.c.b16 %v1074, %v1073
    %v1087 = vpack.c.b16 %v1076, %v1075
    %v1088 = vpack.c.b16 %v1078, %v1077
    %v1089 = vpack.c.b16 %v1080, %v1079
    %v1090 = vpack.c.b16 %v1082, %v1081
    %1099 = vmatpush.bf16.msra.mxu0 %v1090
    %1100 = vmatpush.bf16.msra.mxu0 %v1089
    %1101 = vmatpush.bf16.msra.mxu0 %v1088
    %1102 = vmatpush.bf16.msra.mxu0 %v1087
    %1103 = vmatpush.bf16.msra.mxu0 %v1086
    %1104 = vmatpush.bf16.msra.mxu0 %v1085
    %1105 = vmatpush.bf16.msra.mxu0 %v1084
    %1106 = vmatpush.bf16.msra.mxu0 %v1083
    %1107 = vmatmul.bf16.gmra.mxu0 %v1030
    %v1108 = vpop.f32.mrf.mxu0
    %v1109 = vadd.f32 %v1049, %v1108
    %v1110 = vpop.f32.mrf.mxu0
    %1111 = vdwg.mxu0
    %vm1112 = vcmask 1041408
    %v1113 = vsel %vm1112, %v1109, -inf
    %1114 = vmax.xlane.f32.xlu0 %v1113
    %v1115 = vpop.xlane.xlu0 %1114
    %v1116 = vsub.f32 %v1109, %v1115
    %v1117 = vmul.f32 %v1116, 1.442695
    %v1118 = vpow.pop %v1117
    %v1119 = vsel %vm1112, %v1118, 0.0
    %1120 = vadd.xlane.f32.xlu0 %v1119
    %v1121 = vpop.xlane.xlu0 %1120
    %v1122 = vlog2.pop %v1121
    %v1123 = vmul.f32 %v1122, 0.6931472
    %v1124 = vsub.f32 %v1116, %v1123
    %1125 = vst [vmem:[#allocation2] sm:$0x3] %v1124
    // Predicated region
    $region22: #{letter_cnn_forward.5} parent=1 // pred_check
      _
    $region23: #{letter_cnn_forward.5} parent=1 // pred_check_branch
      %1127 = sbr.rel (0) target = $region25
    $region24: #{letter_cnn_forward.5} parent=1 // pred_region
      %1129 = vsyncadd [#allocation3], 0
      %s1131 = sshll.u32 [#allocation2], 4
      %s1132 = int_to_ptr.vmem [resolvable:$true] %s1131
      %s1133 = sshll.u32 %s5, 4
      %s1134 = int_to_ptr.hbm [resolvable:$true] %s1133
      %1136 = dma.vmem_to_hbm [thread:$0]  %s1132, 32, %s1134, [#allocation3]
    $region25: #{letter_cnn_forward.5} parent=1 // pred_fallthru
      _
    // Predicated region
    $region26: #{letter_cnn_forward.5} parent=1 // pred_check
      _
    $region27: #{letter_cnn_forward.5} parent=1 // pred_check_branch
      %1138 = sbr.rel (0) target = $region29
    $region28: #{letter_cnn_forward.5} parent=1 // pred_region
      %1140 = dma.done [#allocation3], 32
    $region29: #{letter_cnn_forward.5} parent=1 // pred_fallthru
      _
    %1141 = vsyncpa [#allocation3], 1

// kernel: letter_cnn_forward.4
$region0: #{letter_cnn_forward.4}
  #allocation0 [shape = 'u32[]', space=smem, size = 0x4, offset = 0x4, fixed_abs, tag = 'smem constant byte address 0x4 - core index']
  #allocation1 [shape = 'u32[72,128]{1,0:T(1,128)}', space=vmem, size = 0x9000, scoped, tag = 'internal scratch']
  %s0 = inlined_call_operand.vmem [shape: bf16[2,32,171], index: 0, kind: input, shape index: {}]
  %s1 = inlined_call_operand.vmem [shape: bf16[9,64,32], index: 1, kind: input, shape index: {}]
  %s2 = inlined_call_operand.vmem [shape: f32[64,1], index: 2, kind: input, shape index: {}]
  %s3 = inlined_call_operand.vmem [shape: bf16[129,25], index: 3, kind: input, shape index: {}]
  %s4 = inlined_call_operand.vmem [shape: bf16[2,64,25], index: 4, kind: output, shape index: {}]
  %s5 = sld [smem:[#allocation0]]
  $region49: #{letter_cnn_forward.4} parent=0
    _
  %s7 = ssub.s32 1, %s5
  %s8 = scalar_select 0, %s7, %s5
  loop: start=0, step=1, limit=4
  $region2: #{letter_cnn_forward.4} parent=0 // loop_pre_header
    _
  $region3: #{letter_cnn_forward.4} parent=0 // loop_header
    %s10 = sphi 0, %s14
    %p11 = scmp.ge.s32.totalorder %s10, 4
    %s20 = sphi 0, %s22
    %s23 = sphi 0, %s20
    %s24 = sphi 0, %s23
    %s40 = sphi 0, %s24
    %s44 = sphi 0, %s44
    %s46 = sphi 0, %s44
    %s47 = sphi 0, %s46
    %s61 = sphi 0, %s47
    %s65 = sphi 0, %s65
    %s67 = sphi 0, %s65
    %s68 = sphi 0, %s67
    %s82 = sphi 0, %s68
    %s86 = sphi 0, %s86
    %s88 = sphi 0, %s86
    %s89 = sphi 0, %s88
    %s103 = sphi 0, %s89
    %s109 = sphi 0, %s111
    %s112 = sphi 0, %s109
    %s113 = sphi 0, %s112
    %s129 = sphi 0, %s113
  $region4: #{letter_cnn_forward.4} parent=0 // loop_header_branch
    %13 = sbr.rel (%p11) target = $region8
  $region5: #{letter_cnn_forward.4} parent=0 // loop_body
    %s15 = ssub.s32 %s10, 1
    %s16 = ssub.s32 %s10, 2
    %s17 = sadd.s32 %s10, 1
    %s18 = ssub.s32 %s10, %s17
    %p19 = scmp.eq.s32.totalorder %s18, 0
    %s21 = sadd.s32 %s20, 1
    %s22 = scalar_select %p19, %s20, %s21
    %p25 = pneg %p19
    %p26 = scmp.eq.s32.totalorder %s10, 1
    %p27 = por %p25, %p26
    %p28 = scmp.ne.s32.totalorder %s20, %s23
    %p29 = scmp.eq.s32.totalorder %s10, 0
    %p30 = por %p28, %p29
    %p31 = scmp.ne.s32.totalorder %s20, %s23
    %p32 = scmp.eq.s32.totalorder %s15, 1
    %p33 = por %p31, %p32
    %p34 = scmp.ne.s32.totalorder %s23, %s24
    %p35 = scmp.eq.s32.totalorder %s15, 0
    %p36 = por %p34, %p35
    %p37 = scmp.ne.s32.totalorder %s23, %s24
    %p38 = scmp.eq.s32.totalorder %s16, 1
    %p39 = por %p37, %p38
    %p41 = scmp.ne.s32.totalorder %s24, %s40
    %p42 = scmp.eq.s32.totalorder %s16, 0
    %p43 = por %p41, %p42
    %s45 = sadd.s32 %s44, 1
    %p48 = scmp.eq.s32.totalorder %s10, 1
    %p49 = scmp.ne.s32.totalorder %s44, %s46
    %p50 = scmp.eq.s32.totalorder %s10, 0
    %p51 = por %p49, %p50
    %p52 = scmp.ne.s32.totalorder %s44, %s46
    %p53 = scmp.eq.s32.totalorder %s15, 1
    %p54 = por %p52, %p53
    %p55 = scmp.ne.s32.totalorder %s46, %s47
    %p56 = scmp.eq.s32.totalorder %s15, 0
    %p57 = por %p55, %p56
    %p58 = scmp.ne.s32.totalorder %s46, %s47
    %p59 = scmp.eq.s32.totalorder %s16, 1
    %p60 = por %p58, %p59
    %p62 = scmp.ne.s32.totalorder %s47, %s61
    %p63 = scmp.eq.s32.totalorder %s16, 0
    %p64 = por %p62, %p63
    %s66 = sadd.s32 %s65, 1
    %p69 = scmp.eq.s32.totalorder %s10, 1
    %p70 = scmp.ne.s32.totalorder %s65, %s67
    %p71 = scmp.eq.s32.totalorder %s10, 0
    %p72 = por %p70, %p71
    %p73 = scmp.ne.s32.totalorder %s65, %s67
    %p74 = scmp.eq.s32.totalorder %s15, 1
    %p75 = por %p73, %p74
    %p76 = scmp.ne.s32.totalorder %s67, %s68
    %p77 = scmp.eq.s32.totalorder %s15, 0
    %p78 = por %p76, %p77
    %p79 = scmp.ne.s32.totalorder %s67, %s68
    %p80 = scmp.eq.s32.totalorder %s16, 1
    %p81 = por %p79, %p80
    %p83 = scmp.ne.s32.totalorder %s68, %s82
    %p84 = scmp.eq.s32.totalorder %s16, 0
    %p85 = por %p83, %p84
    %s87 = sadd.s32 %s86, 1
    %p90 = scmp.eq.s32.totalorder %s10, 1
    %p91 = scmp.ne.s32.totalorder %s86, %s88
    %p92 = scmp.eq.s32.totalorder %s10, 0
    %p93 = por %p91, %p92
    %p94 = scmp.ne.s32.totalorder %s86, %s88
    %p95 = scmp.eq.s32.totalorder %s15, 1
    %p96 = por %p94, %p95
    %p97 = scmp.ne.s32.totalorder %s88, %s89
    %p98 = scmp.eq.s32.totalorder %s15, 0
    %p99 = por %p97, %p98
    %p100 = scmp.ne.s32.totalorder %s88, %s89
    %p101 = scmp.eq.s32.totalorder %s16, 1
    %p102 = por %p100, %p101
    %p104 = scmp.ne.s32.totalorder %s89, %s103
    %p105 = scmp.eq.s32.totalorder %s16, 0
    %p106 = por %p104, %p105
    %s107 = ssub.s32 %s10, %s17
    %p108 = scmp.eq.s32.totalorder %s107, 0
    %s110 = sadd.s32 %s109, 1
    %s111 = scalar_select %p108, %s109, %s110
    %p114 = pneg %p108
    %p115 = scmp.eq.s32.totalorder %s10, 1
    %p116 = por %p114, %p115
    %p117 = scmp.ne.s32.totalorder %s109, %s112
    %p118 = scmp.eq.s32.totalorder %s10, 0
    %p119 = por %p117, %p118
    %p120 = scmp.ne.s32.totalorder %s109, %s112
    %p121 = scmp.eq.s32.totalorder %s15, 1
    %p122 = por %p120, %p121
    %p123 = scmp.ne.s32.totalorder %s112, %s113
    %p124 = scmp.eq.s32.totalorder %s15, 0
    %p125 = por %p123, %p124
    %p126 = scmp.ne.s32.totalorder %s112, %s113
    %p127 = scmp.eq.s32.totalorder %s16, 1
    %p128 = por %p126, %p127
    %p130 = scmp.ne.s32.totalorder %s113, %s129
    %p131 = scmp.eq.s32.totalorder %s16, 0
    %p132 = por %p130, %p131
    %p133 = scmp.le.s32.totalorder 1, %s10
    %p134 = scmp.lt.s32.totalorder %s10, 3
    %p135 = pnand %p133, %p134
    %p136 = pneg %p135
    // Predicated region
    $region9: #{letter_cnn_forward.4} parent=5 // pred_check
      _
    $region10: #{letter_cnn_forward.4} parent=5 // pred_check_branch
      %138 = sbr.rel (%p135) target = $region12
    $region11: #{letter_cnn_forward.4} parent=5 // pred_region
      %s139 = ssub.s32 %s10, 1
      // Predicated region
      $region13: #{letter_cnn_forward.4} parent=11 // pred_check
        %p140 = pneg %p57
      $region14: #{letter_cnn_forward.4} parent=11 // pred_check_branch
        %142 = sbr.rel (%p140) target = $region16
      $region15: #{letter_cnn_forward.4} parent=11 // pred_region
        _
      $region16: #{letter_cnn_forward.4} parent=11 // pred_fallthru
        _
      // Predicated region
      $region17: #{letter_cnn_forward.4} parent=11 // pred_check
        %p143 = pneg %p78
      $region18: #{letter_cnn_forward.4} parent=11 // pred_check_branch
        %145 = sbr.rel (%p143) target = $region20
      $region19: #{letter_cnn_forward.4} parent=11 // pred_region
        _
      $region20: #{letter_cnn_forward.4} parent=11 // pred_fallthru
        _
      // Predicated region
      $region21: #{letter_cnn_forward.4} parent=11 // pred_check
        %p146 = pneg %p99
      $region22: #{letter_cnn_forward.4} parent=11 // pred_check_branch
        %148 = sbr.rel (%p146) target = $region24
      $region23: #{letter_cnn_forward.4} parent=11 // pred_region
        _
      $region24: #{letter_cnn_forward.4} parent=11 // pred_fallthru
        _
    $region12: #{letter_cnn_forward.4} parent=5 // pred_fallthru
      _
    %p149 = scmp.lt.s32.totalorder %s10, 2
    // Predicated region
    $region25: #{letter_cnn_forward.4} parent=5 // pred_check
      %p150 = pneg %p149
    $region26: #{letter_cnn_forward.4} parent=5 // pred_check_branch
      %152 = sbr.rel (%p150) target = $region28
    $region27: #{letter_cnn_forward.4} parent=5 // pred_region
      // Predicated region
      $region29: #{letter_cnn_forward.4} parent=27 // pred_check
        %p153 = pneg %p30
      $region30: #{letter_cnn_forward.4} parent=27 // pred_check_branch
        %155 = sbr.rel (%p153) target = $region32
      $region31: #{letter_cnn_forward.4} parent=27 // pred_region
        %p156 = scmp.lt.s32.totalorder %s10, 1
        %s157 = scalar_select %p156, %s10, 1
        %s158 = smul.addr %s157, 8
        %s159 = smul.addr %s158, 4
        %s160 = scalar_lea.vmem %s0, %s159
      $region32: #{letter_cnn_forward.4} parent=27 // pred_fallthru
        _
    $region28: #{letter_cnn_forward.4} parent=5 // pred_fallthru
      _
    %p161 = scmp.le.s32.totalorder 1, %s10
    %p162 = scmp.lt.s32.totalorder %s10, 3
    %p163 = pnand %p161, %p162
    %p164 = pneg %p163
    // Predicated region
    $region33: #{letter_cnn_forward.4} parent=5 // pred_check
      _
    $region34: #{letter_cnn_forward.4} parent=5 // pred_check_branch
      %166 = sbr.rel (%p163) target = $region36
    $region35: #{letter_cnn_forward.4} parent=5 // pred_region
      %s167 = ssub.s32 %s10, 1
      %p168 = scmp.lt.s32.totalorder %s15, 1
      %s169 = scalar_select %p168, %s15, 1
      %s170 = smul.addr %s169, 8
      %s171 = smul.addr %s170, 4
      %s172 = scalar_lea.vmem %s0, %s171
      %p173 = pneg %p36
      %p174 = pneg %p33
      %p175 = pneg %p57
      %p176 = pneg %p54
      %p177 = pneg %p78
      %p178 = pneg %p75
      %p179 = pneg %p99
      %p180 = pneg %p96
      %p181 = pneg %p125
      %p182 = pneg %p122
      %p183 = scmp.lt.s32.totalorder %s15, 1
      %s184 = scalar_select %p183, %s15, 1
      %s185 = smul.addr %s184, 8
      %s186 = smul.addr %s185, 4
      %s187 = scalar_lea.vmem %s4, %s186
      %p188 = scmp.lt.s32.totalorder %s15, 1
      %s189 = scalar_select %p188, %s15, 1
      %s190 = smul.addr %s189, 8
      %s191 = smul.addr %s190, 4
      %s192 = scalar_lea.vmem %s0, %s191
      %p193 = scmp.lt.s32.totalorder %s15, 1
      %s194 = scalar_select %p193, %s15, 1
      %s195 = smul.addr %s194, 8
      %s196 = smul.addr %s195, 4
      %s197 = scalar_lea.vmem %s4, %s196
      %v199 = vld [vmem:[%s192] sm:$0xff]
      %v200 = vld [vmem:[%s192 + $0x8] sm:$0xff]
      %v201 = vld [vmem:[%s192 + $0x10] sm:$0xff]
      %v202 = vld [vmem:[%s192 + $0x18] sm:$0xff]
      %v203 = vld [vmem:[%s1] sm:$0xf]
      %v204 = vld [vmem:[%s1 + $0x4] sm:$0xf]
      %v205 = vld [vmem:[%s1 + $0x8] sm:$0xf]
      %v206 = vld [vmem:[%s1 + $0xc] sm:$0xf]
      %v207 = vld [vmem:[%s1 + $0x10] sm:$0xf]
      %v208 = vld [vmem:[%s1 + $0x14] sm:$0xf]
      %v209 = vld [vmem:[%s1 + $0x18] sm:$0xf]
      %v210 = vld [vmem:[%s1 + $0x1c] sm:$0xf]
      %s211 = scalar_lea.vmem %s1, 32
      %v212 = vld [vmem:[%s211] sm:$0xf]
      %v213 = vld [vmem:[%s211 + $0x4] sm:$0xf]
      %v214 = vld [vmem:[%s211 + $0x8] sm:$0xf]
      %v215 = vld [vmem:[%s211 + $0xc] sm:$0xf]
      %v216 = vld [vmem:[%s211 + $0x10] sm:$0xf]
      %v217 = vld [vmem:[%s211 + $0x14] sm:$0xf]
      %v218 = vld [vmem:[%s211 + $0x18] sm:$0xf]
      %v219 = vld [vmem:[%s211 + $0x1c] sm:$0xf]
      %v228 = vunpack.c.l.b16 %v212
      %v229 = vunpack.c.l.b16 %v213
      %v230 = vunpack.c.l.b16 %v214
      %v231 = vunpack.c.l.b16 %v215
      %v232 = vunpack.c.l.b16 %v216
      %v233 = vunpack.c.l.b16 %v217
      %v234 = vunpack.c.l.b16 %v218
      %v235 = vunpack.c.l.b16 %v219
      %v236 = vpack.c.b16 %v229, %v228
      %v237 = vpack.c.b16 %v231, %v230
      %v238 = vpack.c.b16 %v233, %v232
      %v239 = vpack.c.b16 %v235, %v234
      %v244 = vunpack.c.l.b16 %v199
      %v245 = vunpack.c.h.b16 %v199
      %v246 = vunpack.c.l.b16 %v200
      %v247 = vunpack.c.h.b16 %v200
      %v248 = vunpack.c.l.b16 %v201
      %v249 = vunpack.c.h.b16 %v201
      %v250 = vunpack.c.l.b16 %v202
      %v251 = vunpack.c.h.b16 %v202
      %v252 = vpack.c.b16 %v246, %v244
      %v253 = vpack.c.b16 %v247, %v245
      %v254 = vpack.c.b16 %v250, %v248
      %v255 = vpack.c.b16 %v251, %v249
      %256 = vrot.lane.b32.xlu0 %v252, 127
      %v257 = vpop.permute.xlu0 %256
      %258 = vrot.lane.b32.xlu0 %v253, 127
      %v259 = vpop.permute.xlu0 %258
      %260 = vrot.lane.b32.xlu0 %v254, 127
      %v261 = vpop.permute.xlu0 %260
      %262 = vrot.lane.b32.xlu0 %v255, 127
      %v263 = vpop.permute.xlu0 %262
      %vm264 = vcmask 1039360
      %v265 = vsel %vm264, %v257, %v259
      %v266 = vsel %vm264, %v261, %v263
      %vm271 = vcmask 261120
      %v273 = vsel %vm271, %v236, 0
      %v276 = vsel %vm271, %v237, 0
      %v279 = vsel %vm271, %v238, 0
      %v282 = vsel %vm271, %v239, 0
      %284 = vmatpush.bf16.msra.mxu0 0
      %285 = vmatpush.bf16.msra.mxu0 0
      %286 = vmatpush.bf16.msra.mxu0 0
      %287 = vmatpush.bf16.msra.mxu0 0
      %288 = vmatpush.bf16.msra.mxu0 0
      %289 = vmatpush.bf16.msra.mxu0 0
      %290 = vmatpush.bf16.msra.mxu0 %v266
      %291 = vmatpush.bf16.msra.mxu0 %v265
      %292 = vmatmul.bf16.gmra.mxu0 %v273
      %v293 = vpop.f32.mrf.mxu0
      %v294 = vadd.f32 0.0, %v293
      %v295 = vpop.f32.mrf.mxu0
      %v296 = vadd.f32 0.0, %v295
      %297 = vmatmul.bf16.gmra.mxu0 %v276
      %v298 = vpop.f32.mrf.mxu0
      %v299 = vadd.f32 0.0, %v298
      %v300 = vpop.f32.mrf.mxu0
      %v301 = vadd.f32 0.0, %v300
      %302 = vmatmul.bf16.gmra.mxu0 %v279
      %v303 = vpop.f32.mrf.mxu0
      %v304 = vadd.f32 0.0, %v303
      %v305 = vpop.f32.mrf.mxu0
      %v306 = vadd.f32 0.0, %v305
      %307 = vmatmul.bf16.gmra.mxu0 %v282
      %v308 = vpop.f32.mrf.mxu0
      %v309 = vadd.f32 0.0, %v308
      %v310 = vpop.f32.mrf.mxu0
      %v311 = vadd.f32 0.0, %v310
      %312 = vdwg.mxu0
      %313 = vmatpush.bf16.msra.mxu0 0
      %314 = vmatpush.bf16.msra.mxu0 0
      %315 = vmatpush.bf16.msra.mxu0 0
      %316 = vmatpush.bf16.msra.mxu0 0
      %317 = vmatpush.bf16.msra.mxu0 0
      %318 = vmatpush.bf16.msra.mxu0 0
      %319 = vmatpush.bf16.msra.mxu0 %v263
      %320 = vmatpush.bf16.msra.mxu0 %v259
      %321 = vmatmul.bf16.gmra.mxu0 %v273
      %v322 = vpop.f32.mrf.mxu0
      %v323 = vadd.f32 0.0, %v322
      %v324 = vpop.f32.mrf.mxu0
      %v325 = vadd.f32 0.0, %v324
      %326 = vmatmul.bf16.gmra.mxu0 %v276
      %v327 = vpop.f32.mrf.mxu0
      %v328 = vadd.f32 0.0, %v327
      %v329 = vpop.f32.mrf.mxu0
      %v330 = vadd.f32 0.0, %v329
      %331 = vmatmul.bf16.gmra.mxu0 %v279
      %v332 = vpop.f32.mrf.mxu0
      %v333 = vadd.f32 0.0, %v332
      %v334 = vpop.f32.mrf.mxu0
      %v335 = vadd.f32 0.0, %v334
      %336 = vmatmul.bf16.gmra.mxu0 %v282
      %v337 = vpop.f32.mrf.mxu0
      %v338 = vadd.f32 0.0, %v337
      %v339 = vpop.f32.mrf.mxu0
      %v340 = vadd.f32 0.0, %v339
      %341 = vdwg.mxu0
      %v350 = vunpack.c.l.b16 %v203
      %v351 = vunpack.c.l.b16 %v204
      %v352 = vunpack.c.l.b16 %v205
      %v353 = vunpack.c.l.b16 %v206
      %v354 = vunpack.c.l.b16 %v207
      %v355 = vunpack.c.l.b16 %v208
      %v356 = vunpack.c.l.b16 %v209
      %v357 = vunpack.c.l.b16 %v210
      %v358 = vpack.c.b16 %v351, %v350
      %v359 = vpack.c.b16 %v353, %v352
      %v360 = vpack.c.b16 %v355, %v354
      %v361 = vpack.c.b16 %v357, %v356
      %v367 = vsel %vm271, %v358, 0
      %v370 = vsel %vm271, %v359, 0
      %v373 = vsel %vm271, %v360, 0
      %v376 = vsel %vm271, %v361, 0
      %378 = vmatpush.bf16.msra.mxu0 0
      %379 = vmatpush.bf16.msra.mxu0 0
      %380 = vmatpush.bf16.msra.mxu0 0
      %381 = vmatpush.bf16.msra.mxu0 0
      %382 = vmatpush.bf16.msra.mxu0 0
      %383 = vmatpush.bf16.msra.mxu0 0
      %384 = vmatpush.bf16.msra.mxu0 %v254
      %385 = vmatpush.bf16.msra.mxu0 %v252
      %386 = vmatmul.bf16.gmra.mxu0 %v367
      %v387 = vpop.f32.mrf.mxu0
      %v388 = vadd.f32 %v294, %v387
      %v389 = vpop.f32.mrf.mxu0
      %v390 = vadd.f32 %v296, %v389
      %391 = vmatmul.bf16.gmra.mxu0 %v370
      %v392 = vpop.f32.mrf.mxu0
      %v393 = vadd.f32 %v299, %v392
      %v394 = vpop.f32.mrf.mxu0
      %v395 = vadd.f32 %v301, %v394
      %396 = vmatmul.bf16.gmra.mxu0 %v373
      %v397 = vpop.f32.mrf.mxu0
      %v398 = vadd.f32 %v304, %v397
      %v399 = vpop.f32.mrf.mxu0
      %v400 = vadd.f32 %v306, %v399
      %401 = vmatmul.bf16.gmra.mxu0 %v376
      %v402 = vpop.f32.mrf.mxu0
      %v403 = vadd.f32 %v309, %v402
      %v404 = vpop.f32.mrf.mxu0
      %v405 = vadd.f32 %v311, %v404
      %406 = vdwg.mxu0
      %407 = vmatpush.bf16.msra.mxu0 0
      %408 = vmatpush.bf16.msra.mxu0 0
      %409 = vmatpush.bf16.msra.mxu0 0
      %410 = vmatpush.bf16.msra.mxu0 0
      %411 = vmatpush.bf16.msra.mxu0 0
      %412 = vmatpush.bf16.msra.mxu0 0
      %413 = vmatpush.bf16.msra.mxu0 %v255
      %414 = vmatpush.bf16.msra.mxu0 %v253
      %415 = vmatmul.bf16.gmra.mxu0 %v367
      %v416 = vpop.f32.mrf.mxu0
      %v417 = vadd.f32 %v323, %v416
      %v418 = vpop.f32.mrf.mxu0
      %v419 = vadd.f32 %v325, %v418
      %420 = vmatmul.bf16.gmra.mxu0 %v370
      %v421 = vpop.f32.mrf.mxu0
      %v422 = vadd.f32 %v328, %v421
      %v423 = vpop.f32.mrf.mxu0
      %v424 = vadd.f32 %v330, %v423
      %425 = vmatmul.bf16.gmra.mxu0 %v373
      %v426 = vpop.f32.mrf.mxu0
      %v427 = vadd.f32 %v333, %v426
      %v428 = vpop.f32.mrf.mxu0
      %v429 = vadd.f32 %v335, %v428
      %430 = vmatmul.bf16.gmra.mxu0 %v376
      %v431 = vpop.f32.mrf.mxu0
      %v432 = vadd.f32 %v338, %v431
      %v433 = vpop.f32.mrf.mxu0
      %v434 = vadd.f32 %v340, %v433
      %435 = vdwg.mxu0
      %s436 = scalar_lea.vmem %s1, 64
      %v437 = vld [vmem:[%s436] sm:$0xf]
      %v438 = vld [vmem:[%s436 + $0x4] sm:$0xf]
      %v439 = vld [vmem:[%s436 + $0x8] sm:$0xf]
      %v440 = vld [vmem:[%s436 + $0xc] sm:$0xf]
      %v441 = vld [vmem:[%s436 + $0x10] sm:$0xf]
      %v442 = vld [vmem:[%s436 + $0x14] sm:$0xf]
      %v443 = vld [vmem:[%s436 + $0x18] sm:$0xf]
      %v444 = vld [vmem:[%s436 + $0x1c] sm:$0xf]
      %v453 = vunpack.c.l.b16 %v437
      %v454 = vunpack.c.l.b16 %v438
      %v455 = vunpack.c.l.b16 %v439
      %v456 = vunpack.c.l.b16 %v440
      %v457 = vunpack.c.l.b16 %v441
      %v458 = vunpack.c.l.b16 %v442
      %v459 = vunpack.c.l.b16 %v443
      %v460 = vunpack.c.l.b16 %v444
      %v461 = vpack.c.b16 %v454, %v453
      %v462 = vpack.c.b16 %v456, %v455
      %v463 = vpack.c.b16 %v458, %v457
      %v464 = vpack.c.b16 %v460, %v459
      %465 = vrot.lane.b32.xlu0 %v252, 126
      %v466 = vpop.permute.xlu0 %465
      %467 = vrot.lane.b32.xlu0 %v253, 126
      %v468 = vpop.permute.xlu0 %467
      %469 = vrot.lane.b32.xlu0 %v254, 126
      %v470 = vpop.permute.xlu0 %469
      %471 = vrot.lane.b32.xlu0 %v255, 126
      %v472 = vpop.permute.xlu0 %471
      %vm473 = vcmask 1031168
      %v474 = vsel %vm473, %v466, %v468
      %v475 = vsel %vm473, %v470, %v472
      %v481 = vsel %vm271, %v461, 0
      %v484 = vsel %vm271, %v462, 0
      %v487 = vsel %vm271, %v463, 0
      %v490 = vsel %vm271, %v464, 0
      %492 = vmatpush.bf16.msra.mxu0 0
      %493 = vmatpush.bf16.msra.mxu0 0
      %494 = vmatpush.bf16.msra.mxu0 0
      %495 = vmatpush.bf16.msra.mxu0 0
      %496 = vmatpush.bf16.msra.mxu0 0
      %497 = vmatpush.bf16.msra.mxu0 0
      %498 = vmatpush.bf16.msra.mxu0 %v475
      %499 = vmatpush.bf16.msra.mxu0 %v474
      %500 = vmatmul.bf16.gmra.mxu0 %v481
      %v501 = vpop.f32.mrf.mxu0
      %v502 = vadd.f32 0.0, %v501
      %v503 = vpop.f32.mrf.mxu0
      %v504 = vadd.f32 0.0, %v503
      %505 = vmatmul.bf16.gmra.mxu0 %v484
      %v506 = vpop.f32.mrf.mxu0
      %v507 = vadd.f32 0.0, %v506
      %v508 = vpop.f32.mrf.mxu0
      %v509 = vadd.f32 0.0, %v508
      %510 = vmatmul.bf16.gmra.mxu0 %v487
      %v511 = vpop.f32.mrf.mxu0
      %v512 = vadd.f32 0.0, %v511
      %v513 = vpop.f32.mrf.mxu0
      %v514 = vadd.f32 0.0, %v513
      %515 = vmatmul.bf16.gmra.mxu0 %v490
      %v516 = vpop.f32.mrf.mxu0
      %v517 = vadd.f32 0.0, %v516
      %v518 = vpop.f32.mrf.mxu0
      %v519 = vadd.f32 0.0, %v518
      %520 = vdwg.mxu0
      %521 = vmatpush.bf16.msra.mxu0 0
      %522 = vmatpush.bf16.msra.mxu0 0
      %523 = vmatpush.bf16.msra.mxu0 0
      %524 = vmatpush.bf16.msra.mxu0 0
      %525 = vmatpush.bf16.msra.mxu0 0
      %526 = vmatpush.bf16.msra.mxu0 0
      %527 = vmatpush.bf16.msra.mxu0 %v472
      %528 = vmatpush.bf16.msra.mxu0 %v468
      %529 = vmatmul.bf16.gmra.mxu0 %v481
      %v530 = vpop.f32.mrf.mxu0
      %v531 = vadd.f32 0.0, %v530
      %v532 = vpop.f32.mrf.mxu0
      %v533 = vadd.f32 0.0, %v532
      %534 = vmatmul.bf16.gmra.mxu0 %v484
      %v535 = vpop.f32.mrf.mxu0
      %v536 = vadd.f32 0.0, %v535
      %v537 = vpop.f32.mrf.mxu0
      %v538 = vadd.f32 0.0, %v537
      %539 = vmatmul.bf16.gmra.mxu0 %v487
      %v540 = vpop.f32.mrf.mxu0
      %v541 = vadd.f32 0.0, %v540
      %v542 = vpop.f32.mrf.mxu0
      %v543 = vadd.f32 0.0, %v542
      %544 = vmatmul.bf16.gmra.mxu0 %v490
      %v545 = vpop.f32.mrf.mxu0
      %v546 = vadd.f32 0.0, %v545
      %v547 = vpop.f32.mrf.mxu0
      %v548 = vadd.f32 0.0, %v547
      %549 = vdwg.mxu0
      %v550 = vadd.f32 %v388, %v502
      %v551 = vadd.f32 %v417, %v531
      %v552 = vadd.f32 %v390, %v504
      %v553 = vadd.f32 %v419, %v533
      %v554 = vadd.f32 %v393, %v507
      %v555 = vadd.f32 %v422, %v536
      %v556 = vadd.f32 %v395, %v509
      %v557 = vadd.f32 %v424, %v538
      %v558 = vadd.f32 %v398, %v512
      %v559 = vadd.f32 %v427, %v541
      %v560 = vadd.f32 %v400, %v514
      %v561 = vadd.f32 %v429, %v543
      %v562 = vadd.f32 %v403, %v517
      %v563 = vadd.f32 %v432, %v546
      %v564 = vadd.f32 %v405, %v519
      %v565 = vadd.f32 %v434, %v548
      %s566 = scalar_lea.vmem %s1, 96
      %v567 = vld [vmem:[%s566] sm:$0xf]
      %v568 = vld [vmem:[%s566 + $0x4] sm:$0xf]
      %v569 = vld [vmem:[%s566 + $0x8] sm:$0xf]
      %v570 = vld [vmem:[%s566 + $0xc] sm:$0xf]
      %v571 = vld [vmem:[%s566 + $0x10] sm:$0xf]
      %v572 = vld [vmem:[%s566 + $0x14] sm:$0xf]
      %v573 = vld [vmem:[%s566 + $0x18] sm:$0xf]
      %v574 = vld [vmem:[%s566 + $0x1c] sm:$0xf]
      %v583 = vunpack.c.l.b16 %v567
      %v584 = vunpack.c.l.b16 %v568
      %v585 = vunpack.c.l.b16 %v569
      %v586 = vunpack.c.l.b16 %v570
      %v587 = vunpack.c.l.b16 %v571
      %v588 = vunpack.c.l.b16 %v572
      %v589 = vunpack.c.l.b16 %v573
      %v590 = vunpack.c.l.b16 %v574
      %v591 = vpack.c.b16 %v584, %v583
      %v592 = vpack.c.b16 %v586, %v585
      %v593 = vpack.c.b16 %v588, %v587
      %v594 = vpack.c.b16 %v590, %v589
      %595 = vrot.lane.b32.xlu0 %v252, 115
      %v596 = vpop.permute.xlu0 %595
      %597 = vrot.lane.b32.xlu0 %v253, 115
      %v598 = vpop.permute.xlu0 %597
      %599 = vrot.lane.b32.xlu0 %v254, 115
      %v600 = vpop.permute.xlu0 %599
      %601 = vrot.lane.b32.xlu0 %v255, 115
      %v602 = vpop.permute.xlu0 %601
      %vm603 = vcmask 941056
      %v604 = vsel %vm603, %v596, %v598
      %v605 = vsel %vm603, %v600, %v602
      %v611 = vsel %vm271, %v591, 0
      %v614 = vsel %vm271, %v592, 0
      %v617 = vsel %vm271, %v593, 0
      %v620 = vsel %vm271, %v594, 0
      %622 = vmatpush.bf16.msra.mxu0 0
      %623 = vmatpush.bf16.msra.mxu0 0
      %624 = vmatpush.bf16.msra.mxu0 0
      %625 = vmatpush.bf16.msra.mxu0 0
      %626 = vmatpush.bf16.msra.mxu0 0
      %627 = vmatpush.bf16.msra.mxu0 0
      %628 = vmatpush.bf16.msra.mxu0 %v605
      %629 = vmatpush.bf16.msra.mxu0 %v604
      %630 = vmatmul.bf16.gmra.mxu0 %v611
      %v631 = vpop.f32.mrf.mxu0
      %v632 = vadd.f32 0.0, %v631
      %v633 = vpop.f32.mrf.mxu0
      %v634 = vadd.f32 0.0, %v633
      %635 = vmatmul.bf16.gmra.mxu0 %v614
      %v636 = vpop.f32.mrf.mxu0
      %v637 = vadd.f32 0.0, %v636
      %v638 = vpop.f32.mrf.mxu0
      %v639 = vadd.f32 0.0, %v638
      %640 = vmatmul.bf16.gmra.mxu0 %v617
      %v641 = vpop.f32.mrf.mxu0
      %v642 = vadd.f32 0.0, %v641
      %v643 = vpop.f32.mrf.mxu0
      %v644 = vadd.f32 0.0, %v643
      %645 = vmatmul.bf16.gmra.mxu0 %v620
      %v646 = vpop.f32.mrf.mxu0
      %v647 = vadd.f32 0.0, %v646
      %v648 = vpop.f32.mrf.mxu0
      %v649 = vadd.f32 0.0, %v648
      %650 = vdwg.mxu0
      %651 = vmatpush.bf16.msra.mxu0 0
      %652 = vmatpush.bf16.msra.mxu0 0
      %653 = vmatpush.bf16.msra.mxu0 0
      %654 = vmatpush.bf16.msra.mxu0 0
      %655 = vmatpush.bf16.msra.mxu0 0
      %656 = vmatpush.bf16.msra.mxu0 0
      %657 = vmatpush.bf16.msra.mxu0 %v602
      %658 = vmatpush.bf16.msra.mxu0 %v598
      %659 = vmatmul.bf16.gmra.mxu0 %v611
      %v660 = vpop.f32.mrf.mxu0
      %v661 = vadd.f32 0.0, %v660
      %v662 = vpop.f32.mrf.mxu0
      %v663 = vadd.f32 0.0, %v662
      %664 = vmatmul.bf16.gmra.mxu0 %v614
      %v665 = vpop.f32.mrf.mxu0
      %v666 = vadd.f32 0.0, %v665
      %v667 = vpop.f32.mrf.mxu0
      %v668 = vadd.f32 0.0, %v667
      %669 = vmatmul.bf16.gmra.mxu0 %v617
      %v670 = vpop.f32.mrf.mxu0
      %v671 = vadd.f32 0.0, %v670
      %v672 = vpop.f32.mrf.mxu0
      %v673 = vadd.f32 0.0, %v672
      %674 = vmatmul.bf16.gmra.mxu0 %v620
      %v675 = vpop.f32.mrf.mxu0
      %v676 = vadd.f32 0.0, %v675
      %v677 = vpop.f32.mrf.mxu0
      %v678 = vadd.f32 0.0, %v677
      %679 = vdwg.mxu0
      %v680 = vadd.f32 %v550, %v632
      %v681 = vadd.f32 %v551, %v661
      %v682 = vadd.f32 %v552, %v634
      %v683 = vadd.f32 %v553, %v663
      %v684 = vadd.f32 %v554, %v637
      %v685 = vadd.f32 %v555, %v666
      %v686 = vadd.f32 %v556, %v639
      %v687 = vadd.f32 %v557, %v668
      %v688 = vadd.f32 %v558, %v642
      %v689 = vadd.f32 %v559, %v671
      %v690 = vadd.f32 %v560, %v644
      %v691 = vadd.f32 %v561, %v673
      %v692 = vadd.f32 %v562, %v647
      %v693 = vadd.f32 %v563, %v676
      %v694 = vadd.f32 %v564, %v649
      %v695 = vadd.f32 %v565, %v678
      %s696 = scalar_lea.vmem %s1, 128
      %v697 = vld [vmem:[%s696] sm:$0xf]
      %v698 = vld [vmem:[%s696 + $0x4] sm:$0xf]
      %v699 = vld [vmem:[%s696 + $0x8] sm:$0xf]
      %v700 = vld [vmem:[%s696 + $0xc] sm:$0xf]
      %v701 = vld [vmem:[%s696 + $0x10] sm:$0xf]
      %v702 = vld [vmem:[%s696 + $0x14] sm:$0xf]
      %v703 = vld [vmem:[%s696 + $0x18] sm:$0xf]
      %v704 = vld [vmem:[%s696 + $0x1c] sm:$0xf]
      %v713 = vunpack.c.l.b16 %v697
      %v714 = vunpack.c.l.b16 %v698
      %v715 = vunpack.c.l.b16 %v699
      %v716 = vunpack.c.l.b16 %v700
      %v717 = vunpack.c.l.b16 %v701
      %v718 = vunpack.c.l.b16 %v702
      %v719 = vunpack.c.l.b16 %v703
      %v720 = vunpack.c.l.b16 %v704
      %v721 = vpack.c.b16 %v714, %v713
      %v722 = vpack.c.b16 %v716, %v715
      %v723 = vpack.c.b16 %v718, %v717
      %v724 = vpack.c.b16 %v720, %v719
      %725 = vrot.lane.b32.xlu0 %v252, 114
      %v726 = vpop.permute.xlu0 %725
      %727 = vrot.lane.b32.xlu0 %v253, 114
      %v728 = vpop.permute.xlu0 %727
      %729 = vrot.lane.b32.xlu0 %v254, 114
      %v730 = vpop.permute.xlu0 %729
      %731 = vrot.lane.b32.xlu0 %v255, 114
      %v732 = vpop.permute.xlu0 %731
      %vm733 = vcmask 932864
      %v734 = vsel %vm733, %v726, %v728
      %v735 = vsel %vm733, %v730, %v732
      %v741 = vsel %vm271, %v721, 0
      %v744 = vsel %vm271, %v722, 0
      %v747 = vsel %vm271, %v723, 0
      %v750 = vsel %vm271, %v724, 0
      %752 = vmatpush.bf16.msra.mxu0 0
      %753 = vmatpush.bf16.msra.mxu0 0
      %754 = vmatpush.bf16.msra.mxu0 0
      %755 = vmatpush.bf16.msra.mxu0 0
      %756 = vmatpush.bf16.msra.mxu0 0
      %757 = vmatpush.bf16.msra.mxu0 0
      %758 = vmatpush.bf16.msra.mxu0 %v735
      %759 = vmatpush.bf16.msra.mxu0 %v734
      %760 = vmatmul.bf16.gmra.mxu0 %v741
      %v761 = vpop.f32.mrf.mxu0
      %v762 = vadd.f32 0.0, %v761
      %v763 = vpop.f32.mrf.mxu0
      %v764 = vadd.f32 0.0, %v763
      %765 = vmatmul.bf16.gmra.mxu0 %v744
      %v766 = vpop.f32.mrf.mxu0
      %v767 = vadd.f32 0.0, %v766
      %v768 = vpop.f32.mrf.mxu0
      %v769 = vadd.f32 0.0, %v768
      %770 = vmatmul.bf16.gmra.mxu0 %v747
      %v771 = vpop.f32.mrf.mxu0
      %v772 = vadd.f32 0.0, %v771
      %v773 = vpop.f32.mrf.mxu0
      %v774 = vadd.f32 0.0, %v773
      %775 = vmatmul.bf16.gmra.mxu0 %v750
      %v776 = vpop.f32.mrf.mxu0
      %v777 = vadd.f32 0.0, %v776
      %v778 = vpop.f32.mrf.mxu0
      %v779 = vadd.f32 0.0, %v778
      %780 = vdwg.mxu0
      %781 = vmatpush.bf16.msra.mxu0 0
      %782 = vmatpush.bf16.msra.mxu0 0
      %783 = vmatpush.bf16.msra.mxu0 0
      %784 = vmatpush.bf16.msra.mxu0 0
      %785 = vmatpush.bf16.msra.mxu0 0
      %786 = vmatpush.bf16.msra.mxu0 0
      %787 = vmatpush.bf16.msra.mxu0 %v732
      %788 = vmatpush.bf16.msra.mxu0 %v728
      %789 = vmatmul.bf16.gmra.mxu0 %v741
      %v790 = vpop.f32.mrf.mxu0
      %v791 = vadd.f32 0.0, %v790
      %v792 = vpop.f32.mrf.mxu0
      %v793 = vadd.f32 0.0, %v792
      %794 = vmatmul.bf16.gmra.mxu0 %v744
      %v795 = vpop.f32.mrf.mxu0
      %v796 = vadd.f32 0.0, %v795
      %v797 = vpop.f32.mrf.mxu0
      %v798 = vadd.f32 0.0, %v797
      %799 = vmatmul.bf16.gmra.mxu0 %v747
      %v800 = vpop.f32.mrf.mxu0
      %v801 = vadd.f32 0.0, %v800
      %v802 = vpop.f32.mrf.mxu0
      %v803 = vadd.f32 0.0, %v802
      %804 = vmatmul.bf16.gmra.mxu0 %v750
      %v805 = vpop.f32.mrf.mxu0
      %v806 = vadd.f32 0.0, %v805
      %v807 = vpop.f32.mrf.mxu0
      %v808 = vadd.f32 0.0, %v807
      %809 = vdwg.mxu0
      %v810 = vadd.f32 %v680, %v762
      %v811 = vadd.f32 %v681, %v791
      %v812 = vadd.f32 %v682, %v764
      %v813 = vadd.f32 %v683, %v793
      %v814 = vadd.f32 %v684, %v767
      %v815 = vadd.f32 %v685, %v796
      %v816 = vadd.f32 %v686, %v769
      %v817 = vadd.f32 %v687, %v798
      %v818 = vadd.f32 %v688, %v772
      %v819 = vadd.f32 %v689, %v801
      %v820 = vadd.f32 %v690, %v774
      %v821 = vadd.f32 %v691, %v803
      %v822 = vadd.f32 %v692, %v777
      %v823 = vadd.f32 %v693, %v806
      %v824 = vadd.f32 %v694, %v779
      %v825 = vadd.f32 %v695, %v808
      %s826 = scalar_lea.vmem %s1, 160
      %v827 = vld [vmem:[%s826] sm:$0xf]
      %v828 = vld [vmem:[%s826 + $0x4] sm:$0xf]
      %v829 = vld [vmem:[%s826 + $0x8] sm:$0xf]
      %v830 = vld [vmem:[%s826 + $0xc] sm:$0xf]
      %v831 = vld [vmem:[%s826 + $0x10] sm:$0xf]
      %v832 = vld [vmem:[%s826 + $0x14] sm:$0xf]
      %v833 = vld [vmem:[%s826 + $0x18] sm:$0xf]
      %v834 = vld [vmem:[%s826 + $0x1c] sm:$0xf]
      %v843 = vunpack.c.l.b16 %v827
      %v844 = vunpack.c.l.b16 %v828
      %v845 = vunpack.c.l.b16 %v829
      %v846 = vunpack.c.l.b16 %v830
      %v847 = vunpack.c.l.b16 %v831
      %v848 = vunpack.c.l.b16 %v832
      %v849 = vunpack.c.l.b16 %v833
      %v850 = vunpack.c.l.b16 %v834
      %v851 = vpack.c.b16 %v844, %v843
      %v852 = vpack.c.b16 %v846, %v845
      %v853 = vpack.c.b16 %v848, %v847
      %v854 = vpack.c.b16 %v850, %v849
      %855 = vrot.lane.b32.xlu0 %v252, 113
      %v856 = vpop.permute.xlu0 %855
      %857 = vrot.lane.b32.xlu0 %v253, 113
      %v858 = vpop.permute.xlu0 %857
      %859 = vrot.lane.b32.xlu0 %v254, 113
      %v860 = vpop.permute.xlu0 %859
      %861 = vrot.lane.b32.xlu0 %v255, 113
      %v862 = vpop.permute.xlu0 %861
      %vm863 = vcmask 924672
      %v864 = vsel %vm863, %v856, %v858
      %v865 = vsel %vm863, %v860, %v862
      %v871 = vsel %vm271, %v851, 0
      %v874 = vsel %vm271, %v852, 0
      %v877 = vsel %vm271, %v853, 0
      %v880 = vsel %vm271, %v854, 0
      %882 = vmatpush.bf16.msra.mxu0 0
      %883 = vmatpush.bf16.msra.mxu0 0
      %884 = vmatpush.bf16.msra.mxu0 0
      %885 = vmatpush.bf16.msra.mxu0 0
      %886 = vmatpush.bf16.msra.mxu0 0
      %887 = vmatpush.bf16.msra.mxu0 0
      %888 = vmatpush.bf16.msra.mxu0 %v865
      %889 = vmatpush.bf16.msra.mxu0 %v864
      %890 = vmatmul.bf16.gmra.mxu0 %v871
      %v891 = vpop.f32.mrf.mxu0
      %v892 = vadd.f32 0.0, %v891
      %v893 = vpop.f32.mrf.mxu0
      %v894 = vadd.f32 0.0, %v893
      %895 = vmatmul.bf16.gmra.mxu0 %v874
      %v896 = vpop.f32.mrf.mxu0
      %v897 = vadd.f32 0.0, %v896
      %v898 = vpop.f32.mrf.mxu0
      %v899 = vadd.f32 0.0, %v898
      %900 = vmatmul.bf16.gmra.mxu0 %v877
      %v901 = vpop.f32.mrf.mxu0
      %v902 = vadd.f32 0.0, %v901
      %v903 = vpop.f32.mrf.mxu0
      %v904 = vadd.f32 0.0, %v903
      %905 = vmatmul.bf16.gmra.mxu0 %v880
      %v906 = vpop.f32.mrf.mxu0
      %v907 = vadd.f32 0.0, %v906
      %v908 = vpop.f32.mrf.mxu0
      %v909 = vadd.f32 0.0, %v908
      %910 = vdwg.mxu0
      %911 = vmatpush.bf16.msra.mxu0 0
      %912 = vmatpush.bf16.msra.mxu0 0
      %913 = vmatpush.bf16.msra.mxu0 0
      %914 = vmatpush.bf16.msra.mxu0 0
      %915 = vmatpush.bf16.msra.mxu0 0
      %916 = vmatpush.bf16.msra.mxu0 0
      %917 = vmatpush.bf16.msra.mxu0 %v862
      %918 = vmatpush.bf16.msra.mxu0 %v858
      %919 = vmatmul.bf16.gmra.mxu0 %v871
      %v920 = vpop.f32.mrf.mxu0
      %v921 = vadd.f32 0.0, %v920
      %v922 = vpop.f32.mrf.mxu0
      %v923 = vadd.f32 0.0, %v922
      %924 = vmatmul.bf16.gmra.mxu0 %v874
      %v925 = vpop.f32.mrf.mxu0
      %v926 = vadd.f32 0.0, %v925
      %v927 = vpop.f32.mrf.mxu0
      %v928 = vadd.f32 0.0, %v927
      %929 = vmatmul.bf16.gmra.mxu0 %v877
      %v930 = vpop.f32.mrf.mxu0
      %v931 = vadd.f32 0.0, %v930
      %v932 = vpop.f32.mrf.mxu0
      %v933 = vadd.f32 0.0, %v932
      %934 = vmatmul.bf16.gmra.mxu0 %v880
      %v935 = vpop.f32.mrf.mxu0
      %v936 = vadd.f32 0.0, %v935
      %v937 = vpop.f32.mrf.mxu0
      %v938 = vadd.f32 0.0, %v937
      %939 = vdwg.mxu0
      %v940 = vadd.f32 %v810, %v892
      %v941 = vadd.f32 %v811, %v921
      %v942 = vadd.f32 %v812, %v894
      %v943 = vadd.f32 %v813, %v923
      %v944 = vadd.f32 %v814, %v897
      %v945 = vadd.f32 %v815, %v926
      %v946 = vadd.f32 %v816, %v899
      %v947 = vadd.f32 %v817, %v928
      %v948 = vadd.f32 %v818, %v902
      %v949 = vadd.f32 %v819, %v931
      %v950 = vadd.f32 %v820, %v904
      %v951 = vadd.f32 %v821, %v933
      %v952 = vadd.f32 %v822, %v907
      %v953 = vadd.f32 %v823, %v936
      %v954 = vadd.f32 %v824, %v909
      %v955 = vadd.f32 %v825, %v938
      %s956 = scalar_lea.vmem %s1, 192
      %v957 = vld [vmem:[%s956] sm:$0xf]
      %v958 = vld [vmem:[%s956 + $0x4] sm:$0xf]
      %v959 = vld [vmem:[%s956 + $0x8] sm:$0xf]
      %v960 = vld [vmem:[%s956 + $0xc] sm:$0xf]
      %v961 = vld [vmem:[%s956 + $0x10] sm:$0xf]
      %v962 = vld [vmem:[%s956 + $0x14] sm:$0xf]
      %v963 = vld [vmem:[%s956 + $0x18] sm:$0xf]
      %v964 = vld [vmem:[%s956 + $0x1c] sm:$0xf]
      %v973 = vunpack.c.l.b16 %v957
      %v974 = vunpack.c.l.b16 %v958
      %v975 = vunpack.c.l.b16 %v959
      %v976 = vunpack.c.l.b16 %v960
      %v977 = vunpack.c.l.b16 %v961
      %v978 = vunpack.c.l.b16 %v962
      %v979 = vunpack.c.l.b16 %v963
      %v980 = vunpack.c.l.b16 %v964
      %v981 = vpack.c.b16 %v974, %v973
      %v982 = vpack.c.b16 %v976, %v975
      %v983 = vpack.c.b16 %v978, %v977
      %v984 = vpack.c.b16 %v980, %v979
      %985 = vrot.lane.b32.xlu0 %v252, 102
      %v986 = vpop.permute.xlu0 %985
      %987 = vrot.lane.b32.xlu0 %v253, 102
      %v988 = vpop.permute.xlu0 %987
      %989 = vrot.lane.b32.xlu0 %v254, 102
      %v990 = vpop.permute.xlu0 %989
      %991 = vrot.lane.b32.xlu0 %v255, 102
      %v992 = vpop.permute.xlu0 %991
      %vm993 = vcmask 834560
      %v994 = vsel %vm993, %v986, %v988
      %v995 = vsel %vm993, %v990, %v992
      %v1001 = vsel %vm271, %v981, 0
      %v1004 = vsel %vm271, %v982, 0
      %v1007 = vsel %vm271, %v983, 0
      %v1010 = vsel %vm271, %v984, 0
      %1012 = vmatpush.bf16.msra.mxu0 0
      %1013 = vmatpush.bf16.msra.mxu0 0
      %1014 = vmatpush.bf16.msra.mxu0 0
      %1015 = vmatpush.bf16.msra.mxu0 0
      %1016 = vmatpush.bf16.msra.mxu0 0
      %1017 = vmatpush.bf16.msra.mxu0 0
      %1018 = vmatpush.bf16.msra.mxu0 %v995
      %1019 = vmatpush.bf16.msra.mxu0 %v994
      %1020 = vmatmul.bf16.gmra.mxu0 %v1001
      %v1021 = vpop.f32.mrf.mxu0
      %v1022 = vadd.f32 0.0, %v1021
      %v1023 = vpop.f32.mrf.mxu0
      %v1024 = vadd.f32 0.0, %v1023
      %1025 = vmatmul.bf16.gmra.mxu0 %v1004
      %v1026 = vpop.f32.mrf.mxu0
      %v1027 = vadd.f32 0.0, %v1026
      %v1028 = vpop.f32.mrf.mxu0
      %v1029 = vadd.f32 0.0, %v1028
      %1030 = vmatmul.bf16.gmra.mxu0 %v1007
      %v1031 = vpop.f32.mrf.mxu0
      %v1032 = vadd.f32 0.0, %v1031
      %v1033 = vpop.f32.mrf.mxu0
      %v1034 = vadd.f32 0.0, %v1033
      %1035 = vmatmul.bf16.gmra.mxu0 %v1010
      %v1036 = vpop.f32.mrf.mxu0
      %v1037 = vadd.f32 0.0, %v1036
      %v1038 = vpop.f32.mrf.mxu0
      %v1039 = vadd.f32 0.0, %v1038
      %1040 = vdwg.mxu0
      %1041 = vmatpush.bf16.msra.mxu0 0
      %1042 = vmatpush.bf16.msra.mxu0 0
      %1043 = vmatpush.bf16.msra.mxu0 0
      %1044 = vmatpush.bf16.msra.mxu0 0
      %1045 = vmatpush.bf16.msra.mxu0 0
      %1046 = vmatpush.bf16.msra.mxu0 0
      %1047 = vmatpush.bf16.msra.mxu0 %v992
      %1048 = vmatpush.bf16.msra.mxu0 %v988
      %1049 = vmatmul.bf16.gmra.mxu0 %v1001
      %v1050 = vpop.f32.mrf.mxu0
      %v1051 = vadd.f32 0.0, %v1050
      %v1052 = vpop.f32.mrf.mxu0
      %v1053 = vadd.f32 0.0, %v1052
      %1054 = vmatmul.bf16.gmra.mxu0 %v1004
      %v1055 = vpop.f32.mrf.mxu0
      %v1056 = vadd.f32 0.0, %v1055
      %v1057 = vpop.f32.mrf.mxu0
      %v1058 = vadd.f32 0.0, %v1057
      %1059 = vmatmul.bf16.gmra.mxu0 %v1007
      %v1060 = vpop.f32.mrf.mxu0
      %v1061 = vadd.f32 0.0, %v1060
      %v1062 = vpop.f32.mrf.mxu0
      %v1063 = vadd.f32 0.0, %v1062
      %1064 = vmatmul.bf16.gmra.mxu0 %v1010
      %v1065 = vpop.f32.mrf.mxu0
      %v1066 = vadd.f32 0.0, %v1065
      %v1067 = vpop.f32.mrf.mxu0
      %v1068 = vadd.f32 0.0, %v1067
      %1069 = vdwg.mxu0
      %v1070 = vadd.f32 %v940, %v1022
      %v1071 = vadd.f32 %v941, %v1051
      %v1072 = vadd.f32 %v942, %v1024
      %v1073 = vadd.f32 %v943, %v1053
      %v1074 = vadd.f32 %v944, %v1027
      %v1075 = vadd.f32 %v945, %v1056
      %v1076 = vadd.f32 %v946, %v1029
      %v1077 = vadd.f32 %v947, %v1058
      %v1078 = vadd.f32 %v948, %v1032
      %v1079 = vadd.f32 %v949, %v1061
      %v1080 = vadd.f32 %v950, %v1034
      %v1081 = vadd.f32 %v951, %v1063
      %v1082 = vadd.f32 %v952, %v1037
      %v1083 = vadd.f32 %v953, %v1066
      %v1084 = vadd.f32 %v954, %v1039
      %v1085 = vadd.f32 %v955, %v1068
      %s1086 = scalar_lea.vmem %s1, 224
      %v1087 = vld [vmem:[%s1086] sm:$0xf]
      %v1088 = vld [vmem:[%s1086 + $0x4] sm:$0xf]
      %v1089 = vld [vmem:[%s1086 + $0x8] sm:$0xf]
      %v1090 = vld [vmem:[%s1086 + $0xc] sm:$0xf]
      %v1091 = vld [vmem:[%s1086 + $0x10] sm:$0xf]
      %v1092 = vld [vmem:[%s1086 + $0x14] sm:$0xf]
      %v1093 = vld [vmem:[%s1086 + $0x18] sm:$0xf]
      %v1094 = vld [vmem:[%s1086 + $0x1c] sm:$0xf]
      %v1103 = vunpack.c.l.b16 %v1087
      %v1104 = vunpack.c.l.b16 %v1088
      %v1105 = vunpack.c.l.b16 %v1089
      %v1106 = vunpack.c.l.b16 %v1090
      %v1107 = vunpack.c.l.b16 %v1091
      %v1108 = vunpack.c.l.b16 %v1092
      %v1109 = vunpack.c.l.b16 %v1093
      %v1110 = vunpack.c.l.b16 %v1094
      %v1111 = vpack.c.b16 %v1104, %v1103
      %v1112 = vpack.c.b16 %v1106, %v1105
      %v1113 = vpack.c.b16 %v1108, %v1107
      %v1114 = vpack.c.b16 %v1110, %v1109
      %1115 = vrot.lane.b32.xlu0 %v252, 101
      %v1116 = vpop.permute.xlu0 %1115
      %1117 = vrot.lane.b32.xlu0 %v253, 101
      %v1118 = vpop.permute.xlu0 %1117
      %1119 = vrot.lane.b32.xlu0 %v254, 101
      %v1120 = vpop.permute.xlu0 %1119
      %1121 = vrot.lane.b32.xlu0 %v255, 101
      %v1122 = vpop.permute.xlu0 %1121
      %vm1123 = vcmask 826368
      %v1124 = vsel %vm1123, %v1116, %v1118
      %v1125 = vsel %vm1123, %v1120, %v1122
      %v1131 = vsel %vm271, %v1111, 0
      %v1134 = vsel %vm271, %v1112, 0
      %v1137 = vsel %vm271, %v1113, 0
      %v1140 = vsel %vm271, %v1114, 0
      %1142 = vmatpush.bf16.msra.mxu0 0
      %1143 = vmatpush.bf16.msra.mxu0 0
      %1144 = vmatpush.bf16.msra.mxu0 0
      %1145 = vmatpush.bf16.msra.mxu0 0
      %1146 = vmatpush.bf16.msra.mxu0 0
      %1147 = vmatpush.bf16.msra.mxu0 0
      %1148 = vmatpush.bf16.msra.mxu0 %v1125
      %1149 = vmatpush.bf16.msra.mxu0 %v1124
      %1150 = vmatmul.bf16.gmra.mxu0 %v1131
      %v1151 = vpop.f32.mrf.mxu0
      %v1152 = vadd.f32 0.0, %v1151
      %v1153 = vpop.f32.mrf.mxu0
      %v1154 = vadd.f32 0.0, %v1153
      %1155 = vmatmul.bf16.gmra.mxu0 %v1134
      %v1156 = vpop.f32.mrf.mxu0
      %v1157 = vadd.f32 0.0, %v1156
      %v1158 = vpop.f32.mrf.mxu0
      %v1159 = vadd.f32 0.0, %v1158
      %1160 = vmatmul.bf16.gmra.mxu0 %v1137
      %v1161 = vpop.f32.mrf.mxu0
      %v1162 = vadd.f32 0.0, %v1161
      %v1163 = vpop.f32.mrf.mxu0
      %v1164 = vadd.f32 0.0, %v1163
      %1165 = vmatmul.bf16.gmra.mxu0 %v1140
      %v1166 = vpop.f32.mrf.mxu0
      %v1167 = vadd.f32 0.0, %v1166
      %v1168 = vpop.f32.mrf.mxu0
      %v1169 = vadd.f32 0.0, %v1168
      %1170 = vdwg.mxu0
      %1171 = vmatpush.bf16.msra.mxu0 0
      %1172 = vmatpush.bf16.msra.mxu0 0
      %1173 = vmatpush.bf16.msra.mxu0 0
      %1174 = vmatpush.bf16.msra.mxu0 0
      %1175 = vmatpush.bf16.msra.mxu0 0
      %1176 = vmatpush.bf16.msra.mxu0 0
      %1177 = vmatpush.bf16.msra.mxu0 %v1122
      %1178 = vmatpush.bf16.msra.mxu0 %v1118
      %1179 = vmatmul.bf16.gmra.mxu0 %v1131
      %v1180 = vpop.f32.mrf.mxu0
      %v1181 = vadd.f32 0.0, %v1180
      %v1182 = vpop.f32.mrf.mxu0
      %v1183 = vadd.f32 0.0, %v1182
      %1184 = vmatmul.bf16.gmra.mxu0 %v1134
      %v1185 = vpop.f32.mrf.mxu0
      %v1186 = vadd.f32 0.0, %v1185
      %v1187 = vpop.f32.mrf.mxu0
      %v1188 = vadd.f32 0.0, %v1187
      %1189 = vmatmul.bf16.gmra.mxu0 %v1137
      %v1190 = vpop.f32.mrf.mxu0
      %v1191 = vadd.f32 0.0, %v1190
      %v1192 = vpop.f32.mrf.mxu0
      %v1193 = vadd.f32 0.0, %v1192
      %1194 = vmatmul.bf16.gmra.mxu0 %v1140
      %v1195 = vpop.f32.mrf.mxu0
      %v1196 = vadd.f32 0.0, %v1195
      %v1197 = vpop.f32.mrf.mxu0
      %v1198 = vadd.f32 0.0, %v1197
      %1199 = vdwg.mxu0
      %v1200 = vadd.f32 %v1070, %v1152
      %v1201 = vadd.f32 %v1071, %v1181
      %v1202 = vadd.f32 %v1072, %v1154
      %v1203 = vadd.f32 %v1073, %v1183
      %v1204 = vadd.f32 %v1074, %v1157
      %v1205 = vadd.f32 %v1075, %v1186
      %v1206 = vadd.f32 %v1076, %v1159
      %v1207 = vadd.f32 %v1077, %v1188
      %v1208 = vadd.f32 %v1078, %v1162
      %v1209 = vadd.f32 %v1079, %v1191
      %v1210 = vadd.f32 %v1080, %v1164
      %v1211 = vadd.f32 %v1081, %v1193
      %v1212 = vadd.f32 %v1082, %v1167
      %v1213 = vadd.f32 %v1083, %v1196
      %v1214 = vadd.f32 %v1084, %v1169
      %v1215 = vadd.f32 %v1085, %v1198
      %s1216 = scalar_lea.vmem %s1, 256
      %v1217 = vld [vmem:[%s1216] sm:$0xf]
      %v1218 = vld [vmem:[%s1216 + $0x4] sm:$0xf]
      %v1219 = vld [vmem:[%s1216 + $0x8] sm:$0xf]
      %v1220 = vld [vmem:[%s1216 + $0xc] sm:$0xf]
      %v1221 = vld [vmem:[%s1216 + $0x10] sm:$0xf]
      %v1222 = vld [vmem:[%s1216 + $0x14] sm:$0xf]
      %v1223 = vld [vmem:[%s1216 + $0x18] sm:$0xf]
      %v1224 = vld [vmem:[%s1216 + $0x1c] sm:$0xf]
      %v1233 = vunpack.c.l.b16 %v1217
      %v1234 = vunpack.c.l.b16 %v1218
      %v1235 = vunpack.c.l.b16 %v1219
      %v1236 = vunpack.c.l.b16 %v1220
      %v1237 = vunpack.c.l.b16 %v1221
      %v1238 = vunpack.c.l.b16 %v1222
      %v1239 = vunpack.c.l.b16 %v1223
      %v1240 = vunpack.c.l.b16 %v1224
      %v1241 = vpack.c.b16 %v1234, %v1233
      %v1242 = vpack.c.b16 %v1236, %v1235
      %v1243 = vpack.c.b16 %v1238, %v1237
      %v1244 = vpack.c.b16 %v1240, %v1239
      %1245 = vrot.lane.b32.xlu0 %v252, 100
      %v1246 = vpop.permute.xlu0 %1245
      %1247 = vrot.lane.b32.xlu0 %v253, 100
      %v1248 = vpop.permute.xlu0 %1247
      %1249 = vrot.lane.b32.xlu0 %v254, 100
      %v1250 = vpop.permute.xlu0 %1249
      %1251 = vrot.lane.b32.xlu0 %v255, 100
      %v1252 = vpop.permute.xlu0 %1251
      %vm1253 = vcmask 818176
      %v1254 = vsel %vm1253, %v1246, %v1248
      %v1255 = vsel %vm1253, %v1250, %v1252
      %v1261 = vsel %vm271, %v1241, 0
      %v1264 = vsel %vm271, %v1242, 0
      %v1267 = vsel %vm271, %v1243, 0
      %v1270 = vsel %vm271, %v1244, 0
      %1272 = vmatpush.bf16.msra.mxu0 0
      %1273 = vmatpush.bf16.msra.mxu0 0
      %1274 = vmatpush.bf16.msra.mxu0 0
      %1275 = vmatpush.bf16.msra.mxu0 0
      %1276 = vmatpush.bf16.msra.mxu0 0
      %1277 = vmatpush.bf16.msra.mxu0 0
      %1278 = vmatpush.bf16.msra.mxu0 %v1255
      %1279 = vmatpush.bf16.msra.mxu0 %v1254
      %1280 = vmatmul.bf16.gmra.mxu0 %v1261
      %v1281 = vpop.f32.mrf.mxu0
      %v1282 = vadd.f32 0.0, %v1281
      %v1283 = vpop.f32.mrf.mxu0
      %v1284 = vadd.f32 0.0, %v1283
      %1285 = vmatmul.bf16.gmra.mxu0 %v1264
      %v1286 = vpop.f32.mrf.mxu0
      %v1287 = vadd.f32 0.0, %v1286
      %v1288 = vpop.f32.mrf.mxu0
      %v1289 = vadd.f32 0.0, %v1288
      %1290 = vmatmul.bf16.gmra.mxu0 %v1267
      %v1291 = vpop.f32.mrf.mxu0
      %v1292 = vadd.f32 0.0, %v1291
      %v1293 = vpop.f32.mrf.mxu0
      %v1294 = vadd.f32 0.0, %v1293
      %1295 = vmatmul.bf16.gmra.mxu0 %v1270
      %v1296 = vpop.f32.mrf.mxu0
      %v1297 = vadd.f32 0.0, %v1296
      %v1298 = vpop.f32.mrf.mxu0
      %v1299 = vadd.f32 0.0, %v1298
      %1300 = vdwg.mxu0
      %1301 = vmatpush.bf16.msra.mxu0 0
      %1302 = vmatpush.bf16.msra.mxu0 0
      %1303 = vmatpush.bf16.msra.mxu0 0
      %1304 = vmatpush.bf16.msra.mxu0 0
      %1305 = vmatpush.bf16.msra.mxu0 0
      %1306 = vmatpush.bf16.msra.mxu0 0
      %1307 = vmatpush.bf16.msra.mxu0 %v1252
      %1308 = vmatpush.bf16.msra.mxu0 %v1248
      %1309 = vmatmul.bf16.gmra.mxu0 %v1261
      %v1310 = vpop.f32.mrf.mxu0
      %v1311 = vadd.f32 0.0, %v1310
      %v1312 = vpop.f32.mrf.mxu0
      %v1313 = vadd.f32 0.0, %v1312
      %1314 = vmatmul.bf16.gmra.mxu0 %v1264
      %v1315 = vpop.f32.mrf.mxu0
      %v1316 = vadd.f32 0.0, %v1315
      %v1317 = vpop.f32.mrf.mxu0
      %v1318 = vadd.f32 0.0, %v1317
      %1319 = vmatmul.bf16.gmra.mxu0 %v1267
      %v1320 = vpop.f32.mrf.mxu0
      %v1321 = vadd.f32 0.0, %v1320
      %v1322 = vpop.f32.mrf.mxu0
      %v1323 = vadd.f32 0.0, %v1322
      %1324 = vmatmul.bf16.gmra.mxu0 %v1270
      %v1325 = vpop.f32.mrf.mxu0
      %v1326 = vadd.f32 0.0, %v1325
      %v1327 = vpop.f32.mrf.mxu0
      %v1328 = vadd.f32 0.0, %v1327
      %1329 = vdwg.mxu0
      %v1330 = vadd.f32 %v1200, %v1282
      %v1331 = vadd.f32 %v1201, %v1311
      %v1332 = vadd.f32 %v1202, %v1284
      %v1333 = vadd.f32 %v1203, %v1313
      %v1334 = vadd.f32 %v1204, %v1287
      %v1335 = vadd.f32 %v1205, %v1316
      %v1336 = vadd.f32 %v1206, %v1289
      %v1337 = vadd.f32 %v1207, %v1318
      %v1338 = vadd.f32 %v1208, %v1292
      %v1339 = vadd.f32 %v1209, %v1321
      %v1340 = vadd.f32 %v1210, %v1294
      %v1341 = vadd.f32 %v1211, %v1323
      %v1342 = vadd.f32 %v1212, %v1297
      %v1343 = vadd.f32 %v1213, %v1326
      %v1344 = vadd.f32 %v1214, %v1299
      %v1345 = vadd.f32 %v1215, %v1328
      %v1346 = vld [vmem:[%s2] sm:$0xff]
      %v1347 = vld [vmem:[%s2 + $0x8] sm:$0xff]
      %v1348 = vld [vmem:[%s2 + $0x10] sm:$0xff]
      %v1349 = vld [vmem:[%s2 + $0x18] sm:$0xff]
      %v1350 = vld [vmem:[%s2 + $0x20] sm:$0xff]
      %v1351 = vld [vmem:[%s2 + $0x28] sm:$0xff]
      %v1352 = vld [vmem:[%s2 + $0x30] sm:$0xff]
      %v1353 = vld [vmem:[%s2 + $0x38] sm:$0xff]
      %1355 = vset.pattern.permute.xlu0 0
      %1356 = vperm.xlu0 %1355, %v1346
      %v1357 = vpop.permute.xlu0 %1356
      %1360 = vset.pattern.permute.xlu0 0
      %1361 = vperm.xlu0 %1360, %v1347
      %v1362 = vpop.permute.xlu0 %1361
      %1365 = vset.pattern.permute.xlu0 0
      %1366 = vperm.xlu0 %1365, %v1348
      %v1367 = vpop.permute.xlu0 %1366
      %1370 = vset.pattern.permute.xlu0 0
      %1371 = vperm.xlu0 %1370, %v1349
      %v1372 = vpop.permute.xlu0 %1371
      %1375 = vset.pattern.permute.xlu0 0
      %1376 = vperm.xlu0 %1375, %v1350
      %v1377 = vpop.permute.xlu0 %1376
      %1380 = vset.pattern.permute.xlu0 0
      %1381 = vperm.xlu0 %1380, %v1351
      %v1382 = vpop.permute.xlu0 %1381
      %1385 = vset.pattern.permute.xlu0 0
      %1386 = vperm.xlu0 %1385, %v1352
      %v1387 = vpop.permute.xlu0 %1386
      %1390 = vset.pattern.permute.xlu0 0
      %1391 = vperm.xlu0 %1390, %v1353
      %v1392 = vpop.permute.xlu0 %1391
      %v1394 = vadd.f32 %v1330, %v1357
      %v1395 = vadd.f32 %v1331, %v1357
      %v1396 = vadd.f32 %v1332, %v1362
      %v1397 = vadd.f32 %v1333, %v1362
      %v1398 = vadd.f32 %v1334, %v1367
      %v1399 = vadd.f32 %v1335, %v1367
      %v1400 = vadd.f32 %v1336, %v1372
      %v1401 = vadd.f32 %v1337, %v1372
      %v1402 = vadd.f32 %v1338, %v1377
      %v1403 = vadd.f32 %v1339, %v1377
      %v1404 = vadd.f32 %v1340, %v1382
      %v1405 = vadd.f32 %v1341, %v1382
      %v1406 = vadd.f32 %v1342, %v1387
      %v1407 = vadd.f32 %v1343, %v1387
      %v1408 = vadd.f32 %v1344, %v1392
      %v1409 = vadd.f32 %v1345, %v1392
      %v1410 = vmax.f32 %v1394, 0.0
      %v1411 = vmax.f32 %v1395, 0.0
      %v1412 = vmax.f32 %v1396, 0.0
      %v1413 = vmax.f32 %v1397, 0.0
      %v1414 = vmax.f32 %v1398, 0.0
      %v1415 = vmax.f32 %v1399, 0.0
      %v1416 = vmax.f32 %v1400, 0.0
      %v1417 = vmax.f32 %v1401, 0.0
      %v1418 = vmax.f32 %v1402, 0.0
      %v1419 = vmax.f32 %v1403, 0.0
      %v1420 = vmax.f32 %v1404, 0.0
      %v1421 = vmax.f32 %v1405, 0.0
      %v1422 = vmax.f32 %v1406, 0.0
      %v1423 = vmax.f32 %v1407, 0.0
      %v1424 = vmax.f32 %v1408, 0.0
      %v1425 = vmax.f32 %v1409, 0.0
      %1442 = vrot.lane.b32.xlu0 %v1410, 127
      %v1443 = vpop.permute.xlu0 %1442
      %1444 = vrot.lane.b32.xlu0 %v1411, 127
      %v1445 = vpop.permute.xlu0 %1444
      %1446 = vrot.lane.b32.xlu0 %v1412, 127
      %v1447 = vpop.permute.xlu0 %1446
      %1448 = vrot.lane.b32.xlu0 %v1413, 127
      %v1449 = vpop.permute.xlu0 %1448
      %1450 = vrot.lane.b32.xlu0 %v1414, 127
      %v1451 = vpop.permute.xlu0 %1450
      %1452 = vrot.lane.b32.xlu0 %v1415, 127
      %v1453 = vpop.permute.xlu0 %1452
      %1454 = vrot.lane.b32.xlu0 %v1416, 127
      %v1455 = vpop.permute.xlu0 %1454
      %1456 = vrot.lane.b32.xlu0 %v1417, 127
      %v1457 = vpop.permute.xlu0 %1456
      %1458 = vrot.lane.b32.xlu0 %v1418, 127
      %v1459 = vpop.permute.xlu0 %1458
      %1460 = vrot.lane.b32.xlu0 %v1419, 127
      %v1461 = vpop.permute.xlu0 %1460
      %1462 = vrot.lane.b32.xlu0 %v1420, 127
      %v1463 = vpop.permute.xlu0 %1462
      %1464 = vrot.lane.b32.xlu0 %v1421, 127
      %v1465 = vpop.permute.xlu0 %1464
      %1466 = vrot.lane.b32.xlu0 %v1422, 127
      %v1467 = vpop.permute.xlu0 %1466
      %1468 = vrot.lane.b32.xlu0 %v1423, 127
      %v1469 = vpop.permute.xlu0 %1468
      %1470 = vrot.lane.b32.xlu0 %v1424, 127
      %v1471 = vpop.permute.xlu0 %1470
      %1472 = vrot.lane.b32.xlu0 %v1425, 127
      %v1473 = vpop.permute.xlu0 %1472
      %vm1474 = vcmask 1039360
      %v1475 = vsel %vm1474, %v1443, %v1445
      %v1476 = vsel %vm1474, %v1447, %v1449
      %v1477 = vsel %vm1474, %v1451, %v1453
      %v1478 = vsel %vm1474, %v1455, %v1457
      %v1479 = vsel %vm1474, %v1459, %v1461
      %v1480 = vsel %vm1474, %v1463, %v1465
      %v1481 = vsel %vm1474, %v1467, %v1469
      %v1482 = vsel %vm1474, %v1471, %v1473
      %v1499 = vmax.f32 %v1410, %v1475
      %v1500 = vmax.f32 %v1411, %v1445
      %v1501 = vmax.f32 %v1412, %v1476
      %v1502 = vmax.f32 %v1413, %v1449
      %v1503 = vmax.f32 %v1414, %v1477
      %v1504 = vmax.f32 %v1415, %v1453
      %v1505 = vmax.f32 %v1416, %v1478
      %v1506 = vmax.f32 %v1417, %v1457
      %v1507 = vmax.f32 %v1418, %v1479
      %v1508 = vmax.f32 %v1419, %v1461
      %v1509 = vmax.f32 %v1420, %v1480
      %v1510 = vmax.f32 %v1421, %v1465
      %v1511 = vmax.f32 %v1422, %v1481
      %v1512 = vmax.f32 %v1423, %v1469
      %v1513 = vmax.f32 %v1424, %v1482
      %v1514 = vmax.f32 %v1425, %v1473
      %1531 = vrot.lane.b32.xlu0 %v1499, 115
      %v1532 = vpop.permute.xlu0 %1531
      %1533 = vrot.lane.b32.xlu0 %v1500, 115
      %v1534 = vpop.permute.xlu0 %1533
      %1535 = vrot.lane.b32.xlu0 %v1501, 115
      %v1536 = vpop.permute.xlu0 %1535
      %1537 = vrot.lane.b32.xlu0 %v1502, 115
      %v1538 = vpop.permute.xlu0 %1537
      %1539 = vrot.lane.b32.xlu0 %v1503, 115
      %v1540 = vpop.permute.xlu0 %1539
      %1541 = vrot.lane.b32.xlu0 %v1504, 115
      %v1542 = vpop.permute.xlu0 %1541
      %1543 = vrot.lane.b32.xlu0 %v1505, 115
      %v1544 = vpop.permute.xlu0 %1543
      %1545 = vrot.lane.b32.xlu0 %v1506, 115
      %v1546 = vpop.permute.xlu0 %1545
      %1547 = vrot.lane.b32.xlu0 %v1507, 115
      %v1548 = vpop.permute.xlu0 %1547
      %1549 = vrot.lane.b32.xlu0 %v1508, 115
      %v1550 = vpop.permute.xlu0 %1549
      %1551 = vrot.lane.b32.xlu0 %v1509, 115
      %v1552 = vpop.permute.xlu0 %1551
      %1553 = vrot.lane.b32.xlu0 %v1510, 115
      %v1554 = vpop.permute.xlu0 %1553
      %1555 = vrot.lane.b32.xlu0 %v1511, 115
      %v1556 = vpop.permute.xlu0 %1555
      %1557 = vrot.lane.b32.xlu0 %v1512, 115
      %v1558 = vpop.permute.xlu0 %1557
      %1559 = vrot.lane.b32.xlu0 %v1513, 115
      %v1560 = vpop.permute.xlu0 %1559
      %1561 = vrot.lane.b32.xlu0 %v1514, 115
      %v1562 = vpop.permute.xlu0 %1561
      %vm1563 = vcmask 941056
      %v1564 = vsel %vm1563, %v1532, %v1534
      %v1565 = vsel %vm1563, %v1536, %v1538
      %v1566 = vsel %vm1563, %v1540, %v1542
      %v1567 = vsel %vm1563, %v1544, %v1546
      %v1568 = vsel %vm1563, %v1548, %v1550
      %v1569 = vsel %vm1563, %v1552, %v1554
      %v1570 = vsel %vm1563, %v1556, %v1558
      %v1571 = vsel %vm1563, %v1560, %v1562
      %v1588 = vmax.f32 %v1499, %v1564
      %v1589 = vmax.f32 %v1500, %v1534
      %v1590 = vmax.f32 %v1501, %v1565
      %v1591 = vmax.f32 %v1502, %v1538
      %v1592 = vmax.f32 %v1503, %v1566
      %v1593 = vmax.f32 %v1504, %v1542
      %v1594 = vmax.f32 %v1505, %v1567
      %v1595 = vmax.f32 %v1506, %v1546
      %v1596 = vmax.f32 %v1507, %v1568
      %v1597 = vmax.f32 %v1508, %v1550
      %v1598 = vmax.f32 %v1509, %v1569
      %v1599 = vmax.f32 %v1510, %v1554
      %v1600 = vmax.f32 %v1511, %v1570
      %v1601 = vmax.f32 %v1512, %v1558
      %v1602 = vmax.f32 %v1513, %v1571
      %v1603 = vmax.f32 %v1514, %v1562
      %v1604 = vpack.c.bf16 %v1590, %v1588
      %v1605 = vpack.c.bf16 %v1591, %v1589
      %v1606 = vpack.c.bf16 %v1594, %v1592
      %v1607 = vpack.c.bf16 %v1595, %v1593
      %v1608 = vpack.c.bf16 %v1598, %v1596
      %v1609 = vpack.c.bf16 %v1599, %v1597
      %v1610 = vpack.c.bf16 %v1602, %v1600
      %v1611 = vpack.c.bf16 %v1603, %v1601
      %v1612 = vld [vmem:[%s3] sm:$0xf]
      %v1613 = vld [vmem:[%s3 + $0x4] sm:$0xf]
      %v1614 = vld [vmem:[%s3 + $0x8] sm:$0xf]
      %v1615 = vld [vmem:[%s3 + $0xc] sm:$0xf]
      %v1616 = vld [vmem:[%s3 + $0x10] sm:$0xf]
      %v1617 = vld [vmem:[%s3 + $0x14] sm:$0xf]
      %v1618 = vld [vmem:[%s3 + $0x18] sm:$0xf]
      %v1619 = vld [vmem:[%s3 + $0x1c] sm:$0xf]
      %v1620 = vld [vmem:[%s3 + $0x20] sm:$0xf]
      %v1621 = vld [vmem:[%s3 + $0x24] sm:$0xf]
      %v1622 = vld [vmem:[%s3 + $0x28] sm:$0xf]
      %v1623 = vld [vmem:[%s3 + $0x2c] sm:$0xf]
      %v1624 = vld [vmem:[%s3 + $0x30] sm:$0xf]
      %v1625 = vld [vmem:[%s3 + $0x34] sm:$0xf]
      %v1626 = vld [vmem:[%s3 + $0x38] sm:$0xf]
      %v1627 = vld [vmem:[%s3 + $0x3c] sm:$0xf]
      %v1628 = vld [vmem:[%s3 + $0x40] sm:$0x1]
      %v1646 = vunpack.c.l.b16 %v1612
      %v1647 = vunpack.c.l.b16 %v1613
      %v1648 = vunpack.c.l.b16 %v1614
      %v1649 = vunpack.c.l.b16 %v1615
      %v1650 = vunpack.c.l.b16 %v1616
      %v1651 = vunpack.c.l.b16 %v1617
      %v1652 = vunpack.c.l.b16 %v1618
      %v1653 = vunpack.c.l.b16 %v1619
      %v1654 = vunpack.c.l.b16 %v1620
      %v1655 = vunpack.c.l.b16 %v1621
      %v1656 = vunpack.c.l.b16 %v1622
      %v1657 = vunpack.c.l.b16 %v1623
      %v1658 = vunpack.c.l.b16 %v1624
      %v1659 = vunpack.c.l.b16 %v1625
      %v1660 = vunpack.c.l.b16 %v1626
      %v1661 = vunpack.c.l.b16 %v1627
      %v1662 = vunpack.c.l.b16 %v1628
      %v1663 = vpack.c.b16 %v1647, %v1646
      %v1664 = vpack.c.b16 %v1649, %v1648
      %v1665 = vpack.c.b16 %v1651, %v1650
      %v1666 = vpack.c.b16 %v1653, %v1652
      %v1667 = vpack.c.b16 %v1655, %v1654
      %v1668 = vpack.c.b16 %v1657, %v1656
      %v1669 = vpack.c.b16 %v1659, %v1658
      %v1670 = vpack.c.b16 %v1661, %v1660
      %v1671 = vpack.c.b16 %v1662, %v1662
      %vm1680 = vcmask 7168
      %v1682 = vsel %vm1680, %v1605, 0
      %v1685 = vsel %vm1680, %v1607, 0
      %v1688 = vsel %vm1680, %v1609, 0
      %v1691 = vsel %vm1680, %v1611, 0
      %vm1693 = vcmask 1040384
      %v1694 = vsel 0, 4294967295, 65535
      %v1695 = vsel %vm1693, %v1694, 0
      %v1697 = vand.u32 %v1671, %v1695
      %1699 = vmatpush.bf16.msra.mxu0 %v1670
      %1700 = vmatpush.bf16.msra.mxu0 %v1669
      %1701 = vmatpush.bf16.msra.mxu0 %v1668
      %1702 = vmatpush.bf16.msra.mxu0 %v1667
      %1703 = vmatpush.bf16.msra.mxu0 %v1666
      %1704 = vmatpush.bf16.msra.mxu0 %v1665
      %1705 = vmatpush.bf16.msra.mxu0 %v1664
      %1706 = vmatpush.bf16.msra.mxu0 %v1663
      %1707 = vmatmul.bf16.gmra.mxu0 %v1604
      %v1708 = vpop.f32.mrf.mxu0
      %v1709 = vadd.f32 0.0, %v1708
      %v1710 = vpop.f32.mrf.mxu0
      %v1711 = vadd.f32 0.0, %v1710
      %1712 = vmatmul.bf16.gmra.mxu0 %v1606
      %v1713 = vpop.f32.mrf.mxu0
      %v1714 = vadd.f32 0.0, %v1713
      %v1715 = vpop.f32.mrf.mxu0
      %v1716 = vadd.f32 0.0, %v1715
      %1717 = vmatmul.bf16.gmra.mxu0 %v1608
      %v1718 = vpop.f32.mrf.mxu0
      %v1719 = vadd.f32 0.0, %v1718
      %v1720 = vpop.f32.mrf.mxu0
      %v1721 = vadd.f32 0.0, %v1720
      %1722 = vmatmul.bf16.gmra.mxu0 %v1610
      %v1723 = vpop.f32.mrf.mxu0
      %v1724 = vadd.f32 0.0, %v1723
      %v1725 = vpop.f32.mrf.mxu0
      %v1726 = vadd.f32 0.0, %v1725
      %1727 = vdwg.mxu0
      %1728 = vmatpush.bf16.msra.mxu0 0
      %1729 = vmatpush.bf16.msra.mxu0 0
      %1730 = vmatpush.bf16.msra.mxu0 0
      %1731 = vmatpush.bf16.msra.mxu0 0
      %1732 = vmatpush.bf16.msra.mxu0 0
      %1733 = vmatpush.bf16.msra.mxu0 0
      %1734 = vmatpush.bf16.msra.mxu0 0
      %1735 = vmatpush.bf16.msra.mxu0 %v1697
      %1736 = vmatmul.bf16.gmra.mxu0 %v1682
      %v1737 = vpop.f32.mrf.mxu0
      %v1738 = vadd.f32 %v1709, %v1737
      %v1739 = vpop.f32.mrf.mxu0
      %v1740 = vadd.f32 %v1711, %v1739
      %1741 = vmatmul.bf16.gmra.mxu0 %v1685
      %v1742 = vpop.f32.mrf.mxu0
      %v1743 = vadd.f32 %v1714, %v1742
      %v1744 = vpop.f32.mrf.mxu0
      %v1745 = vadd.f32 %v1716, %v1744
      %1746 = vmatmul.bf16.gmra.mxu0 %v1688
      %v1747 = vpop.f32.mrf.mxu0
      %v1748 = vadd.f32 %v1719, %v1747
      %v1749 = vpop.f32.mrf.mxu0
      %v1750 = vadd.f32 %v1721, %v1749
      %1751 = vmatmul.bf16.gmra.mxu0 %v1691
      %v1752 = vpop.f32.mrf.mxu0
      %v1753 = vadd.f32 %v1724, %v1752
      %v1754 = vpop.f32.mrf.mxu0
      %v1755 = vadd.f32 %v1726, %v1754
      %1756 = vdwg.mxu0
      %v1757 = vpack.c.bf16 %v1738, %v1738
      %v1758 = vpack.c.bf16 %v1740, %v1740
      %v1759 = vpack.c.bf16 %v1743, %v1743
      %v1760 = vpack.c.bf16 %v1745, %v1745
      %v1761 = vpack.c.bf16 %v1748, %v1748
      %v1762 = vpack.c.bf16 %v1750, %v1750
      %v1763 = vpack.c.bf16 %v1753, %v1753
      %v1764 = vpack.c.bf16 %v1755, %v1755
      %vm1765 = vcmask 199680
      %1766 = vst.msk [vmem:[%s197] sm:$0xf] %vm1765, %v1757
      %1767 = vst.msk [vmem:[%s197 + $0x4] sm:$0xf] %vm1765, %v1758
      %1768 = vst.msk [vmem:[%s197 + $0x8] sm:$0xf] %vm1765, %v1759
      %1769 = vst.msk [vmem:[%s197 + $0xc] sm:$0xf] %vm1765, %v1760
      %1770 = vst.msk [vmem:[%s197 + $0x10] sm:$0xf] %vm1765, %v1761
      %1771 = vst.msk [vmem:[%s197 + $0x14] sm:$0xf] %vm1765, %v1762
      %1772 = vst.msk [vmem:[%s197 + $0x18] sm:$0xf] %vm1765, %v1763
      %1773 = vst.msk [vmem:[%s197 + $0x1c] sm:$0xf] %vm1765, %v1764
      %p1774 = scmp.lt.s32.totalorder %s15, 1
      %s1775 = scalar_select %p1774, %s15, 1
      %s1776 = smul.addr %s1775, 8
      %s1777 = smul.addr %s1776, 4
      %s1778 = scalar_lea.vmem %s4, %s1777
      // Predicated region
      $region37: #{letter_cnn_forward.4} parent=35 // pred_check
        %p1779 = pneg %p122
      $region38: #{letter_cnn_forward.4} parent=35 // pred_check_branch
        %1781 = sbr.rel (%p1779) target = $region40
      $region39: #{letter_cnn_forward.4} parent=35 // pred_region
        _
      $region40: #{letter_cnn_forward.4} parent=35 // pred_fallthru
        _
    $region36: #{letter_cnn_forward.4} parent=5 // pred_fallthru
      _
    %p1782 = scmp.le.s32.totalorder 2, %s10
    // Predicated region
    $region41: #{letter_cnn_forward.4} parent=5 // pred_check
      %p1783 = pneg %p1782
    $region42: #{letter_cnn_forward.4} parent=5 // pred_check_branch
      %1785 = sbr.rel (%p1783) target = $region44
    $region43: #{letter_cnn_forward.4} parent=5 // pred_region
      %s1786 = ssub.s32 %s10, 2
      // Predicated region
      $region45: #{letter_cnn_forward.4} parent=43 // pred_check
        %p1787 = pneg %p128
      $region46: #{letter_cnn_forward.4} parent=43 // pred_check_branch
        %1789 = sbr.rel (%p1787) target = $region48
      $region47: #{letter_cnn_forward.4} parent=43 // pred_region
        %p1790 = scmp.lt.s32.totalorder %s16, 1
        %s1791 = scalar_select %p1790, %s16, 1
        %s1792 = smul.addr %s1791, 8
        %s1793 = smul.addr %s1792, 4
        %s1794 = scalar_lea.vmem %s4, %s1793
      $region48: #{letter_cnn_forward.4} parent=43 // pred_fallthru
        _
    $region44: #{letter_cnn_forward.4} parent=5 // pred_fallthru
      _
  $region6: #{letter_cnn_forward.4} parent=0 // loop_footer
    %s14 = sadd.s32 1, %s10
  $region7: #{letter_cnn_forward.4} parent=0 // loop_footer_branch
    %9 = sbr.rel target = $region3
  $region8: #{letter_cnn_forward.4} parent=0 // loop_exit
    _

// kernel: letter_cnn_forward.3
$region0: #{letter_cnn_forward.3}
  #allocation0 [shape = 'u32[]', space=smem, size = 0x4, offset = 0x4, fixed_abs, tag = 'smem constant byte address 0x4 - core index']
  #allocation1 [shape = 'u32[72,128]{1,0:T(1,128)}', space=vmem, size = 0x9000, scoped, tag = 'internal scratch']
  %s0 = inlined_call_operand.vmem [shape: f32[2,1,786], index: 0, kind: input, shape index: {}]
  %s1 = inlined_call_operand.vmem [shape: f32[9,32,1], index: 1, kind: input, shape index: {}]
  %s2 = inlined_call_operand.vmem [shape: f32[32,1], index: 2, kind: input, shape index: {}]
  %s3 = inlined_call_operand.hbm [shape: bf16[699,171], index: 3, kind: input, shape index: {}]
  %s4 = inlined_call_operand.vmem [shape: bf16[2,32,171], index: 4, kind: output, shape index: {}]
  %s5 = sld [smem:[#allocation0]]
  $region53: #{letter_cnn_forward.3} parent=0
    _
  %s7 = ssub.s32 1, %s5
  %s8 = scalar_select 0, %s7, %s5
  $region1: #{letter_cnn_forward.3} parent=0
    #allocation2 [shape = 'u8[360448]{0}', space=vmem, size = 0x58000, scoped, tag = 'input window, operand 3, single buffered']
    #allocation3 [shape = 's32[2]{0}', space=sflag, size = 0x8, scoped, tag = 'scoped memory for letter_cnn_forward.3']
    %9 = vsyncpa [#allocation3], 0
    loop: start=0, step=1, limit=4
    $region2: #{letter_cnn_forward.3} parent=1 // loop_pre_header
      _
    $region3: #{letter_cnn_forward.3} parent=1 // loop_header
      %s11 = sphi 0, %s15
      %p12 = scmp.ge.s32.totalorder %s11, 4
      %s21 = sphi 0, %s23
      %s24 = sphi 0, %s21
      %s25 = sphi 0, %s24
      %s41 = sphi 0, %s25
      %s45 = sphi 0, %s45
      %s47 = sphi 0, %s45
      %s48 = sphi 0, %s47
      %s62 = sphi 0, %s48
      %s66 = sphi 0, %s66
      %s68 = sphi 0, %s66
      %s69 = sphi 0, %s68
      %s83 = sphi 0, %s69
      %s87 = sphi 0, %s87
      %s89 = sphi 0, %s87
      %s90 = sphi 0, %s89
      %s104 = sphi 0, %s90
      %s110 = sphi 0, %s112
      %s113 = sphi 0, %s110
      %s114 = sphi 0, %s113
      %s130 = sphi 0, %s114
    $region4: #{letter_cnn_forward.3} parent=1 // loop_header_branch
      %14 = sbr.rel (%p12) target = $region8
    $region5: #{letter_cnn_forward.3} parent=1 // loop_body
      %s16 = ssub.s32 %s11, 1
      %s17 = ssub.s32 %s11, 2
      %s18 = sadd.s32 %s11, 1
      %s19 = ssub.s32 %s11, %s18
      %p20 = scmp.eq.s32.totalorder %s19, 0
      %s22 = sadd.s32 %s21, 1
      %s23 = scalar_select %p20, %s21, %s22
      %p26 = pneg %p20
      %p27 = scmp.eq.s32.totalorder %s11, 1
      %p28 = por %p26, %p27
      %p29 = scmp.ne.s32.totalorder %s21, %s24
      %p30 = scmp.eq.s32.totalorder %s11, 0
      %p31 = por %p29, %p30
      %p32 = scmp.ne.s32.totalorder %s21, %s24
      %p33 = scmp.eq.s32.totalorder %s16, 1
      %p34 = por %p32, %p33
      %p35 = scmp.ne.s32.totalorder %s24, %s25
      %p36 = scmp.eq.s32.totalorder %s16, 0
      %p37 = por %p35, %p36
      %p38 = scmp.ne.s32.totalorder %s24, %s25
      %p39 = scmp.eq.s32.totalorder %s17, 1
      %p40 = por %p38, %p39
      %p42 = scmp.ne.s32.totalorder %s25, %s41
      %p43 = scmp.eq.s32.totalorder %s17, 0
      %p44 = por %p42, %p43
      %s46 = sadd.s32 %s45, 1
      %p49 = scmp.eq.s32.totalorder %s11, 1
      %p50 = scmp.ne.s32.totalorder %s45, %s47
      %p51 = scmp.eq.s32.totalorder %s11, 0
      %p52 = por %p50, %p51
      %p53 = scmp.ne.s32.totalorder %s45, %s47
      %p54 = scmp.eq.s32.totalorder %s16, 1
      %p55 = por %p53, %p54
      %p56 = scmp.ne.s32.totalorder %s47, %s48
      %p57 = scmp.eq.s32.totalorder %s16, 0
      %p58 = por %p56, %p57
      %p59 = scmp.ne.s32.totalorder %s47, %s48
      %p60 = scmp.eq.s32.totalorder %s17, 1
      %p61 = por %p59, %p60
      %p63 = scmp.ne.s32.totalorder %s48, %s62
      %p64 = scmp.eq.s32.totalorder %s17, 0
      %p65 = por %p63, %p64
      %s67 = sadd.s32 %s66, 1
      %p70 = scmp.eq.s32.totalorder %s11, 1
      %p71 = scmp.ne.s32.totalorder %s66, %s68
      %p72 = scmp.eq.s32.totalorder %s11, 0
      %p73 = por %p71, %p72
      %p74 = scmp.ne.s32.totalorder %s66, %s68
      %p75 = scmp.eq.s32.totalorder %s16, 1
      %p76 = por %p74, %p75
      %p77 = scmp.ne.s32.totalorder %s68, %s69
      %p78 = scmp.eq.s32.totalorder %s16, 0
      %p79 = por %p77, %p78
      %p80 = scmp.ne.s32.totalorder %s68, %s69
      %p81 = scmp.eq.s32.totalorder %s17, 1
      %p82 = por %p80, %p81
      %p84 = scmp.ne.s32.totalorder %s69, %s83
      %p85 = scmp.eq.s32.totalorder %s17, 0
      %p86 = por %p84, %p85
      %s88 = sadd.s32 %s87, 1
      %p91 = scmp.eq.s32.totalorder %s11, 1
      %p92 = scmp.ne.s32.totalorder %s87, %s89
      %p93 = scmp.eq.s32.totalorder %s11, 0
      %p94 = por %p92, %p93
      %p95 = scmp.ne.s32.totalorder %s87, %s89
      %p96 = scmp.eq.s32.totalorder %s16, 1
      %p97 = por %p95, %p96
      %p98 = scmp.ne.s32.totalorder %s89, %s90
      %p99 = scmp.eq.s32.totalorder %s16, 0
      %p100 = por %p98, %p99
      %p101 = scmp.ne.s32.totalorder %s89, %s90
      %p102 = scmp.eq.s32.totalorder %s17, 1
      %p103 = por %p101, %p102
      %p105 = scmp.ne.s32.totalorder %s90, %s104
      %p106 = scmp.eq.s32.totalorder %s17, 0
      %p107 = por %p105, %p106
      %s108 = ssub.s32 %s11, %s18
      %p109 = scmp.eq.s32.totalorder %s108, 0
      %s111 = sadd.s32 %s110, 1
      %s112 = scalar_select %p109, %s110, %s111
      %p115 = pneg %p109
      %p116 = scmp.eq.s32.totalorder %s11, 1
      %p117 = por %p115, %p116
      %p118 = scmp.ne.s32.totalorder %s110, %s113
      %p119 = scmp.eq.s32.totalorder %s11, 0
      %p120 = por %p118, %p119
      %p121 = scmp.ne.s32.totalorder %s110, %s113
      %p122 = scmp.eq.s32.totalorder %s16, 1
      %p123 = por %p121, %p122
      %p124 = scmp.ne.s32.totalorder %s113, %s114
      %p125 = scmp.eq.s32.totalorder %s16, 0
      %p126 = por %p124, %p125
      %p127 = scmp.ne.s32.totalorder %s113, %s114
      %p128 = scmp.eq.s32.totalorder %s17, 1
      %p129 = por %p127, %p128
      %p131 = scmp.ne.s32.totalorder %s114, %s130
      %p132 = scmp.eq.s32.totalorder %s17, 0
      %p133 = por %p131, %p132
      %p134 = scmp.le.s32.totalorder 1, %s11
      %p135 = scmp.lt.s32.totalorder %s11, 3
      %p136 = pnand %p134, %p135
      %p137 = pneg %p136
      // Predicated region
      $region9: #{letter_cnn_forward.3} parent=5 // pred_check
        _
      $region10: #{letter_cnn_forward.3} parent=5 // pred_check_branch
        %139 = sbr.rel (%p136) target = $region12
      $region11: #{letter_cnn_forward.3} parent=5 // pred_region
        %s140 = ssub.s32 %s11, 1
        // Predicated region
        $region13: #{letter_cnn_forward.3} parent=11 // pred_check
          %p141 = pneg %p58
        $region14: #{letter_cnn_forward.3} parent=11 // pred_check_branch
          %143 = sbr.rel (%p141) target = $region16
        $region15: #{letter_cnn_forward.3} parent=11 // pred_region
          _
        $region16: #{letter_cnn_forward.3} parent=11 // pred_fallthru
          _
        // Predicated region
        $region17: #{letter_cnn_forward.3} parent=11 // pred_check
          %p144 = pneg %p79
        $region18: #{letter_cnn_forward.3} parent=11 // pred_check_branch
          %146 = sbr.rel (%p144) target = $region20
        $region19: #{letter_cnn_forward.3} parent=11 // pred_region
          _
        $region20: #{letter_cnn_forward.3} parent=11 // pred_fallthru
          _
        // Predicated region
        $region21: #{letter_cnn_forward.3} parent=11 // pred_check
          %p147 = pneg %p100
        $region22: #{letter_cnn_forward.3} parent=11 // pred_check_branch
          %149 = sbr.rel (%p147) target = $region24
        $region23: #{letter_cnn_forward.3} parent=11 // pred_region
          %151 = vsyncadd [#allocation3], 0
          %s152 = sshll.u32 %s3, 4
          %s153 = int_to_ptr.hbm [resolvable:$true] %s152
          %s154 = sshll.u32 [#allocation2], 4
          %s155 = int_to_ptr.vmem [resolvable:$true] %s154
          %160 = dma.hbm_to_vmem [thread:$0]  %s153, 11264, %s155, [#allocation3], 128, 128, 8
        $region24: #{letter_cnn_forward.3} parent=11 // pred_fallthru
          _
      $region12: #{letter_cnn_forward.3} parent=5 // pred_fallthru
        _
      %p161 = scmp.lt.s32.totalorder %s11, 2
      // Predicated region
      $region25: #{letter_cnn_forward.3} parent=5 // pred_check
        %p162 = pneg %p161
      $region26: #{letter_cnn_forward.3} parent=5 // pred_check_branch
        %164 = sbr.rel (%p162) target = $region28
      $region27: #{letter_cnn_forward.3} parent=5 // pred_region
        // Predicated region
        $region29: #{letter_cnn_forward.3} parent=27 // pred_check
          %p165 = pneg %p31
        $region30: #{letter_cnn_forward.3} parent=27 // pred_check_branch
          %167 = sbr.rel (%p165) target = $region32
        $region31: #{letter_cnn_forward.3} parent=27 // pred_region
          %p168 = scmp.lt.s32.totalorder %s11, 1
          %s169 = scalar_select %p168, %s11, 1
          %s170 = smul.addr %s169, 7
          %s171 = scalar_lea.vmem %s0, %s170
        $region32: #{letter_cnn_forward.3} parent=27 // pred_fallthru
          _
      $region28: #{letter_cnn_forward.3} parent=5 // pred_fallthru
        _
      %p172 = scmp.le.s32.totalorder 1, %s11
      %p173 = scmp.lt.s32.totalorder %s11, 3
      %p174 = pnand %p172, %p173
      %p175 = pneg %p174
      // Predicated region
      $region33: #{letter_cnn_forward.3} parent=5 // pred_check
        _
      $region34: #{letter_cnn_forward.3} parent=5 // pred_check_branch
        %177 = sbr.rel (%p174) target = $region36
      $region35: #{letter_cnn_forward.3} parent=5 // pred_region
        %s178 = ssub.s32 %s11, 1
        // Predicated region
        $region37: #{letter_cnn_forward.3} parent=35 // pred_check
          %p179 = pneg %p100
        $region38: #{letter_cnn_forward.3} parent=35 // pred_check_branch
          %181 = sbr.rel (%p179) target = $region40
        $region39: #{letter_cnn_forward.3} parent=35 // pred_region
          %183 = dma.done [#allocation3], 11264
        $region40: #{letter_cnn_forward.3} parent=35 // pred_fallthru
          _
        %p184 = scmp.lt.s32.totalorder %s16, 1
        %s185 = scalar_select %p184, %s16, 1
        %s186 = smul.addr %s185, 7
        %s187 = scalar_lea.vmem %s0, %s186
        %p188 = pneg %p37
        %p189 = pneg %p34
        %p190 = pneg %p58
        %p191 = pneg %p55
        %p192 = pneg %p79
        %p193 = pneg %p76
        %p194 = pneg %p100
        %p195 = pneg %p97
        %p196 = pneg %p126
        %p197 = pneg %p123
        %p198 = scmp.lt.s32.totalorder %s16, 1
        %s199 = scalar_select %p198, %s16, 1
        %s200 = smul.addr %s199, 8
        %s201 = smul.addr %s200, 4
        %s202 = scalar_lea.vmem %s4, %s201
        %p203 = scmp.lt.s32.totalorder %s16, 1
        %s204 = scalar_select %p203, %s16, 1
        %s205 = smul.addr %s204, 7
        %s206 = scalar_lea.vmem %s0, %s205
        %p207 = scmp.lt.s32.totalorder %s16, 1
        %s208 = scalar_select %p207, %s16, 1
        %s209 = smul.addr %s208, 8
        %s210 = smul.addr %s209, 4
        %s211 = scalar_lea.vmem %s4, %s210
        %v213 = vld [vmem:[%s206] sm:$0x7f]
        %v214 = vld [vmem:[%s1] sm:$0xff]
        %v215 = vld [vmem:[%s1 + $0x8] sm:$0xff]
        %v216 = vld [vmem:[%s1 + $0x10] sm:$0xff]
        %v217 = vld [vmem:[%s1 + $0x18] sm:$0xff]
        %219 = vset.pattern.permute.xlu0 0
        %220 = vperm.xlu0 %219, %v214
        %v221 = vpop.permute.xlu0 %220
        %224 = vset.pattern.permute.xlu0 0
        %225 = vperm.xlu0 %224, %v215
        %v226 = vpop.permute.xlu0 %225
        %229 = vset.pattern.permute.xlu0 0
        %230 = vperm.xlu0 %229, %v216
        %v231 = vpop.permute.xlu0 %230
        %234 = vset.pattern.permute.xlu0 0
        %235 = vperm.xlu0 %234, %v217
        %v236 = vpop.permute.xlu0 %235
        %v239 = vperm.slane %v213, 0
        %v240 = vperm.slane %v213, 1
        %v241 = vperm.slane %v213, 2
        %v242 = vperm.slane %v213, 3
        %v243 = vperm.slane %v213, 4
        %v244 = vperm.slane %v213, 5
        %v251 = vmul.f32 %v221, %v239
        %v252 = vmul.f32 %v221, %v240
        %v253 = vmul.f32 %v221, %v241
        %v254 = vmul.f32 %v221, %v242
        %v255 = vmul.f32 %v221, %v243
        %v256 = vmul.f32 %v221, %v244
        %v257 = vmul.f32 %v226, %v239
        %v258 = vmul.f32 %v226, %v240
        %v259 = vmul.f32 %v226, %v241
        %v260 = vmul.f32 %v226, %v242
        %v261 = vmul.f32 %v226, %v243
        %v262 = vmul.f32 %v226, %v244
        %v263 = vmul.f32 %v231, %v239
        %v264 = vmul.f32 %v231, %v240
        %v265 = vmul.f32 %v231, %v241
        %v266 = vmul.f32 %v231, %v242
        %v267 = vmul.f32 %v231, %v243
        %v268 = vmul.f32 %v231, %v244
        %v269 = vmul.f32 %v236, %v239
        %v270 = vmul.f32 %v236, %v240
        %v271 = vmul.f32 %v236, %v241
        %v272 = vmul.f32 %v236, %v242
        %v273 = vmul.f32 %v236, %v243
        %v274 = vmul.f32 %v236, %v244
        %v275 = vadd.f32 %v251, 0.0
        %v276 = vadd.f32 %v252, 0.0
        %v277 = vadd.f32 %v253, 0.0
        %v278 = vadd.f32 %v254, 0.0
        %v279 = vadd.f32 %v255, 0.0
        %v280 = vadd.f32 %v256, 0.0
        %v281 = vadd.f32 %v257, 0.0
        %v282 = vadd.f32 %v258, 0.0
        %v283 = vadd.f32 %v259, 0.0
        %v284 = vadd.f32 %v260, 0.0
        %v285 = vadd.f32 %v261, 0.0
        %v286 = vadd.f32 %v262, 0.0
        %v287 = vadd.f32 %v263, 0.0
        %v288 = vadd.f32 %v264, 0.0
        %v289 = vadd.f32 %v265, 0.0
        %v290 = vadd.f32 %v266, 0.0
        %v291 = vadd.f32 %v267, 0.0
        %v292 = vadd.f32 %v268, 0.0
        %v293 = vadd.f32 %v269, 0.0
        %v294 = vadd.f32 %v270, 0.0
        %v295 = vadd.f32 %v271, 0.0
        %v296 = vadd.f32 %v272, 0.0
        %v297 = vadd.f32 %v273, 0.0
        %v298 = vadd.f32 %v274, 0.0
        %s299 = scalar_lea.vmem %s1, 32
        %v300 = vld [vmem:[%s299] sm:$0xff]
        %v301 = vld [vmem:[%s299 + $0x8] sm:$0xff]
        %v302 = vld [vmem:[%s299 + $0x10] sm:$0xff]
        %v303 = vld [vmem:[%s299 + $0x18] sm:$0xff]
        %305 = vset.pattern.permute.xlu0 0
        %306 = vperm.xlu0 %305, %v300
        %v307 = vpop.permute.xlu0 %306
        %310 = vset.pattern.permute.xlu0 0
        %311 = vperm.xlu0 %310, %v301
        %v312 = vpop.permute.xlu0 %311
        %315 = vset.pattern.permute.xlu0 0
        %316 = vperm.xlu0 %315, %v302
        %v317 = vpop.permute.xlu0 %316
        %320 = vset.pattern.permute.xlu0 0
        %321 = vperm.xlu0 %320, %v303
        %v322 = vpop.permute.xlu0 %321
        %v324 = vmul.f32 %v307, %v239
        %v325 = vmul.f32 %v307, %v240
        %v326 = vmul.f32 %v307, %v241
        %v327 = vmul.f32 %v307, %v242
        %v328 = vmul.f32 %v307, %v243
        %v329 = vmul.f32 %v307, %v244
        %v330 = vmul.f32 %v312, %v239
        %v331 = vmul.f32 %v312, %v240
        %v332 = vmul.f32 %v312, %v241
        %v333 = vmul.f32 %v312, %v242
        %v334 = vmul.f32 %v312, %v243
        %v335 = vmul.f32 %v312, %v244
        %v336 = vmul.f32 %v317, %v239
        %v337 = vmul.f32 %v317, %v240
        %v338 = vmul.f32 %v317, %v241
        %v339 = vmul.f32 %v317, %v242
        %v340 = vmul.f32 %v317, %v243
        %v341 = vmul.f32 %v317, %v244
        %v342 = vmul.f32 %v322, %v239
        %v343 = vmul.f32 %v322, %v240
        %v344 = vmul.f32 %v322, %v241
        %v345 = vmul.f32 %v322, %v242
        %v346 = vmul.f32 %v322, %v243
        %v347 = vmul.f32 %v322, %v244
        %372 = vrot.lane.b32.xlu0 %v324, 127
        %v373 = vpop.permute.xlu0 %372
        %374 = vrot.lane.b32.xlu0 %v325, 127
        %v375 = vpop.permute.xlu0 %374
        %376 = vrot.lane.b32.xlu0 %v326, 127
        %v377 = vpop.permute.xlu0 %376
        %378 = vrot.lane.b32.xlu0 %v327, 127
        %v379 = vpop.permute.xlu0 %378
        %380 = vrot.lane.b32.xlu0 %v328, 127
        %v381 = vpop.permute.xlu0 %380
        %382 = vrot.lane.b32.xlu0 %v329, 127
        %v383 = vpop.permute.xlu0 %382
        %384 = vrot.lane.b32.xlu0 %v330, 127
        %v385 = vpop.permute.xlu0 %384
        %386 = vrot.lane.b32.xlu0 %v331, 127
        %v387 = vpop.permute.xlu0 %386
        %388 = vrot.lane.b32.xlu0 %v332, 127
        %v389 = vpop.permute.xlu0 %388
        %390 = vrot.lane.b32.xlu0 %v333, 127
        %v391 = vpop.permute.xlu0 %390
        %392 = vrot.lane.b32.xlu0 %v334, 127
        %v393 = vpop.permute.xlu0 %392
        %394 = vrot.lane.b32.xlu0 %v335, 127
        %v395 = vpop.permute.xlu0 %394
        %396 = vrot.lane.b32.xlu0 %v336, 127
        %v397 = vpop.permute.xlu0 %396
        %398 = vrot.lane.b32.xlu0 %v337, 127
        %v399 = vpop.permute.xlu0 %398
        %400 = vrot.lane.b32.xlu0 %v338, 127
        %v401 = vpop.permute.xlu0 %400
        %402 = vrot.lane.b32.xlu0 %v339, 127
        %v403 = vpop.permute.xlu0 %402
        %404 = vrot.lane.b32.xlu0 %v340, 127
        %v405 = vpop.permute.xlu0 %404
        %406 = vrot.lane.b32.xlu0 %v341, 127
        %v407 = vpop.permute.xlu0 %406
        %408 = vrot.lane.b32.xlu0 %v342, 127
        %v409 = vpop.permute.xlu0 %408
        %410 = vrot.lane.b32.xlu0 %v343, 127
        %v411 = vpop.permute.xlu0 %410
        %412 = vrot.lane.b32.xlu0 %v344, 127
        %v413 = vpop.permute.xlu0 %412
        %414 = vrot.lane.b32.xlu0 %v345, 127
        %v415 = vpop.permute.xlu0 %414
        %416 = vrot.lane.b32.xlu0 %v346, 127
        %v417 = vpop.permute.xlu0 %416
        %418 = vrot.lane.b32.xlu0 %v347, 127
        %v419 = vpop.permute.xlu0 %418
        %vm420 = vcmask 1039360
        %v421 = vsel %vm420, %v373, %v375
        %v422 = vsel %vm420, %v375, %v377
        %v423 = vsel %vm420, %v377, %v379
        %v424 = vsel %vm420, %v379, %v381
        %v425 = vsel %vm420, %v381, %v383
        %v426 = vsel %vm420, %v385, %v387
        %v427 = vsel %vm420, %v387, %v389
        %v428 = vsel %vm420, %v389, %v391
        %v429 = vsel %vm420, %v391, %v393
        %v430 = vsel %vm420, %v393, %v395
        %v431 = vsel %vm420, %v397, %v399
        %v432 = vsel %vm420, %v399, %v401
        %v433 = vsel %vm420, %v401, %v403
        %v434 = vsel %vm420, %v403, %v405
        %v435 = vsel %vm420, %v405, %v407
        %v436 = vsel %vm420, %v409, %v411
        %v437 = vsel %vm420, %v411, %v413
        %v438 = vsel %vm420, %v413, %v415
        %v439 = vsel %vm420, %v415, %v417
        %v440 = vsel %vm420, %v417, %v419
        %v465 = vadd.f32 %v275, %v421
        %v466 = vadd.f32 %v276, %v422
        %v467 = vadd.f32 %v277, %v423
        %v468 = vadd.f32 %v278, %v424
        %v469 = vadd.f32 %v279, %v425
        %v470 = vadd.f32 %v280, %v383
        %v471 = vadd.f32 %v281, %v426
        %v472 = vadd.f32 %v282, %v427
        %v473 = vadd.f32 %v283, %v428
        %v474 = vadd.f32 %v284, %v429
        %v475 = vadd.f32 %v285, %v430
        %v476 = vadd.f32 %v286, %v395
        %v477 = vadd.f32 %v287, %v431
        %v478 = vadd.f32 %v288, %v432
        %v479 = vadd.f32 %v289, %v433
        %v480 = vadd.f32 %v290, %v434
        %v481 = vadd.f32 %v291, %v435
        %v482 = vadd.f32 %v292, %v407
        %v483 = vadd.f32 %v293, %v436
        %v484 = vadd.f32 %v294, %v437
        %v485 = vadd.f32 %v295, %v438
        %v486 = vadd.f32 %v296, %v439
        %v487 = vadd.f32 %v297, %v440
        %v488 = vadd.f32 %v298, %v419
        %s489 = scalar_lea.vmem %s1, 64
        %v490 = vld [vmem:[%s489] sm:$0xff]
        %v491 = vld [vmem:[%s489 + $0x8] sm:$0xff]
        %v492 = vld [vmem:[%s489 + $0x10] sm:$0xff]
        %v493 = vld [vmem:[%s489 + $0x18] sm:$0xff]
        %495 = vset.pattern.permute.xlu0 0
        %496 = vperm.xlu0 %495, %v490
        %v497 = vpop.permute.xlu0 %496
        %500 = vset.pattern.permute.xlu0 0
        %501 = vperm.xlu0 %500, %v491
        %v502 = vpop.permute.xlu0 %501
        %505 = vset.pattern.permute.xlu0 0
        %506 = vperm.xlu0 %505, %v492
        %v507 = vpop.permute.xlu0 %506
        %510 = vset.pattern.permute.xlu0 0
        %511 = vperm.xlu0 %510, %v493
        %v512 = vpop.permute.xlu0 %511
        %v514 = vmul.f32 %v497, %v239
        %v515 = vmul.f32 %v497, %v240
        %v516 = vmul.f32 %v497, %v241
        %v517 = vmul.f32 %v497, %v242
        %v518 = vmul.f32 %v497, %v243
        %v519 = vmul.f32 %v497, %v244
        %v520 = vmul.f32 %v502, %v239
        %v521 = vmul.f32 %v502, %v240
        %v522 = vmul.f32 %v502, %v241
        %v523 = vmul.f32 %v502, %v242
        %v524 = vmul.f32 %v502, %v243
        %v525 = vmul.f32 %v502, %v244
        %v526 = vmul.f32 %v507, %v239
        %v527 = vmul.f32 %v507, %v240
        %v528 = vmul.f32 %v507, %v241
        %v529 = vmul.f32 %v507, %v242
        %v530 = vmul.f32 %v507, %v243
        %v531 = vmul.f32 %v507, %v244
        %v532 = vmul.f32 %v512, %v239
        %v533 = vmul.f32 %v512, %v240
        %v534 = vmul.f32 %v512, %v241
        %v535 = vmul.f32 %v512, %v242
        %v536 = vmul.f32 %v512, %v243
        %v537 = vmul.f32 %v512, %v244
        %562 = vrot.lane.b32.xlu0 %v514, 126
        %v563 = vpop.permute.xlu0 %562
        %564 = vrot.lane.b32.xlu0 %v515, 126
        %v565 = vpop.permute.xlu0 %564
        %566 = vrot.lane.b32.xlu0 %v516, 126
        %v567 = vpop.permute.xlu0 %566
        %568 = vrot.lane.b32.xlu0 %v517, 126
        %v569 = vpop.permute.xlu0 %568
        %570 = vrot.lane.b32.xlu0 %v518, 126
        %v571 = vpop.permute.xlu0 %570
        %572 = vrot.lane.b32.xlu0 %v519, 126
        %v573 = vpop.permute.xlu0 %572
        %574 = vrot.lane.b32.xlu0 %v520, 126
        %v575 = vpop.permute.xlu0 %574
        %576 = vrot.lane.b32.xlu0 %v521, 126
        %v577 = vpop.permute.xlu0 %576
        %578 = vrot.lane.b32.xlu0 %v522, 126
        %v579 = vpop.permute.xlu0 %578
        %580 = vrot.lane.b32.xlu0 %v523, 126
        %v581 = vpop.permute.xlu0 %580
        %582 = vrot.lane.b32.xlu0 %v524, 126
        %v583 = vpop.permute.xlu0 %582
        %584 = vrot.lane.b32.xlu0 %v525, 126
        %v585 = vpop.permute.xlu0 %584
        %586 = vrot.lane.b32.xlu0 %v526, 126
        %v587 = vpop.permute.xlu0 %586
        %588 = vrot.lane.b32.xlu0 %v527, 126
        %v589 = vpop.permute.xlu0 %588
        %590 = vrot.lane.b32.xlu0 %v528, 126
        %v591 = vpop.permute.xlu0 %590
        %592 = vrot.lane.b32.xlu0 %v529, 126
        %v593 = vpop.permute.xlu0 %592
        %594 = vrot.lane.b32.xlu0 %v530, 126
        %v595 = vpop.permute.xlu0 %594
        %596 = vrot.lane.b32.xlu0 %v531, 126
        %v597 = vpop.permute.xlu0 %596
        %598 = vrot.lane.b32.xlu0 %v532, 126
        %v599 = vpop.permute.xlu0 %598
        %600 = vrot.lane.b32.xlu0 %v533, 126
        %v601 = vpop.permute.xlu0 %600
        %602 = vrot.lane.b32.xlu0 %v534, 126
        %v603 = vpop.permute.xlu0 %602
        %604 = vrot.lane.b32.xlu0 %v535, 126
        %v605 = vpop.permute.xlu0 %604
        %606 = vrot.lane.b32.xlu0 %v536, 126
        %v607 = vpop.permute.xlu0 %606
        %608 = vrot.lane.b32.xlu0 %v537, 126
        %v609 = vpop.permute.xlu0 %608
        %vm610 = vcmask 1031168
        %v611 = vsel %vm610, %v563, %v565
        %v612 = vsel %vm610, %v565, %v567
        %v613 = vsel %vm610, %v567, %v569
        %v614 = vsel %vm610, %v569, %v571
        %v615 = vsel %vm610, %v571, %v573
        %v616 = vsel %vm610, %v575, %v577
        %v617 = vsel %vm610, %v577, %v579
        %v618 = vsel %vm610, %v579, %v581
        %v619 = vsel %vm610, %v581, %v583
        %v620 = vsel %vm610, %v583, %v585
        %v621 = vsel %vm610, %v587, %v589
        %v622 = vsel %vm610, %v589, %v591
        %v623 = vsel %vm610, %v591, %v593
        %v624 = vsel %vm610, %v593, %v595
        %v625 = vsel %vm610, %v595, %v597
        %v626 = vsel %vm610, %v599, %v601
        %v627 = vsel %vm610, %v601, %v603
        %v628 = vsel %vm610, %v603, %v605
        %v629 = vsel %vm610, %v605, %v607
        %v630 = vsel %vm610, %v607, %v609
        %v655 = vadd.f32 %v465, %v611
        %v656 = vadd.f32 %v466, %v612
        %v657 = vadd.f32 %v467, %v613
        %v658 = vadd.f32 %v468, %v614
        %v659 = vadd.f32 %v469, %v615
        %v660 = vadd.f32 %v470, %v573
        %v661 = vadd.f32 %v471, %v616
        %v662 = vadd.f32 %v472, %v617
        %v663 = vadd.f32 %v473, %v618
        %v664 = vadd.f32 %v474, %v619
        %v665 = vadd.f32 %v475, %v620
        %v666 = vadd.f32 %v476, %v585
        %v667 = vadd.f32 %v477, %v621
        %v668 = vadd.f32 %v478, %v622
        %v669 = vadd.f32 %v479, %v623
        %v670 = vadd.f32 %v480, %v624
        %v671 = vadd.f32 %v481, %v625
        %v672 = vadd.f32 %v482, %v597
        %v673 = vadd.f32 %v483, %v626
        %v674 = vadd.f32 %v484, %v627
        %v675 = vadd.f32 %v485, %v628
        %v676 = vadd.f32 %v486, %v629
        %v677 = vadd.f32 %v487, %v630
        %v678 = vadd.f32 %v488, %v609
        %s679 = scalar_lea.vmem %s1, 96
        %v680 = vld [vmem:[%s679] sm:$0xff]
        %v681 = vld [vmem:[%s679 + $0x8] sm:$0xff]
        %v682 = vld [vmem:[%s679 + $0x10] sm:$0xff]
        %v683 = vld [vmem:[%s679 + $0x18] sm:$0xff]
        %685 = vset.pattern.permute.xlu0 0
        %686 = vperm.xlu0 %685, %v680
        %v687 = vpop.permute.xlu0 %686
        %690 = vset.pattern.permute.xlu0 0
        %691 = vperm.xlu0 %690, %v681
        %v692 = vpop.permute.xlu0 %691
        %695 = vset.pattern.permute.xlu0 0
        %696 = vperm.xlu0 %695, %v682
        %v697 = vpop.permute.xlu0 %696
        %700 = vset.pattern.permute.xlu0 0
        %701 = vperm.xlu0 %700, %v683
        %v702 = vpop.permute.xlu0 %701
        %v704 = vmul.f32 %v687, %v239
        %v705 = vmul.f32 %v687, %v240
        %v706 = vmul.f32 %v687, %v241
        %v707 = vmul.f32 %v687, %v242
        %v708 = vmul.f32 %v687, %v243
        %v709 = vmul.f32 %v687, %v244
        %v710 = vmul.f32 %v692, %v239
        %v711 = vmul.f32 %v692, %v240
        %v712 = vmul.f32 %v692, %v241
        %v713 = vmul.f32 %v692, %v242
        %v714 = vmul.f32 %v692, %v243
        %v715 = vmul.f32 %v692, %v244
        %v716 = vmul.f32 %v697, %v239
        %v717 = vmul.f32 %v697, %v240
        %v718 = vmul.f32 %v697, %v241
        %v719 = vmul.f32 %v697, %v242
        %v720 = vmul.f32 %v697, %v243
        %v721 = vmul.f32 %v697, %v244
        %v722 = vmul.f32 %v702, %v239
        %v723 = vmul.f32 %v702, %v240
        %v724 = vmul.f32 %v702, %v241
        %v725 = vmul.f32 %v702, %v242
        %v726 = vmul.f32 %v702, %v243
        %v727 = vmul.f32 %v702, %v244
        %752 = vrot.lane.b32.xlu0 %v704, 100
        %v753 = vpop.permute.xlu0 %752
        %754 = vrot.lane.b32.xlu0 %v705, 100
        %v755 = vpop.permute.xlu0 %754
        %756 = vrot.lane.b32.xlu0 %v706, 100
        %v757 = vpop.permute.xlu0 %756
        %758 = vrot.lane.b32.xlu0 %v707, 100
        %v759 = vpop.permute.xlu0 %758
        %760 = vrot.lane.b32.xlu0 %v708, 100
        %v761 = vpop.permute.xlu0 %760
        %762 = vrot.lane.b32.xlu0 %v709, 100
        %v763 = vpop.permute.xlu0 %762
        %764 = vrot.lane.b32.xlu0 %v710, 100
        %v765 = vpop.permute.xlu0 %764
        %766 = vrot.lane.b32.xlu0 %v711, 100
        %v767 = vpop.permute.xlu0 %766
        %768 = vrot.lane.b32.xlu0 %v712, 100
        %v769 = vpop.permute.xlu0 %768
        %770 = vrot.lane.b32.xlu0 %v713, 100
        %v771 = vpop.permute.xlu0 %770
        %772 = vrot.lane.b32.xlu0 %v714, 100
        %v773 = vpop.permute.xlu0 %772
        %774 = vrot.lane.b32.xlu0 %v715, 100
        %v775 = vpop.permute.xlu0 %774
        %776 = vrot.lane.b32.xlu0 %v716, 100
        %v777 = vpop.permute.xlu0 %776
        %778 = vrot.lane.b32.xlu0 %v717, 100
        %v779 = vpop.permute.xlu0 %778
        %780 = vrot.lane.b32.xlu0 %v718, 100
        %v781 = vpop.permute.xlu0 %780
        %782 = vrot.lane.b32.xlu0 %v719, 100
        %v783 = vpop.permute.xlu0 %782
        %784 = vrot.lane.b32.xlu0 %v720, 100
        %v785 = vpop.permute.xlu0 %784
        %786 = vrot.lane.b32.xlu0 %v721, 100
        %v787 = vpop.permute.xlu0 %786
        %788 = vrot.lane.b32.xlu0 %v722, 100
        %v789 = vpop.permute.xlu0 %788
        %790 = vrot.lane.b32.xlu0 %v723, 100
        %v791 = vpop.permute.xlu0 %790
        %792 = vrot.lane.b32.xlu0 %v724, 100
        %v793 = vpop.permute.xlu0 %792
        %794 = vrot.lane.b32.xlu0 %v725, 100
        %v795 = vpop.permute.xlu0 %794
        %796 = vrot.lane.b32.xlu0 %v726, 100
        %v797 = vpop.permute.xlu0 %796
        %798 = vrot.lane.b32.xlu0 %v727, 100
        %v799 = vpop.permute.xlu0 %798
        %vm800 = vcmask 818176
        %v801 = vsel %vm800, %v753, %v755
        %v802 = vsel %vm800, %v755, %v757
        %v803 = vsel %vm800, %v757, %v759
        %v804 = vsel %vm800, %v759, %v761
        %v805 = vsel %vm800, %v761, %v763
        %v806 = vsel %vm800, %v765, %v767
        %v807 = vsel %vm800, %v767, %v769
        %v808 = vsel %vm800, %v769, %v771
        %v809 = vsel %vm800, %v771, %v773
        %v810 = vsel %vm800, %v773, %v775
        %v811 = vsel %vm800, %v777, %v779
        %v812 = vsel %vm800, %v779, %v781
        %v813 = vsel %vm800, %v781, %v783
        %v814 = vsel %vm800, %v783, %v785
        %v815 = vsel %vm800, %v785, %v787
        %v816 = vsel %vm800, %v789, %v791
        %v817 = vsel %vm800, %v791, %v793
        %v818 = vsel %vm800, %v793, %v795
        %v819 = vsel %vm800, %v795, %v797
        %v820 = vsel %vm800, %v797, %v799
        %v845 = vadd.f32 %v655, %v801
        %v846 = vadd.f32 %v656, %v802
        %v847 = vadd.f32 %v657, %v803
        %v848 = vadd.f32 %v658, %v804
        %v849 = vadd.f32 %v659, %v805
        %v850 = vadd.f32 %v660, %v763
        %v851 = vadd.f32 %v661, %v806
        %v852 = vadd.f32 %v662, %v807
        %v853 = vadd.f32 %v663, %v808
        %v854 = vadd.f32 %v664, %v809
        %v855 = vadd.f32 %v665, %v810
        %v856 = vadd.f32 %v666, %v775
        %v857 = vadd.f32 %v667, %v811
        %v858 = vadd.f32 %v668, %v812
        %v859 = vadd.f32 %v669, %v813
        %v860 = vadd.f32 %v670, %v814
        %v861 = vadd.f32 %v671, %v815
        %v862 = vadd.f32 %v672, %v787
        %v863 = vadd.f32 %v673, %v816
        %v864 = vadd.f32 %v674, %v817
        %v865 = vadd.f32 %v675, %v818
        %v866 = vadd.f32 %v676, %v819
        %v867 = vadd.f32 %v677, %v820
        %v868 = vadd.f32 %v678, %v799
        %s869 = scalar_lea.vmem %s1, 128
        %v870 = vld [vmem:[%s869] sm:$0xff]
        %v871 = vld [vmem:[%s869 + $0x8] sm:$0xff]
        %v872 = vld [vmem:[%s869 + $0x10] sm:$0xff]
        %v873 = vld [vmem:[%s869 + $0x18] sm:$0xff]
        %875 = vset.pattern.permute.xlu0 0
        %876 = vperm.xlu0 %875, %v870
        %v877 = vpop.permute.xlu0 %876
        %880 = vset.pattern.permute.xlu0 0
        %881 = vperm.xlu0 %880, %v871
        %v882 = vpop.permute.xlu0 %881
        %885 = vset.pattern.permute.xlu0 0
        %886 = vperm.xlu0 %885, %v872
        %v887 = vpop.permute.xlu0 %886
        %890 = vset.pattern.permute.xlu0 0
        %891 = vperm.xlu0 %890, %v873
        %v892 = vpop.permute.xlu0 %891
        %v894 = vmul.f32 %v877, %v239
        %v895 = vmul.f32 %v877, %v240
        %v896 = vmul.f32 %v877, %v241
        %v897 = vmul.f32 %v877, %v242
        %v898 = vmul.f32 %v877, %v243
        %v899 = vmul.f32 %v877, %v244
        %v900 = vmul.f32 %v882, %v239
        %v901 = vmul.f32 %v882, %v240
        %v902 = vmul.f32 %v882, %v241
        %v903 = vmul.f32 %v882, %v242
        %v904 = vmul.f32 %v882, %v243
        %v905 = vmul.f32 %v882, %v244
        %v906 = vmul.f32 %v887, %v239
        %v907 = vmul.f32 %v887, %v240
        %v908 = vmul.f32 %v887, %v241
        %v909 = vmul.f32 %v887, %v242
        %v910 = vmul.f32 %v887, %v243
        %v911 = vmul.f32 %v887, %v244
        %v912 = vmul.f32 %v892, %v239
        %v913 = vmul.f32 %v892, %v240
        %v914 = vmul.f32 %v892, %v241
        %v915 = vmul.f32 %v892, %v242
        %v916 = vmul.f32 %v892, %v243
        %v917 = vmul.f32 %v892, %v244
        %942 = vrot.lane.b32.xlu0 %v894, 99
        %v943 = vpop.permute.xlu0 %942
        %944 = vrot.lane.b32.xlu0 %v895, 99
        %v945 = vpop.permute.xlu0 %944
        %946 = vrot.lane.b32.xlu0 %v896, 99
        %v947 = vpop.permute.xlu0 %946
        %948 = vrot.lane.b32.xlu0 %v897, 99
        %v949 = vpop.permute.xlu0 %948
        %950 = vrot.lane.b32.xlu0 %v898, 99
        %v951 = vpop.permute.xlu0 %950
        %952 = vrot.lane.b32.xlu0 %v899, 99
        %v953 = vpop.permute.xlu0 %952
        %954 = vrot.lane.b32.xlu0 %v900, 99
        %v955 = vpop.permute.xlu0 %954
        %956 = vrot.lane.b32.xlu0 %v901, 99
        %v957 = vpop.permute.xlu0 %956
        %958 = vrot.lane.b32.xlu0 %v902, 99
        %v959 = vpop.permute.xlu0 %958
        %960 = vrot.lane.b32.xlu0 %v903, 99
        %v961 = vpop.permute.xlu0 %960
        %962 = vrot.lane.b32.xlu0 %v904, 99
        %v963 = vpop.permute.xlu0 %962
        %964 = vrot.lane.b32.xlu0 %v905, 99
        %v965 = vpop.permute.xlu0 %964
        %966 = vrot.lane.b32.xlu0 %v906, 99
        %v967 = vpop.permute.xlu0 %966
        %968 = vrot.lane.b32.xlu0 %v907, 99
        %v969 = vpop.permute.xlu0 %968
        %970 = vrot.lane.b32.xlu0 %v908, 99
        %v971 = vpop.permute.xlu0 %970
        %972 = vrot.lane.b32.xlu0 %v909, 99
        %v973 = vpop.permute.xlu0 %972
        %974 = vrot.lane.b32.xlu0 %v910, 99
        %v975 = vpop.permute.xlu0 %974
        %976 = vrot.lane.b32.xlu0 %v911, 99
        %v977 = vpop.permute.xlu0 %976
        %978 = vrot.lane.b32.xlu0 %v912, 99
        %v979 = vpop.permute.xlu0 %978
        %980 = vrot.lane.b32.xlu0 %v913, 99
        %v981 = vpop.permute.xlu0 %980
        %982 = vrot.lane.b32.xlu0 %v914, 99
        %v983 = vpop.permute.xlu0 %982
        %984 = vrot.lane.b32.xlu0 %v915, 99
        %v985 = vpop.permute.xlu0 %984
        %986 = vrot.lane.b32.xlu0 %v916, 99
        %v987 = vpop.permute.xlu0 %986
        %988 = vrot.lane.b32.xlu0 %v917, 99
        %v989 = vpop.permute.xlu0 %988
        %vm990 = vcmask 809984
        %v991 = vsel %vm990, %v943, %v945
        %v992 = vsel %vm990, %v945, %v947
        %v993 = vsel %vm990, %v947, %v949
        %v994 = vsel %vm990, %v949, %v951
        %v995 = vsel %vm990, %v951, %v953
        %v996 = vsel %vm990, %v955, %v957
        %v997 = vsel %vm990, %v957, %v959
        %v998 = vsel %vm990, %v959, %v961
        %v999 = vsel %vm990, %v961, %v963
        %v1000 = vsel %vm990, %v963, %v965
        %v1001 = vsel %vm990, %v967, %v969
        %v1002 = vsel %vm990, %v969, %v971
        %v1003 = vsel %vm990, %v971, %v973
        %v1004 = vsel %vm990, %v973, %v975
        %v1005 = vsel %vm990, %v975, %v977
        %v1006 = vsel %vm990, %v979, %v981
        %v1007 = vsel %vm990, %v981, %v983
        %v1008 = vsel %vm990, %v983, %v985
        %v1009 = vsel %vm990, %v985, %v987
        %v1010 = vsel %vm990, %v987, %v989
        %v1035 = vadd.f32 %v845, %v991
        %v1036 = vadd.f32 %v846, %v992
        %v1037 = vadd.f32 %v847, %v993
        %v1038 = vadd.f32 %v848, %v994
        %v1039 = vadd.f32 %v849, %v995
        %v1040 = vadd.f32 %v850, %v953
        %v1041 = vadd.f32 %v851, %v996
        %v1042 = vadd.f32 %v852, %v997
        %v1043 = vadd.f32 %v853, %v998
        %v1044 = vadd.f32 %v854, %v999
        %v1045 = vadd.f32 %v855, %v1000
        %v1046 = vadd.f32 %v856, %v965
        %v1047 = vadd.f32 %v857, %v1001
        %v1048 = vadd.f32 %v858, %v1002
        %v1049 = vadd.f32 %v859, %v1003
        %v1050 = vadd.f32 %v860, %v1004
        %v1051 = vadd.f32 %v861, %v1005
        %v1052 = vadd.f32 %v862, %v977
        %v1053 = vadd.f32 %v863, %v1006
        %v1054 = vadd.f32 %v864, %v1007
        %v1055 = vadd.f32 %v865, %v1008
        %v1056 = vadd.f32 %v866, %v1009
        %v1057 = vadd.f32 %v867, %v1010
        %v1058 = vadd.f32 %v868, %v989
        %s1059 = scalar_lea.vmem %s1, 160
        %v1060 = vld [vmem:[%s1059] sm:$0xff]
        %v1061 = vld [vmem:[%s1059 + $0x8] sm:$0xff]
        %v1062 = vld [vmem:[%s1059 + $0x10] sm:$0xff]
        %v1063 = vld [vmem:[%s1059 + $0x18] sm:$0xff]
        %1065 = vset.pattern.permute.xlu0 0
        %1066 = vperm.xlu0 %1065, %v1060
        %v1067 = vpop.permute.xlu0 %1066
        %1070 = vset.pattern.permute.xlu0 0
        %1071 = vperm.xlu0 %1070, %v1061
        %v1072 = vpop.permute.xlu0 %1071
        %1075 = vset.pattern.permute.xlu0 0
        %1076 = vperm.xlu0 %1075, %v1062
        %v1077 = vpop.permute.xlu0 %1076
        %1080 = vset.pattern.permute.xlu0 0
        %1081 = vperm.xlu0 %1080, %v1063
        %v1082 = vpop.permute.xlu0 %1081
        %v1084 = vmul.f32 %v1067, %v239
        %v1085 = vmul.f32 %v1067, %v240
        %v1086 = vmul.f32 %v1067, %v241
        %v1087 = vmul.f32 %v1067, %v242
        %v1088 = vmul.f32 %v1067, %v243
        %v1089 = vmul.f32 %v1067, %v244
        %v1090 = vmul.f32 %v1072, %v239
        %v1091 = vmul.f32 %v1072, %v240
        %v1092 = vmul.f32 %v1072, %v241
        %v1093 = vmul.f32 %v1072, %v242
        %v1094 = vmul.f32 %v1072, %v243
        %v1095 = vmul.f32 %v1072, %v244
        %v1096 = vmul.f32 %v1077, %v239
        %v1097 = vmul.f32 %v1077, %v240
        %v1098 = vmul.f32 %v1077, %v241
        %v1099 = vmul.f32 %v1077, %v242
        %v1100 = vmul.f32 %v1077, %v243
        %v1101 = vmul.f32 %v1077, %v244
        %v1102 = vmul.f32 %v1082, %v239
        %v1103 = vmul.f32 %v1082, %v240
        %v1104 = vmul.f32 %v1082, %v241
        %v1105 = vmul.f32 %v1082, %v242
        %v1106 = vmul.f32 %v1082, %v243
        %v1107 = vmul.f32 %v1082, %v244
        %1132 = vrot.lane.b32.xlu0 %v1084, 98
        %v1133 = vpop.permute.xlu0 %1132
        %1134 = vrot.lane.b32.xlu0 %v1085, 98
        %v1135 = vpop.permute.xlu0 %1134
        %1136 = vrot.lane.b32.xlu0 %v1086, 98
        %v1137 = vpop.permute.xlu0 %1136
        %1138 = vrot.lane.b32.xlu0 %v1087, 98
        %v1139 = vpop.permute.xlu0 %1138
        %1140 = vrot.lane.b32.xlu0 %v1088, 98
        %v1141 = vpop.permute.xlu0 %1140
        %1142 = vrot.lane.b32.xlu0 %v1089, 98
        %v1143 = vpop.permute.xlu0 %1142
        %1144 = vrot.lane.b32.xlu0 %v1090, 98
        %v1145 = vpop.permute.xlu0 %1144
        %1146 = vrot.lane.b32.xlu0 %v1091, 98
        %v1147 = vpop.permute.xlu0 %1146
        %1148 = vrot.lane.b32.xlu0 %v1092, 98
        %v1149 = vpop.permute.xlu0 %1148
        %1150 = vrot.lane.b32.xlu0 %v1093, 98
        %v1151 = vpop.permute.xlu0 %1150
        %1152 = vrot.lane.b32.xlu0 %v1094, 98
        %v1153 = vpop.permute.xlu0 %1152
        %1154 = vrot.lane.b32.xlu0 %v1095, 98
        %v1155 = vpop.permute.xlu0 %1154
        %1156 = vrot.lane.b32.xlu0 %v1096, 98
        %v1157 = vpop.permute.xlu0 %1156
        %1158 = vrot.lane.b32.xlu0 %v1097, 98
        %v1159 = vpop.permute.xlu0 %1158
        %1160 = vrot.lane.b32.xlu0 %v1098, 98
        %v1161 = vpop.permute.xlu0 %1160
        %1162 = vrot.lane.b32.xlu0 %v1099, 98
        %v1163 = vpop.permute.xlu0 %1162
        %1164 = vrot.lane.b32.xlu0 %v1100, 98
        %v1165 = vpop.permute.xlu0 %1164
        %1166 = vrot.lane.b32.xlu0 %v1101, 98
        %v1167 = vpop.permute.xlu0 %1166
        %1168 = vrot.lane.b32.xlu0 %v1102, 98
        %v1169 = vpop.permute.xlu0 %1168
        %1170 = vrot.lane.b32.xlu0 %v1103, 98
        %v1171 = vpop.permute.xlu0 %1170
        %1172 = vrot.lane.b32.xlu0 %v1104, 98
        %v1173 = vpop.permute.xlu0 %1172
        %1174 = vrot.lane.b32.xlu0 %v1105, 98
        %v1175 = vpop.permute.xlu0 %1174
        %1176 = vrot.lane.b32.xlu0 %v1106, 98
        %v1177 = vpop.permute.xlu0 %1176
        %1178 = vrot.lane.b32.xlu0 %v1107, 98
        %v1179 = vpop.permute.xlu0 %1178
        %vm1180 = vcmask 801792
        %v1181 = vsel %vm1180, %v1133, %v1135
        %v1182 = vsel %vm1180, %v1135, %v1137
        %v1183 = vsel %vm1180, %v1137, %v1139
        %v1184 = vsel %vm1180, %v1139, %v1141
        %v1185 = vsel %vm1180, %v1141, %v1143
        %v1186 = vsel %vm1180, %v1145, %v1147
        %v1187 = vsel %vm1180, %v1147, %v1149
        %v1188 = vsel %vm1180, %v1149, %v1151
        %v1189 = vsel %vm1180, %v1151, %v1153
        %v1190 = vsel %vm1180, %v1153, %v1155
        %v1191 = vsel %vm1180, %v1157, %v1159
        %v1192 = vsel %vm1180, %v1159, %v1161
        %v1193 = vsel %vm1180, %v1161, %v1163
        %v1194 = vsel %vm1180, %v1163, %v1165
        %v1195 = vsel %vm1180, %v1165, %v1167
        %v1196 = vsel %vm1180, %v1169, %v1171
        %v1197 = vsel %vm1180, %v1171, %v1173
        %v1198 = vsel %vm1180, %v1173, %v1175
        %v1199 = vsel %vm1180, %v1175, %v1177
        %v1200 = vsel %vm1180, %v1177, %v1179
        %v1225 = vadd.f32 %v1035, %v1181
        %v1226 = vadd.f32 %v1036, %v1182
        %v1227 = vadd.f32 %v1037, %v1183
        %v1228 = vadd.f32 %v1038, %v1184
        %v1229 = vadd.f32 %v1039, %v1185
        %v1230 = vadd.f32 %v1040, %v1143
        %v1231 = vadd.f32 %v1041, %v1186
        %v1232 = vadd.f32 %v1042, %v1187
        %v1233 = vadd.f32 %v1043, %v1188
        %v1234 = vadd.f32 %v1044, %v1189
        %v1235 = vadd.f32 %v1045, %v1190
        %v1236 = vadd.f32 %v1046, %v1155
        %v1237 = vadd.f32 %v1047, %v1191
        %v1238 = vadd.f32 %v1048, %v1192
        %v1239 = vadd.f32 %v1049, %v1193
        %v1240 = vadd.f32 %v1050, %v1194
        %v1241 = vadd.f32 %v1051, %v1195
        %v1242 = vadd.f32 %v1052, %v1167
        %v1243 = vadd.f32 %v1053, %v1196
        %v1244 = vadd.f32 %v1054, %v1197
        %v1245 = vadd.f32 %v1055, %v1198
        %v1246 = vadd.f32 %v1056, %v1199
        %v1247 = vadd.f32 %v1057, %v1200
        %v1248 = vadd.f32 %v1058, %v1179
        %s1249 = scalar_lea.vmem %s1, 192
        %v1250 = vld [vmem:[%s1249] sm:$0xff]
        %v1251 = vld [vmem:[%s1249 + $0x8] sm:$0xff]
        %v1252 = vld [vmem:[%s1249 + $0x10] sm:$0xff]
        %v1253 = vld [vmem:[%s1249 + $0x18] sm:$0xff]
        %1255 = vset.pattern.permute.xlu0 0
        %1256 = vperm.xlu0 %1255, %v1250
        %v1257 = vpop.permute.xlu0 %1256
        %1260 = vset.pattern.permute.xlu0 0
        %1261 = vperm.xlu0 %1260, %v1251
        %v1262 = vpop.permute.xlu0 %1261
        %1265 = vset.pattern.permute.xlu0 0
        %1266 = vperm.xlu0 %1265, %v1252
        %v1267 = vpop.permute.xlu0 %1266
        %1270 = vset.pattern.permute.xlu0 0
        %1271 = vperm.xlu0 %1270, %v1253
        %v1272 = vpop.permute.xlu0 %1271
        %v1274 = vperm.slane %v213, 6
        %v1276 = vmul.f32 %v1257, %v239
        %v1277 = vmul.f32 %v1257, %v240
        %v1278 = vmul.f32 %v1257, %v241
        %v1279 = vmul.f32 %v1257, %v242
        %v1280 = vmul.f32 %v1257, %v243
        %v1281 = vmul.f32 %v1257, %v244
        %v1282 = vmul.f32 %v1257, %v1274
        %v1283 = vmul.f32 %v1262, %v239
        %v1284 = vmul.f32 %v1262, %v240
        %v1285 = vmul.f32 %v1262, %v241
        %v1286 = vmul.f32 %v1262, %v242
        %v1287 = vmul.f32 %v1262, %v243
        %v1288 = vmul.f32 %v1262, %v244
        %v1289 = vmul.f32 %v1262, %v1274
        %v1290 = vmul.f32 %v1267, %v239
        %v1291 = vmul.f32 %v1267, %v240
        %v1292 = vmul.f32 %v1267, %v241
        %v1293 = vmul.f32 %v1267, %v242
        %v1294 = vmul.f32 %v1267, %v243
        %v1295 = vmul.f32 %v1267, %v244
        %v1296 = vmul.f32 %v1267, %v1274
        %v1297 = vmul.f32 %v1272, %v239
        %v1298 = vmul.f32 %v1272, %v240
        %v1299 = vmul.f32 %v1272, %v241
        %v1300 = vmul.f32 %v1272, %v242
        %v1301 = vmul.f32 %v1272, %v243
        %v1302 = vmul.f32 %v1272, %v244
        %v1303 = vmul.f32 %v1272, %v1274
        %1332 = vrot.lane.b32.xlu0 %v1276, 72
        %v1333 = vpop.permute.xlu0 %1332
        %1334 = vrot.lane.b32.xlu0 %v1277, 72
        %v1335 = vpop.permute.xlu0 %1334
        %1336 = vrot.lane.b32.xlu0 %v1278, 72
        %v1337 = vpop.permute.xlu0 %1336
        %1338 = vrot.lane.b32.xlu0 %v1279, 72
        %v1339 = vpop.permute.xlu0 %1338
        %1340 = vrot.lane.b32.xlu0 %v1280, 72
        %v1341 = vpop.permute.xlu0 %1340
        %1342 = vrot.lane.b32.xlu0 %v1281, 72
        %v1343 = vpop.permute.xlu0 %1342
        %1344 = vrot.lane.b32.xlu0 %v1282, 72
        %v1345 = vpop.permute.xlu0 %1344
        %1346 = vrot.lane.b32.xlu0 %v1283, 72
        %v1347 = vpop.permute.xlu0 %1346
        %1348 = vrot.lane.b32.xlu0 %v1284, 72
        %v1349 = vpop.permute.xlu0 %1348
        %1350 = vrot.lane.b32.xlu0 %v1285, 72
        %v1351 = vpop.permute.xlu0 %1350
        %1352 = vrot.lane.b32.xlu0 %v1286, 72
        %v1353 = vpop.permute.xlu0 %1352
        %1354 = vrot.lane.b32.xlu0 %v1287, 72
        %v1355 = vpop.permute.xlu0 %1354
        %1356 = vrot.lane.b32.xlu0 %v1288, 72
        %v1357 = vpop.permute.xlu0 %1356
        %1358 = vrot.lane.b32.xlu0 %v1289, 72
        %v1359 = vpop.permute.xlu0 %1358
        %1360 = vrot.lane.b32.xlu0 %v1290, 72
        %v1361 = vpop.permute.xlu0 %1360
        %1362 = vrot.lane.b32.xlu0 %v1291, 72
        %v1363 = vpop.permute.xlu0 %1362
        %1364 = vrot.lane.b32.xlu0 %v1292, 72
        %v1365 = vpop.permute.xlu0 %1364
        %1366 = vrot.lane.b32.xlu0 %v1293, 72
        %v1367 = vpop.permute.xlu0 %1366
        %1368 = vrot.lane.b32.xlu0 %v1294, 72
        %v1369 = vpop.permute.xlu0 %1368
        %1370 = vrot.lane.b32.xlu0 %v1295, 72
        %v1371 = vpop.permute.xlu0 %1370
        %1372 = vrot.lane.b32.xlu0 %v1296, 72
        %v1373 = vpop.permute.xlu0 %1372
        %1374 = vrot.lane.b32.xlu0 %v1297, 72
        %v1375 = vpop.permute.xlu0 %1374
        %1376 = vrot.lane.b32.xlu0 %v1298, 72
        %v1377 = vpop.permute.xlu0 %1376
        %1378 = vrot.lane.b32.xlu0 %v1299, 72
        %v1379 = vpop.permute.xlu0 %1378
        %1380 = vrot.lane.b32.xlu0 %v1300, 72
        %v1381 = vpop.permute.xlu0 %1380
        %1382 = vrot.lane.b32.xlu0 %v1301, 72
        %v1383 = vpop.permute.xlu0 %1382
        %1384 = vrot.lane.b32.xlu0 %v1302, 72
        %v1385 = vpop.permute.xlu0 %1384
        %1386 = vrot.lane.b32.xlu0 %v1303, 72
        %v1387 = vpop.permute.xlu0 %1386
        %vm1388 = vcmask 588800
        %v1389 = vsel %vm1388, %v1333, %v1335
        %v1390 = vsel %vm1388, %v1335, %v1337
        %v1391 = vsel %vm1388, %v1337, %v1339
        %v1392 = vsel %vm1388, %v1339, %v1341
        %v1393 = vsel %vm1388, %v1341, %v1343
        %v1394 = vsel %vm1388, %v1343, %v1345
        %v1395 = vsel %vm1388, %v1347, %v1349
        %v1396 = vsel %vm1388, %v1349, %v1351
        %v1397 = vsel %vm1388, %v1351, %v1353
        %v1398 = vsel %vm1388, %v1353, %v1355
        %v1399 = vsel %vm1388, %v1355, %v1357
        %v1400 = vsel %vm1388, %v1357, %v1359
        %v1401 = vsel %vm1388, %v1361, %v1363
        %v1402 = vsel %vm1388, %v1363, %v1365
        %v1403 = vsel %vm1388, %v1365, %v1367
        %v1404 = vsel %vm1388, %v1367, %v1369
        %v1405 = vsel %vm1388, %v1369, %v1371
        %v1406 = vsel %vm1388, %v1371, %v1373
        %v1407 = vsel %vm1388, %v1375, %v1377
        %v1408 = vsel %vm1388, %v1377, %v1379
        %v1409 = vsel %vm1388, %v1379, %v1381
        %v1410 = vsel %vm1388, %v1381, %v1383
        %v1411 = vsel %vm1388, %v1383, %v1385
        %v1412 = vsel %vm1388, %v1385, %v1387
        %v1437 = vadd.f32 %v1225, %v1389
        %v1438 = vadd.f32 %v1226, %v1390
        %v1439 = vadd.f32 %v1227, %v1391
        %v1440 = vadd.f32 %v1228, %v1392
        %v1441 = vadd.f32 %v1229, %v1393
        %v1442 = vadd.f32 %v1230, %v1394
        %v1443 = vadd.f32 %v1231, %v1395
        %v1444 = vadd.f32 %v1232, %v1396
        %v1445 = vadd.f32 %v1233, %v1397
        %v1446 = vadd.f32 %v1234, %v1398
        %v1447 = vadd.f32 %v1235, %v1399
        %v1448 = vadd.f32 %v1236, %v1400
        %v1449 = vadd.f32 %v1237, %v1401
        %v1450 = vadd.f32 %v1238, %v1402
        %v1451 = vadd.f32 %v1239, %v1403
        %v1452 = vadd.f32 %v1240, %v1404
        %v1453 = vadd.f32 %v1241, %v1405
        %v1454 = vadd.f32 %v1242, %v1406
        %v1455 = vadd.f32 %v1243, %v1407
        %v1456 = vadd.f32 %v1244, %v1408
        %v1457 = vadd.f32 %v1245, %v1409
        %v1458 = vadd.f32 %v1246, %v1410
        %v1459 = vadd.f32 %v1247, %v1411
        %v1460 = vadd.f32 %v1248, %v1412
        %s1461 = scalar_lea.vmem %s1, 224
        %v1462 = vld [vmem:[%s1461] sm:$0xff]
        %v1463 = vld [vmem:[%s1461 + $0x8] sm:$0xff]
        %v1464 = vld [vmem:[%s1461 + $0x10] sm:$0xff]
        %v1465 = vld [vmem:[%s1461 + $0x18] sm:$0xff]
        %1467 = vset.pattern.permute.xlu0 0
        %1468 = vperm.xlu0 %1467, %v1462
        %v1469 = vpop.permute.xlu0 %1468
        %1472 = vset.pattern.permute.xlu0 0
        %1473 = vperm.xlu0 %1472, %v1463
        %v1474 = vpop.permute.xlu0 %1473
        %1477 = vset.pattern.permute.xlu0 0
        %1478 = vperm.xlu0 %1477, %v1464
        %v1479 = vpop.permute.xlu0 %1478
        %1482 = vset.pattern.permute.xlu0 0
        %1483 = vperm.xlu0 %1482, %v1465
        %v1484 = vpop.permute.xlu0 %1483
        %v1486 = vmul.f32 %v1469, %v239
        %v1487 = vmul.f32 %v1469, %v240
        %v1488 = vmul.f32 %v1469, %v241
        %v1489 = vmul.f32 %v1469, %v242
        %v1490 = vmul.f32 %v1469, %v243
        %v1491 = vmul.f32 %v1469, %v244
        %v1492 = vmul.f32 %v1469, %v1274
        %v1493 = vmul.f32 %v1474, %v239
        %v1494 = vmul.f32 %v1474, %v240
        %v1495 = vmul.f32 %v1474, %v241
        %v1496 = vmul.f32 %v1474, %v242
        %v1497 = vmul.f32 %v1474, %v243
        %v1498 = vmul.f32 %v1474, %v244
        %v1499 = vmul.f32 %v1474, %v1274
        %v1500 = vmul.f32 %v1479, %v239
        %v1501 = vmul.f32 %v1479, %v240
        %v1502 = vmul.f32 %v1479, %v241
        %v1503 = vmul.f32 %v1479, %v242
        %v1504 = vmul.f32 %v1479, %v243
        %v1505 = vmul.f32 %v1479, %v244
        %v1506 = vmul.f32 %v1479, %v1274
        %v1507 = vmul.f32 %v1484, %v239
        %v1508 = vmul.f32 %v1484, %v240
        %v1509 = vmul.f32 %v1484, %v241
        %v1510 = vmul.f32 %v1484, %v242
        %v1511 = vmul.f32 %v1484, %v243
        %v1512 = vmul.f32 %v1484, %v244
        %v1513 = vmul.f32 %v1484, %v1274
        %1542 = vrot.lane.b32.xlu0 %v1486, 71
        %v1543 = vpop.permute.xlu0 %1542
        %1544 = vrot.lane.b32.xlu0 %v1487, 71
        %v1545 = vpop.permute.xlu0 %1544
        %1546 = vrot.lane.b32.xlu0 %v1488, 71
        %v1547 = vpop.permute.xlu0 %1546
        %1548 = vrot.lane.b32.xlu0 %v1489, 71
        %v1549 = vpop.permute.xlu0 %1548
        %1550 = vrot.lane.b32.xlu0 %v1490, 71
        %v1551 = vpop.permute.xlu0 %1550
        %1552 = vrot.lane.b32.xlu0 %v1491, 71
        %v1553 = vpop.permute.xlu0 %1552
        %1554 = vrot.lane.b32.xlu0 %v1492, 71
        %v1555 = vpop.permute.xlu0 %1554
        %1556 = vrot.lane.b32.xlu0 %v1493, 71
        %v1557 = vpop.permute.xlu0 %1556
        %1558 = vrot.lane.b32.xlu0 %v1494, 71
        %v1559 = vpop.permute.xlu0 %1558
        %1560 = vrot.lane.b32.xlu0 %v1495, 71
        %v1561 = vpop.permute.xlu0 %1560
        %1562 = vrot.lane.b32.xlu0 %v1496, 71
        %v1563 = vpop.permute.xlu0 %1562
        %1564 = vrot.lane.b32.xlu0 %v1497, 71
        %v1565 = vpop.permute.xlu0 %1564
        %1566 = vrot.lane.b32.xlu0 %v1498, 71
        %v1567 = vpop.permute.xlu0 %1566
        %1568 = vrot.lane.b32.xlu0 %v1499, 71
        %v1569 = vpop.permute.xlu0 %1568
        %1570 = vrot.lane.b32.xlu0 %v1500, 71
        %v1571 = vpop.permute.xlu0 %1570
        %1572 = vrot.lane.b32.xlu0 %v1501, 71
        %v1573 = vpop.permute.xlu0 %1572
        %1574 = vrot.lane.b32.xlu0 %v1502, 71
        %v1575 = vpop.permute.xlu0 %1574
        %1576 = vrot.lane.b32.xlu0 %v1503, 71
        %v1577 = vpop.permute.xlu0 %1576
        %1578 = vrot.lane.b32.xlu0 %v1504, 71
        %v1579 = vpop.permute.xlu0 %1578
        %1580 = vrot.lane.b32.xlu0 %v1505, 71
        %v1581 = vpop.permute.xlu0 %1580
        %1582 = vrot.lane.b32.xlu0 %v1506, 71
        %v1583 = vpop.permute.xlu0 %1582
        %1584 = vrot.lane.b32.xlu0 %v1507, 71
        %v1585 = vpop.permute.xlu0 %1584
        %1586 = vrot.lane.b32.xlu0 %v1508, 71
        %v1587 = vpop.permute.xlu0 %1586
        %1588 = vrot.lane.b32.xlu0 %v1509, 71
        %v1589 = vpop.permute.xlu0 %1588
        %1590 = vrot.lane.b32.xlu0 %v1510, 71
        %v1591 = vpop.permute.xlu0 %1590
        %1592 = vrot.lane.b32.xlu0 %v1511, 71
        %v1593 = vpop.permute.xlu0 %1592
        %1594 = vrot.lane.b32.xlu0 %v1512, 71
        %v1595 = vpop.permute.xlu0 %1594
        %1596 = vrot.lane.b32.xlu0 %v1513, 71
        %v1597 = vpop.permute.xlu0 %1596
        %vm1598 = vcmask 580608
        %v1599 = vsel %vm1598, %v1543, %v1545
        %v1600 = vsel %vm1598, %v1545, %v1547
        %v1601 = vsel %vm1598, %v1547, %v1549
        %v1602 = vsel %vm1598, %v1549, %v1551
        %v1603 = vsel %vm1598, %v1551, %v1553
        %v1604 = vsel %vm1598, %v1553, %v1555
        %v1605 = vsel %vm1598, %v1557, %v1559
        %v1606 = vsel %vm1598, %v1559, %v1561
        %v1607 = vsel %vm1598, %v1561, %v1563
        %v1608 = vsel %vm1598, %v1563, %v1565
        %v1609 = vsel %vm1598, %v1565, %v1567
        %v1610 = vsel %vm1598, %v1567, %v1569
        %v1611 = vsel %vm1598, %v1571, %v1573
        %v1612 = vsel %vm1598, %v1573, %v1575
        %v1613 = vsel %vm1598, %v1575, %v1577
        %v1614 = vsel %vm1598, %v1577, %v1579
        %v1615 = vsel %vm1598, %v1579, %v1581
        %v1616 = vsel %vm1598, %v1581, %v1583
        %v1617 = vsel %vm1598, %v1585, %v1587
        %v1618 = vsel %vm1598, %v1587, %v1589
        %v1619 = vsel %vm1598, %v1589, %v1591
        %v1620 = vsel %vm1598, %v1591, %v1593
        %v1621 = vsel %vm1598, %v1593, %v1595
        %v1622 = vsel %vm1598, %v1595, %v1597
        %v1647 = vadd.f32 %v1437, %v1599
        %v1648 = vadd.f32 %v1438, %v1600
        %v1649 = vadd.f32 %v1439, %v1601
        %v1650 = vadd.f32 %v1440, %v1602
        %v1651 = vadd.f32 %v1441, %v1603
        %v1652 = vadd.f32 %v1442, %v1604
        %v1653 = vadd.f32 %v1443, %v1605
        %v1654 = vadd.f32 %v1444, %v1606
        %v1655 = vadd.f32 %v1445, %v1607
        %v1656 = vadd.f32 %v1446, %v1608
        %v1657 = vadd.f32 %v1447, %v1609
        %v1658 = vadd.f32 %v1448, %v1610
        %v1659 = vadd.f32 %v1449, %v1611
        %v1660 = vadd.f32 %v1450, %v1612
        %v1661 = vadd.f32 %v1451, %v1613
        %v1662 = vadd.f32 %v1452, %v1614
        %v1663 = vadd.f32 %v1453, %v1615
        %v1664 = vadd.f32 %v1454, %v1616
        %v1665 = vadd.f32 %v1455, %v1617
        %v1666 = vadd.f32 %v1456, %v1618
        %v1667 = vadd.f32 %v1457, %v1619
        %v1668 = vadd.f32 %v1458, %v1620
        %v1669 = vadd.f32 %v1459, %v1621
        %v1670 = vadd.f32 %v1460, %v1622
        %s1671 = scalar_lea.vmem %s1, 256
        %v1672 = vld [vmem:[%s1671] sm:$0xff]
        %v1673 = vld [vmem:[%s1671 + $0x8] sm:$0xff]
        %v1674 = vld [vmem:[%s1671 + $0x10] sm:$0xff]
        %v1675 = vld [vmem:[%s1671 + $0x18] sm:$0xff]
        %1677 = vset.pattern.permute.xlu0 0
        %1678 = vperm.xlu0 %1677, %v1672
        %v1679 = vpop.permute.xlu0 %1678
        %1682 = vset.pattern.permute.xlu0 0
        %1683 = vperm.xlu0 %1682, %v1673
        %v1684 = vpop.permute.xlu0 %1683
        %1687 = vset.pattern.permute.xlu0 0
        %1688 = vperm.xlu0 %1687, %v1674
        %v1689 = vpop.permute.xlu0 %1688
        %1692 = vset.pattern.permute.xlu0 0
        %1693 = vperm.xlu0 %1692, %v1675
        %v1694 = vpop.permute.xlu0 %1693
        %v1696 = vmul.f32 %v1679, %v239
        %v1697 = vmul.f32 %v1679, %v240
        %v1698 = vmul.f32 %v1679, %v241
        %v1699 = vmul.f32 %v1679, %v242
        %v1700 = vmul.f32 %v1679, %v243
        %v1701 = vmul.f32 %v1679, %v244
        %v1702 = vmul.f32 %v1679, %v1274
        %v1703 = vmul.f32 %v1684, %v239
        %v1704 = vmul.f32 %v1684, %v240
        %v1705 = vmul.f32 %v1684, %v241
        %v1706 = vmul.f32 %v1684, %v242
        %v1707 = vmul.f32 %v1684, %v243
        %v1708 = vmul.f32 %v1684, %v244
        %v1709 = vmul.f32 %v1684, %v1274
        %v1710 = vmul.f32 %v1689, %v239
        %v1711 = vmul.f32 %v1689, %v240
        %v1712 = vmul.f32 %v1689, %v241
        %v1713 = vmul.f32 %v1689, %v242
        %v1714 = vmul.f32 %v1689, %v243
        %v1715 = vmul.f32 %v1689, %v244
        %v1716 = vmul.f32 %v1689, %v1274
        %v1717 = vmul.f32 %v1694, %v239
        %v1718 = vmul.f32 %v1694, %v240
        %v1719 = vmul.f32 %v1694, %v241
        %v1720 = vmul.f32 %v1694, %v242
        %v1721 = vmul.f32 %v1694, %v243
        %v1722 = vmul.f32 %v1694, %v244
        %v1723 = vmul.f32 %v1694, %v1274
        %1752 = vrot.lane.b32.xlu0 %v1696, 70
        %v1753 = vpop.permute.xlu0 %1752
        %1754 = vrot.lane.b32.xlu0 %v1697, 70
        %v1755 = vpop.permute.xlu0 %1754
        %1756 = vrot.lane.b32.xlu0 %v1698, 70
        %v1757 = vpop.permute.xlu0 %1756
        %1758 = vrot.lane.b32.xlu0 %v1699, 70
        %v1759 = vpop.permute.xlu0 %1758
        %1760 = vrot.lane.b32.xlu0 %v1700, 70
        %v1761 = vpop.permute.xlu0 %1760
        %1762 = vrot.lane.b32.xlu0 %v1701, 70
        %v1763 = vpop.permute.xlu0 %1762
        %1764 = vrot.lane.b32.xlu0 %v1702, 70
        %v1765 = vpop.permute.xlu0 %1764
        %1766 = vrot.lane.b32.xlu0 %v1703, 70
        %v1767 = vpop.permute.xlu0 %1766
        %1768 = vrot.lane.b32.xlu0 %v1704, 70
        %v1769 = vpop.permute.xlu0 %1768
        %1770 = vrot.lane.b32.xlu0 %v1705, 70
        %v1771 = vpop.permute.xlu0 %1770
        %1772 = vrot.lane.b32.xlu0 %v1706, 70
        %v1773 = vpop.permute.xlu0 %1772
        %1774 = vrot.lane.b32.xlu0 %v1707, 70
        %v1775 = vpop.permute.xlu0 %1774
        %1776 = vrot.lane.b32.xlu0 %v1708, 70
        %v1777 = vpop.permute.xlu0 %1776
        %1778 = vrot.lane.b32.xlu0 %v1709, 70
        %v1779 = vpop.permute.xlu0 %1778
        %1780 = vrot.lane.b32.xlu0 %v1710, 70
        %v1781 = vpop.permute.xlu0 %1780
        %1782 = vrot.lane.b32.xlu0 %v1711, 70
        %v1783 = vpop.permute.xlu0 %1782
        %1784 = vrot.lane.b32.xlu0 %v1712, 70
        %v1785 = vpop.permute.xlu0 %1784
        %1786 = vrot.lane.b32.xlu0 %v1713, 70
        %v1787 = vpop.permute.xlu0 %1786
        %1788 = vrot.lane.b32.xlu0 %v1714, 70
        %v1789 = vpop.permute.xlu0 %1788
        %1790 = vrot.lane.b32.xlu0 %v1715, 70
        %v1791 = vpop.permute.xlu0 %1790
        %1792 = vrot.lane.b32.xlu0 %v1716, 70
        %v1793 = vpop.permute.xlu0 %1792
        %1794 = vrot.lane.b32.xlu0 %v1717, 70
        %v1795 = vpop.permute.xlu0 %1794
        %1796 = vrot.lane.b32.xlu0 %v1718, 70
        %v1797 = vpop.permute.xlu0 %1796
        %1798 = vrot.lane.b32.xlu0 %v1719, 70
        %v1799 = vpop.permute.xlu0 %1798
        %1800 = vrot.lane.b32.xlu0 %v1720, 70
        %v1801 = vpop.permute.xlu0 %1800
        %1802 = vrot.lane.b32.xlu0 %v1721, 70
        %v1803 = vpop.permute.xlu0 %1802
        %1804 = vrot.lane.b32.xlu0 %v1722, 70
        %v1805 = vpop.permute.xlu0 %1804
        %1806 = vrot.lane.b32.xlu0 %v1723, 70
        %v1807 = vpop.permute.xlu0 %1806
        %vm1808 = vcmask 572416
        %v1809 = vsel %vm1808, %v1753, %v1755
        %v1810 = vsel %vm1808, %v1755, %v1757
        %v1811 = vsel %vm1808, %v1757, %v1759
        %v1812 = vsel %vm1808, %v1759, %v1761
        %v1813 = vsel %vm1808, %v1761, %v1763
        %v1814 = vsel %vm1808, %v1763, %v1765
        %v1815 = vsel %vm1808, %v1767, %v1769
        %v1816 = vsel %vm1808, %v1769, %v1771
        %v1817 = vsel %vm1808, %v1771, %v1773
        %v1818 = vsel %vm1808, %v1773, %v1775
        %v1819 = vsel %vm1808, %v1775, %v1777
        %v1820 = vsel %vm1808, %v1777, %v1779
        %v1821 = vsel %vm1808, %v1781, %v1783
        %v1822 = vsel %vm1808, %v1783, %v1785
        %v1823 = vsel %vm1808, %v1785, %v1787
        %v1824 = vsel %vm1808, %v1787, %v1789
        %v1825 = vsel %vm1808, %v1789, %v1791
        %v1826 = vsel %vm1808, %v1791, %v1793
        %v1827 = vsel %vm1808, %v1795, %v1797
        %v1828 = vsel %vm1808, %v1797, %v1799
        %v1829 = vsel %vm1808, %v1799, %v1801
        %v1830 = vsel %vm1808, %v1801, %v1803
        %v1831 = vsel %vm1808, %v1803, %v1805
        %v1832 = vsel %vm1808, %v1805, %v1807
        %v1857 = vadd.f32 %v1647, %v1809
        %v1858 = vadd.f32 %v1648, %v1810
        %v1859 = vadd.f32 %v1649, %v1811
        %v1860 = vadd.f32 %v1650, %v1812
        %v1861 = vadd.f32 %v1651, %v1813
        %v1862 = vadd.f32 %v1652, %v1814
        %v1863 = vadd.f32 %v1653, %v1815
        %v1864 = vadd.f32 %v1654, %v1816
        %v1865 = vadd.f32 %v1655, %v1817
        %v1866 = vadd.f32 %v1656, %v1818
        %v1867 = vadd.f32 %v1657, %v1819
        %v1868 = vadd.f32 %v1658, %v1820
        %v1869 = vadd.f32 %v1659, %v1821
        %v1870 = vadd.f32 %v1660, %v1822
        %v1871 = vadd.f32 %v1661, %v1823
        %v1872 = vadd.f32 %v1662, %v1824
        %v1873 = vadd.f32 %v1663, %v1825
        %v1874 = vadd.f32 %v1664, %v1826
        %v1875 = vadd.f32 %v1665, %v1827
        %v1876 = vadd.f32 %v1666, %v1828
        %v1877 = vadd.f32 %v1667, %v1829
        %v1878 = vadd.f32 %v1668, %v1830
        %v1879 = vadd.f32 %v1669, %v1831
        %v1880 = vadd.f32 %v1670, %v1832
        %v1881 = vld [vmem:[%s2] sm:$0xff]
        %v1882 = vld [vmem:[%s2 + $0x8] sm:$0xff]
        %v1883 = vld [vmem:[%s2 + $0x10] sm:$0xff]
        %v1884 = vld [vmem:[%s2 + $0x18] sm:$0xff]
        %1886 = vset.pattern.permute.xlu0 0
        %1887 = vperm.xlu0 %1886, %v1881
        %v1888 = vpop.permute.xlu0 %1887
        %1891 = vset.pattern.permute.xlu0 0
        %1892 = vperm.xlu0 %1891, %v1882
        %v1893 = vpop.permute.xlu0 %1892
        %1896 = vset.pattern.permute.xlu0 0
        %1897 = vperm.xlu0 %1896, %v1883
        %v1898 = vpop.permute.xlu0 %1897
        %1901 = vset.pattern.permute.xlu0 0
        %1902 = vperm.xlu0 %1901, %v1884
        %v1903 = vpop.permute.xlu0 %1902
        %v1905 = vadd.f32 %v1857, %v1888
        %v1906 = vadd.f32 %v1858, %v1888
        %v1907 = vadd.f32 %v1859, %v1888
        %v1908 = vadd.f32 %v1860, %v1888
        %v1909 = vadd.f32 %v1861, %v1888
        %v1910 = vadd.f32 %v1862, %v1888
        %v1911 = vadd.f32 %v1863, %v1893
        %v1912 = vadd.f32 %v1864, %v1893
        %v1913 = vadd.f32 %v1865, %v1893
        %v1914 = vadd.f32 %v1866, %v1893
        %v1915 = vadd.f32 %v1867, %v1893
        %v1916 = vadd.f32 %v1868, %v1893
        %v1917 = vadd.f32 %v1869, %v1898
        %v1918 = vadd.f32 %v1870, %v1898
        %v1919 = vadd.f32 %v1871, %v1898
        %v1920 = vadd.f32 %v1872, %v1898
        %v1921 = vadd.f32 %v1873, %v1898
        %v1922 = vadd.f32 %v1874, %v1898
        %v1923 = vadd.f32 %v1875, %v1903
        %v1924 = vadd.f32 %v1876, %v1903
        %v1925 = vadd.f32 %v1877, %v1903
        %v1926 = vadd.f32 %v1878, %v1903
        %v1927 = vadd.f32 %v1879, %v1903
        %v1928 = vadd.f32 %v1880, %v1903
        %v1929 = vmax.f32 %v1905, 0.0
        %v1930 = vmax.f32 %v1906, 0.0
        %v1931 = vmax.f32 %v1907, 0.0
        %v1932 = vmax.f32 %v1908, 0.0
        %v1933 = vmax.f32 %v1909, 0.0
        %v1934 = vmax.f32 %v1910, 0.0
        %v1935 = vmax.f32 %v1911, 0.0
        %v1936 = vmax.f32 %v1912, 0.0
        %v1937 = vmax.f32 %v1913, 0.0
        %v1938 = vmax.f32 %v1914, 0.0
        %v1939 = vmax.f32 %v1915, 0.0
        %v1940 = vmax.f32 %v1916, 0.0
        %v1941 = vmax.f32 %v1917, 0.0
        %v1942 = vmax.f32 %v1918, 0.0
        %v1943 = vmax.f32 %v1919, 0.0
        %v1944 = vmax.f32 %v1920, 0.0
        %v1945 = vmax.f32 %v1921, 0.0
        %v1946 = vmax.f32 %v1922, 0.0
        %v1947 = vmax.f32 %v1923, 0.0
        %v1948 = vmax.f32 %v1924, 0.0
        %v1949 = vmax.f32 %v1925, 0.0
        %v1950 = vmax.f32 %v1926, 0.0
        %v1951 = vmax.f32 %v1927, 0.0
        %v1952 = vmax.f32 %v1928, 0.0
        %1977 = vrot.lane.b32.xlu0 %v1929, 127
        %v1978 = vpop.permute.xlu0 %1977
        %1979 = vrot.lane.b32.xlu0 %v1930, 127
        %v1980 = vpop.permute.xlu0 %1979
        %1981 = vrot.lane.b32.xlu0 %v1931, 127
        %v1982 = vpop.permute.xlu0 %1981
        %1983 = vrot.lane.b32.xlu0 %v1932, 127
        %v1984 = vpop.permute.xlu0 %1983
        %1985 = vrot.lane.b32.xlu0 %v1933, 127
        %v1986 = vpop.permute.xlu0 %1985
        %1987 = vrot.lane.b32.xlu0 %v1934, 127
        %v1988 = vpop.permute.xlu0 %1987
        %1989 = vrot.lane.b32.xlu0 %v1935, 127
        %v1990 = vpop.permute.xlu0 %1989
        %1991 = vrot.lane.b32.xlu0 %v1936, 127
        %v1992 = vpop.permute.xlu0 %1991
        %1993 = vrot.lane.b32.xlu0 %v1937, 127
        %v1994 = vpop.permute.xlu0 %1993
        %1995 = vrot.lane.b32.xlu0 %v1938, 127
        %v1996 = vpop.permute.xlu0 %1995
        %1997 = vrot.lane.b32.xlu0 %v1939, 127
        %v1998 = vpop.permute.xlu0 %1997
        %1999 = vrot.lane.b32.xlu0 %v1940, 127
        %v2000 = vpop.permute.xlu0 %1999
        %2001 = vrot.lane.b32.xlu0 %v1941, 127
        %v2002 = vpop.permute.xlu0 %2001
        %2003 = vrot.lane.b32.xlu0 %v1942, 127
        %v2004 = vpop.permute.xlu0 %2003
        %2005 = vrot.lane.b32.xlu0 %v1943, 127
        %v2006 = vpop.permute.xlu0 %2005
        %2007 = vrot.lane.b32.xlu0 %v1944, 127
        %v2008 = vpop.permute.xlu0 %2007
        %2009 = vrot.lane.b32.xlu0 %v1945, 127
        %v2010 = vpop.permute.xlu0 %2009
        %2011 = vrot.lane.b32.xlu0 %v1946, 127
        %v2012 = vpop.permute.xlu0 %2011
        %2013 = vrot.lane.b32.xlu0 %v1947, 127
        %v2014 = vpop.permute.xlu0 %2013
        %2015 = vrot.lane.b32.xlu0 %v1948, 127
        %v2016 = vpop.permute.xlu0 %2015
        %2017 = vrot.lane.b32.xlu0 %v1949, 127
        %v2018 = vpop.permute.xlu0 %2017
        %2019 = vrot.lane.b32.xlu0 %v1950, 127
        %v2020 = vpop.permute.xlu0 %2019
        %2021 = vrot.lane.b32.xlu0 %v1951, 127
        %v2022 = vpop.permute.xlu0 %2021
        %2023 = vrot.lane.b32.xlu0 %v1952, 127
        %v2024 = vpop.permute.xlu0 %2023
        %v2025 = vsel %vm420, %v1978, %v1980
        %v2026 = vsel %vm420, %v1980, %v1982
        %v2027 = vsel %vm420, %v1982, %v1984
        %v2028 = vsel %vm420, %v1984, %v1986
        %v2029 = vsel %vm420, %v1986, %v1988
        %v2030 = vsel %vm420, %v1990, %v1992
        %v2031 = vsel %vm420, %v1992, %v1994
        %v2032 = vsel %vm420, %v1994, %v1996
        %v2033 = vsel %vm420, %v1996, %v1998
        %v2034 = vsel %vm420, %v1998, %v2000
        %v2035 = vsel %vm420, %v2002, %v2004
        %v2036 = vsel %vm420, %v2004, %v2006
        %v2037 = vsel %vm420, %v2006, %v2008
        %v2038 = vsel %vm420, %v2008, %v2010
        %v2039 = vsel %vm420, %v2010, %v2012
        %v2040 = vsel %vm420, %v2014, %v2016
        %v2041 = vsel %vm420, %v2016, %v2018
        %v2042 = vsel %vm420, %v2018, %v2020
        %v2043 = vsel %vm420, %v2020, %v2022
        %v2044 = vsel %vm420, %v2022, %v2024
        %v2069 = vmax.f32 %v1929, %v2025
        %v2070 = vmax.f32 %v1930, %v2026
        %v2071 = vmax.f32 %v1931, %v2027
        %v2072 = vmax.f32 %v1932, %v2028
        %v2073 = vmax.f32 %v1933, %v2029
        %v2074 = vmax.f32 %v1934, %v1988
        %v2075 = vmax.f32 %v1935, %v2030
        %v2076 = vmax.f32 %v1936, %v2031
        %v2077 = vmax.f32 %v1937, %v2032
        %v2078 = vmax.f32 %v1938, %v2033
        %v2079 = vmax.f32 %v1939, %v2034
        %v2080 = vmax.f32 %v1940, %v2000
        %v2081 = vmax.f32 %v1941, %v2035
        %v2082 = vmax.f32 %v1942, %v2036
        %v2083 = vmax.f32 %v1943, %v2037
        %v2084 = vmax.f32 %v1944, %v2038
        %v2085 = vmax.f32 %v1945, %v2039
        %v2086 = vmax.f32 %v1946, %v2012
        %v2087 = vmax.f32 %v1947, %v2040
        %v2088 = vmax.f32 %v1948, %v2041
        %v2089 = vmax.f32 %v1949, %v2042
        %v2090 = vmax.f32 %v1950, %v2043
        %v2091 = vmax.f32 %v1951, %v2044
        %v2092 = vmax.f32 %v1952, %v2024
        %2117 = vrot.lane.b32.xlu0 %v2069, 100
        %v2118 = vpop.permute.xlu0 %2117
        %2119 = vrot.lane.b32.xlu0 %v2070, 100
        %v2120 = vpop.permute.xlu0 %2119
        %2121 = vrot.lane.b32.xlu0 %v2071, 100
        %v2122 = vpop.permute.xlu0 %2121
        %2123 = vrot.lane.b32.xlu0 %v2072, 100
        %v2124 = vpop.permute.xlu0 %2123
        %2125 = vrot.lane.b32.xlu0 %v2073, 100
        %v2126 = vpop.permute.xlu0 %2125
        %2127 = vrot.lane.b32.xlu0 %v2074, 100
        %v2128 = vpop.permute.xlu0 %2127
        %2129 = vrot.lane.b32.xlu0 %v2075, 100
        %v2130 = vpop.permute.xlu0 %2129
        %2131 = vrot.lane.b32.xlu0 %v2076, 100
        %v2132 = vpop.permute.xlu0 %2131
        %2133 = vrot.lane.b32.xlu0 %v2077, 100
        %v2134 = vpop.permute.xlu0 %2133
        %2135 = vrot.lane.b32.xlu0 %v2078, 100
        %v2136 = vpop.permute.xlu0 %2135
        %2137 = vrot.lane.b32.xlu0 %v2079, 100
        %v2138 = vpop.permute.xlu0 %2137
        %2139 = vrot.lane.b32.xlu0 %v2080, 100
        %v2140 = vpop.permute.xlu0 %2139
        %2141 = vrot.lane.b32.xlu0 %v2081, 100
        %v2142 = vpop.permute.xlu0 %2141
        %2143 = vrot.lane.b32.xlu0 %v2082, 100
        %v2144 = vpop.permute.xlu0 %2143
        %2145 = vrot.lane.b32.xlu0 %v2083, 100
        %v2146 = vpop.permute.xlu0 %2145
        %2147 = vrot.lane.b32.xlu0 %v2084, 100
        %v2148 = vpop.permute.xlu0 %2147
        %2149 = vrot.lane.b32.xlu0 %v2085, 100
        %v2150 = vpop.permute.xlu0 %2149
        %2151 = vrot.lane.b32.xlu0 %v2086, 100
        %v2152 = vpop.permute.xlu0 %2151
        %2153 = vrot.lane.b32.xlu0 %v2087, 100
        %v2154 = vpop.permute.xlu0 %2153
        %2155 = vrot.lane.b32.xlu0 %v2088, 100
        %v2156 = vpop.permute.xlu0 %2155
        %2157 = vrot.lane.b32.xlu0 %v2089, 100
        %v2158 = vpop.permute.xlu0 %2157
        %2159 = vrot.lane.b32.xlu0 %v2090, 100
        %v2160 = vpop.permute.xlu0 %2159
        %2161 = vrot.lane.b32.xlu0 %v2091, 100
        %v2162 = vpop.permute.xlu0 %2161
        %2163 = vrot.lane.b32.xlu0 %v2092, 100
        %v2164 = vpop.permute.xlu0 %2163
        %v2165 = vsel %vm800, %v2118, %v2120
        %v2166 = vsel %vm800, %v2120, %v2122
        %v2167 = vsel %vm800, %v2122, %v2124
        %v2168 = vsel %vm800, %v2124, %v2126
        %v2169 = vsel %vm800, %v2126, %v2128
        %v2170 = vsel %vm800, %v2130, %v2132
        %v2171 = vsel %vm800, %v2132, %v2134
        %v2172 = vsel %vm800, %v2134, %v2136
        %v2173 = vsel %vm800, %v2136, %v2138
        %v2174 = vsel %vm800, %v2138, %v2140
        %v2175 = vsel %vm800, %v2142, %v2144
        %v2176 = vsel %vm800, %v2144, %v2146
        %v2177 = vsel %vm800, %v2146, %v2148
        %v2178 = vsel %vm800, %v2148, %v2150
        %v2179 = vsel %vm800, %v2150, %v2152
        %v2180 = vsel %vm800, %v2154, %v2156
        %v2181 = vsel %vm800, %v2156, %v2158
        %v2182 = vsel %vm800, %v2158, %v2160
        %v2183 = vsel %vm800, %v2160, %v2162
        %v2184 = vsel %vm800, %v2162, %v2164
        %v2209 = vmax.f32 %v2069, %v2165
        %v2210 = vmax.f32 %v2070, %v2166
        %v2211 = vmax.f32 %v2071, %v2167
        %v2212 = vmax.f32 %v2072, %v2168
        %v2213 = vmax.f32 %v2073, %v2169
        %v2214 = vmax.f32 %v2074, %v2128
        %v2215 = vmax.f32 %v2075, %v2170
        %v2216 = vmax.f32 %v2076, %v2171
        %v2217 = vmax.f32 %v2077, %v2172
        %v2218 = vmax.f32 %v2078, %v2173
        %v2219 = vmax.f32 %v2079, %v2174
        %v2220 = vmax.f32 %v2080, %v2140
        %v2221 = vmax.f32 %v2081, %v2175
        %v2222 = vmax.f32 %v2082, %v2176
        %v2223 = vmax.f32 %v2083, %v2177
        %v2224 = vmax.f32 %v2084, %v2178
        %v2225 = vmax.f32 %v2085, %v2179
        %v2226 = vmax.f32 %v2086, %v2152
        %v2227 = vmax.f32 %v2087, %v2180
        %v2228 = vmax.f32 %v2088, %v2181
        %v2229 = vmax.f32 %v2089, %v2182
        %v2230 = vmax.f32 %v2090, %v2183
        %v2231 = vmax.f32 %v2091, %v2184
        %v2232 = vmax.f32 %v2092, %v2164
        %v2233 = vpack.c.bf16 %v2215, %v2209
        %v2234 = vpack.c.bf16 %v2216, %v2210
        %v2235 = vpack.c.bf16 %v2217, %v2211
        %v2236 = vpack.c.bf16 %v2218, %v2212
        %v2237 = vpack.c.bf16 %v2219, %v2213
        %v2238 = vpack.c.bf16 %v2220, %v2214
        %v2239 = vpack.c.bf16 %v2227, %v2221
        %v2240 = vpack.c.bf16 %v2228, %v2222
        %v2241 = vpack.c.bf16 %v2229, %v2223
        %v2242 = vpack.c.bf16 %v2230, %v2224
        %v2243 = vpack.c.bf16 %v2231, %v2225
        %v2244 = vpack.c.bf16 %v2232, %v2226
        %v2245 = vld [vmem:[#allocation2] sm:$0xff]
        %v2246 = vld [vmem:[#allocation2 + $0x8] sm:$0xff]
        %v2247 = vld [vmem:[#allocation2 + $0x10] sm:$0xff]
        %v2248 = vld [vmem:[#allocation2 + $0x18] sm:$0xff]
        %v2249 = vld [vmem:[#allocation2 + $0x20] sm:$0xff]
        %v2250 = vld [vmem:[#allocation2 + $0x28] sm:$0xff]
        %v2251 = vld [vmem:[#allocation2 + $0x30] sm:$0xff]
        %v2252 = vld [vmem:[#allocation2 + $0x38] sm:$0xff]
        %v2253 = vld [vmem:[#allocation2 + $0x40] sm:$0xff]
        %v2254 = vld [vmem:[#allocation2 + $0x48] sm:$0xff]
        %v2255 = vld [vmem:[#allocation2 + $0x50] sm:$0xff]
        %v2256 = vld [vmem:[#allocation2 + $0x58] sm:$0xff]
        %v2257 = vld [vmem:[#allocation2 + $0x60] sm:$0xff]
        %v2258 = vld [vmem:[#allocation2 + $0x68] sm:$0xff]
        %v2259 = vld [vmem:[#allocation2 + $0x70] sm:$0xff]
        %v2260 = vld [vmem:[#allocation2 + $0x78] sm:$0xff]
        %v2261 = vld [vmem:[#allocation2 + $0x80] sm:$0xff]
        %v2262 = vld [vmem:[#allocation2 + $0x88] sm:$0xff]
        %v2263 = vld [vmem:[#allocation2 + $0x90] sm:$0xff]
        %v2264 = vld [vmem:[#allocation2 + $0x98] sm:$0xff]
        %v2265 = vld [vmem:[#allocation2 + $0xa0] sm:$0xff]
        %v2266 = vld [vmem:[#allocation2 + $0xa8] sm:$0xff]
        %v2267 = vld [vmem:[#allocation2 + $0xb0] sm:$0xff]
        %v2268 = vld [vmem:[#allocation2 + $0xb8] sm:$0xff]
        %v2269 = vld [vmem:[#allocation2 + $0xc0] sm:$0xff]
        %v2270 = vld [vmem:[#allocation2 + $0xc8] sm:$0xff]
        %v2271 = vld [vmem:[#allocation2 + $0xd0] sm:$0xff]
        %v2272 = vld [vmem:[#allocation2 + $0xd8] sm:$0xff]
        %v2273 = vld [vmem:[#allocation2 + $0xe0] sm:$0xff]
        %v2274 = vld [vmem:[#allocation2 + $0xe8] sm:$0xff]
        %v2275 = vld [vmem:[#allocation2 + $0xf0] sm:$0xff]
        %v2276 = vld [vmem:[#allocation2 + $0xf8] sm:$0xff]
        %v2277 = vld [vmem:[#allocation2 + $0x100] sm:$0xff]
        %v2278 = vld [vmem:[#allocation2 + $0x108] sm:$0xff]
        %v2279 = vld [vmem:[#allocation2 + $0x110] sm:$0xff]
        %v2280 = vld [vmem:[#allocation2 + $0x118] sm:$0xff]
        %v2281 = vld [vmem:[#allocation2 + $0x120] sm:$0xff]
        %v2282 = vld [vmem:[#allocation2 + $0x128] sm:$0xff]
        %v2283 = vld [vmem:[#allocation2 + $0x130] sm:$0xff]
        %v2284 = vld [vmem:[#allocation2 + $0x138] sm:$0xff]
        %v2285 = vld [vmem:[#allocation2 + $0x140] sm:$0xff]
        %v2286 = vld [vmem:[#allocation2 + $0x148] sm:$0xff]
        %v2287 = vld [vmem:[#allocation2 + $0x150] sm:$0xff]
        %v2288 = vld [vmem:[#allocation2 + $0x158] sm:$0xff]
        %v2289 = vld [vmem:[#allocation2 + $0x160] sm:$0xff]
        %v2290 = vld [vmem:[#allocation2 + $0x168] sm:$0xff]
        %v2291 = vld [vmem:[#allocation2 + $0x170] sm:$0xff]
        %v2292 = vld [vmem:[#allocation2 + $0x178] sm:$0xff]
        %v2293 = vld [vmem:[#allocation2 + $0x180] sm:$0xff]
        %v2294 = vld [vmem:[#allocation2 + $0x188] sm:$0xff]
        %v2295 = vld [vmem:[#allocation2 + $0x190] sm:$0xff]
        %v2296 = vld [vmem:[#allocation2 + $0x198] sm:$0xff]
        %v2297 = vld [vmem:[#allocation2 + $0x1a0] sm:$0xff]
        %v2298 = vld [vmem:[#allocation2 + $0x1a8] sm:$0xff]
        %v2299 = vld [vmem:[#allocation2 + $0x1b0] sm:$0xff]
        %v2300 = vld [vmem:[#allocation2 + $0x1b8] sm:$0xff]
        %v2301 = vld [vmem:[#allocation2 + $0x1c0] sm:$0xff]
        %v2302 = vld [vmem:[#allocation2 + $0x1c8] sm:$0xff]
        %v2303 = vld [vmem:[#allocation2 + $0x1d0] sm:$0xff]
        %v2304 = vld [vmem:[#allocation2 + $0x1d8] sm:$0xff]
        %v2305 = vld [vmem:[#allocation2 + $0x1e0] sm:$0xff]
        %v2306 = vld [vmem:[#allocation2 + $0x1e8] sm:$0xff]
        %v2307 = vld [vmem:[#allocation2 + $0x1f0] sm:$0xff]
        %v2308 = vld [vmem:[#allocation2 + $0x1f8] sm:$0xff]
        %v2309 = vld [vmem:[#allocation2 + $0x200] sm:$0xff]
        %v2310 = vld [vmem:[#allocation2 + $0x208] sm:$0xff]
        %v2311 = vld [vmem:[#allocation2 + $0x210] sm:$0xff]
        %v2312 = vld [vmem:[#allocation2 + $0x218] sm:$0xff]
        %v2313 = vld [vmem:[#allocation2 + $0x220] sm:$0xff]
        %v2314 = vld [vmem:[#allocation2 + $0x228] sm:$0xff]
        %v2315 = vld [vmem:[#allocation2 + $0x230] sm:$0xff]
        %v2316 = vld [vmem:[#allocation2 + $0x238] sm:$0xff]
        %v2317 = vld [vmem:[#allocation2 + $0x240] sm:$0xff]
        %v2318 = vld [vmem:[#allocation2 + $0x248] sm:$0xff]
        %v2319 = vld [vmem:[#allocation2 + $0x250] sm:$0xff]
        %v2320 = vld [vmem:[#allocation2 + $0x258] sm:$0xff]
        %v2321 = vld [vmem:[#allocation2 + $0x260] sm:$0xff]
        %v2322 = vld [vmem:[#allocation2 + $0x268] sm:$0xff]
        %v2323 = vld [vmem:[#allocation2 + $0x270] sm:$0xff]
        %v2324 = vld [vmem:[#allocation2 + $0x278] sm:$0xff]
        %v2325 = vld [vmem:[#allocation2 + $0x280] sm:$0xff]
        %v2326 = vld [vmem:[#allocation2 + $0x288] sm:$0xff]
        %v2327 = vld [vmem:[#allocation2 + $0x290] sm:$0xff]
        %v2328 = vld [vmem:[#allocation2 + $0x298] sm:$0xff]
        %v2329 = vld [vmem:[#allocation2 + $0x2a0] sm:$0xff]
        %v2330 = vld [vmem:[#allocation2 + $0x2a8] sm:$0xff]
        %v2331 = vld [vmem:[#allocation2 + $0x2b0] sm:$0xff]
        %v2332 = vld [vmem:[#allocation2 + $0x2b8] sm:$0x33]
        %v2421 = vunpack.c.l.b16 %v2245
        %v2422 = vunpack.c.h.b16 %v2245
        %v2423 = vunpack.c.l.b16 %v2246
        %v2424 = vunpack.c.h.b16 %v2246
        %v2425 = vunpack.c.l.b16 %v2247
        %v2426 = vunpack.c.h.b16 %v2247
        %v2427 = vunpack.c.l.b16 %v2248
        %v2428 = vunpack.c.h.b16 %v2248
        %v2429 = vunpack.c.l.b16 %v2249
        %v2430 = vunpack.c.h.b16 %v2249
        %v2431 = vunpack.c.l.b16 %v2250
        %v2432 = vunpack.c.h.b16 %v2250
        %v2433 = vunpack.c.l.b16 %v2251
        %v2434 = vunpack.c.h.b16 %v2251
        %v2435 = vunpack.c.l.b16 %v2252
        %v2436 = vunpack.c.h.b16 %v2252
        %v2437 = vunpack.c.l.b16 %v2253
        %v2438 = vunpack.c.h.b16 %v2253
        %v2439 = vunpack.c.l.b16 %v2254
        %v2440 = vunpack.c.h.b16 %v2254
        %v2441 = vunpack.c.l.b16 %v2255
        %v2442 = vunpack.c.h.b16 %v2255
        %v2443 = vunpack.c.l.b16 %v2256
        %v2444 = vunpack.c.h.b16 %v2256
        %v2445 = vunpack.c.l.b16 %v2257
        %v2446 = vunpack.c.h.b16 %v2257
        %v2447 = vunpack.c.l.b16 %v2258
        %v2448 = vunpack.c.h.b16 %v2258
        %v2449 = vunpack.c.l.b16 %v2259
        %v2450 = vunpack.c.h.b16 %v2259
        %v2451 = vunpack.c.l.b16 %v2260
        %v2452 = vunpack.c.h.b16 %v2260
        %v2453 = vunpack.c.l.b16 %v2261
        %v2454 = vunpack.c.h.b16 %v2261
        %v2455 = vunpack.c.l.b16 %v2262
        %v2456 = vunpack.c.h.b16 %v2262
        %v2457 = vunpack.c.l.b16 %v2263
        %v2458 = vunpack.c.h.b16 %v2263
        %v2459 = vunpack.c.l.b16 %v2264
        %v2460 = vunpack.c.h.b16 %v2264
        %v2461 = vunpack.c.l.b16 %v2265
        %v2462 = vunpack.c.h.b16 %v2265
        %v2463 = vunpack.c.l.b16 %v2266
        %v2464 = vunpack.c.h.b16 %v2266
        %v2465 = vunpack.c.l.b16 %v2267
        %v2466 = vunpack.c.h.b16 %v2267
        %v2467 = vunpack.c.l.b16 %v2268
        %v2468 = vunpack.c.h.b16 %v2268
        %v2469 = vunpack.c.l.b16 %v2269
        %v2470 = vunpack.c.h.b16 %v2269
        %v2471 = vunpack.c.l.b16 %v2270
        %v2472 = vunpack.c.h.b16 %v2270
        %v2473 = vunpack.c.l.b16 %v2271
        %v2474 = vunpack.c.h.b16 %v2271
        %v2475 = vunpack.c.l.b16 %v2272
        %v2476 = vunpack.c.h.b16 %v2272
        %v2477 = vunpack.c.l.b16 %v2273
        %v2478 = vunpack.c.h.b16 %v2273
        %v2479 = vunpack.c.l.b16 %v2274
        %v2480 = vunpack.c.h.b16 %v2274
        %v2481 = vunpack.c.l.b16 %v2275
        %v2482 = vunpack.c.h.b16 %v2275
        %v2483 = vunpack.c.l.b16 %v2276
        %v2484 = vunpack.c.h.b16 %v2276
        %v2485 = vunpack.c.l.b16 %v2277
        %v2486 = vunpack.c.h.b16 %v2277
        %v2487 = vunpack.c.l.b16 %v2278
        %v2488 = vunpack.c.h.b16 %v2278
        %v2489 = vunpack.c.l.b16 %v2279
        %v2490 = vunpack.c.h.b16 %v2279
        %v2491 = vunpack.c.l.b16 %v2280
        %v2492 = vunpack.c.h.b16 %v2280
        %v2493 = vunpack.c.l.b16 %v2281
        %v2494 = vunpack.c.h.b16 %v2281
        %v2495 = vunpack.c.l.b16 %v2282
        %v2496 = vunpack.c.h.b16 %v2282
        %v2497 = vunpack.c.l.b16 %v2283
        %v2498 = vunpack.c.h.b16 %v2283
        %v2499 = vunpack.c.l.b16 %v2284
        %v2500 = vunpack.c.h.b16 %v2284
        %v2501 = vunpack.c.l.b16 %v2285
        %v2502 = vunpack.c.h.b16 %v2285
        %v2503 = vunpack.c.l.b16 %v2286
        %v2504 = vunpack.c.h.b16 %v2286
        %v2505 = vunpack.c.l.b16 %v2287
        %v2506 = vunpack.c.h.b16 %v2287
        %v2507 = vunpack.c.l.b16 %v2288
        %v2508 = vunpack.c.h.b16 %v2288
        %v2509 = vunpack.c.l.b16 %v2289
        %v2510 = vunpack.c.h.b16 %v2289
        %v2511 = vunpack.c.l.b16 %v2290
        %v2512 = vunpack.c.h.b16 %v2290
        %v2513 = vunpack.c.l.b16 %v2291
        %v2514 = vunpack.c.h.b16 %v2291
        %v2515 = vunpack.c.l.b16 %v2292
        %v2516 = vunpack.c.h.b16 %v2292
        %v2517 = vunpack.c.l.b16 %v2293
        %v2518 = vunpack.c.h.b16 %v2293
        %v2519 = vunpack.c.l.b16 %v2294
        %v2520 = vunpack.c.h.b16 %v2294
        %v2521 = vunpack.c.l.b16 %v2295
        %v2522 = vunpack.c.h.b16 %v2295
        %v2523 = vunpack.c.l.b16 %v2296
        %v2524 = vunpack.c.h.b16 %v2296
        %v2525 = vunpack.c.l.b16 %v2297
        %v2526 = vunpack.c.h.b16 %v2297
        %v2527 = vunpack.c.l.b16 %v2298
        %v2528 = vunpack.c.h.b16 %v2298
        %v2529 = vunpack.c.l.b16 %v2299
        %v2530 = vunpack.c.h.b16 %v2299
        %v2531 = vunpack.c.l.b16 %v2300
        %v2532 = vunpack.c.h.b16 %v2300
        %v2533 = vunpack.c.l.b16 %v2301
        %v2534 = vunpack.c.h.b16 %v2301
        %v2535 = vunpack.c.l.b16 %v2302
        %v2536 = vunpack.c.h.b16 %v2302
        %v2537 = vunpack.c.l.b16 %v2303
        %v2538 = vunpack.c.h.b16 %v2303
        %v2539 = vunpack.c.l.b16 %v2304
        %v2540 = vunpack.c.h.b16 %v2304
        %v2541 = vunpack.c.l.b16 %v2305
        %v2542 = vunpack.c.h.b16 %v2305
        %v2543 = vunpack.c.l.b16 %v2306
        %v2544 = vunpack.c.h.b16 %v2306
        %v2545 = vunpack.c.l.b16 %v2307
        %v2546 = vunpack.c.h.b16 %v2307
        %v2547 = vunpack.c.l.b16 %v2308
        %v2548 = vunpack.c.h.b16 %v2308
        %v2549 = vunpack.c.l.b16 %v2309
        %v2550 = vunpack.c.h.b16 %v2309
        %v2551 = vunpack.c.l.b16 %v2310
        %v2552 = vunpack.c.h.b16 %v2310
        %v2553 = vunpack.c.l.b16 %v2311
        %v2554 = vunpack.c.h.b16 %v2311
        %v2555 = vunpack.c.l.b16 %v2312
        %v2556 = vunpack.c.h.b16 %v2312
        %v2557 = vunpack.c.l.b16 %v2313
        %v2558 = vunpack.c.h.b16 %v2313
        %v2559 = vunpack.c.l.b16 %v2314
        %v2560 = vunpack.c.h.b16 %v2314
        %v2561 = vunpack.c.l.b16 %v2315
        %v2562 = vunpack.c.h.b16 %v2315
        %v2563 = vunpack.c.l.b16 %v2316
        %v2564 = vunpack.c.h.b16 %v2316
        %v2565 = vunpack.c.l.b16 %v2317
        %v2566 = vunpack.c.h.b16 %v2317
        %v2567 = vunpack.c.l.b16 %v2318
        %v2568 = vunpack.c.h.b16 %v2318
        %v2569 = vunpack.c.l.b16 %v2319
        %v2570 = vunpack.c.h.b16 %v2319
        %v2571 = vunpack.c.l.b16 %v2320
        %v2572 = vunpack.c.h.b16 %v2320
        %v2573 = vunpack.c.l.b16 %v2321
        %v2574 = vunpack.c.h.b16 %v2321
        %v2575 = vunpack.c.l.b16 %v2322
        %v2576 = vunpack.c.h.b16 %v2322
        %v2577 = vunpack.c.l.b16 %v2323
        %v2578 = vunpack.c.h.b16 %v2323
        %v2579 = vunpack.c.l.b16 %v2324
        %v2580 = vunpack.c.h.b16 %v2324
        %v2581 = vunpack.c.l.b16 %v2325
        %v2582 = vunpack.c.h.b16 %v2325
        %v2583 = vunpack.c.l.b16 %v2326
        %v2584 = vunpack.c.h.b16 %v2326
        %v2585 = vunpack.c.l.b16 %v2327
        %v2586 = vunpack.c.h.b16 %v2327
        %v2587 = vunpack.c.l.b16 %v2328
        %v2588 = vunpack.c.h.b16 %v2328
        %v2589 = vunpack.c.l.b16 %v2329
        %v2590 = vunpack.c.h.b16 %v2329
        %v2591 = vunpack.c.l.b16 %v2330
        %v2592 = vunpack.c.h.b16 %v2330
        %v2593 = vunpack.c.l.b16 %v2331
        %v2594 = vunpack.c.h.b16 %v2331
        %v2595 = vunpack.c.l.b16 %v2332
        %v2596 = vunpack.c.h.b16 %v2332
        %v2597 = vpack.c.b16 %v2423, %v2421
        %v2598 = vpack.c.b16 %v2424, %v2422
        %v2599 = vpack.c.b16 %v2427, %v2425
        %v2600 = vpack.c.b16 %v2428, %v2426
        %v2601 = vpack.c.b16 %v2431, %v2429
        %v2602 = vpack.c.b16 %v2432, %v2430
        %v2603 = vpack.c.b16 %v2435, %v2433
        %v2604 = vpack.c.b16 %v2436, %v2434
        %v2605 = vpack.c.b16 %v2439, %v2437
        %v2606 = vpack.c.b16 %v2440, %v2438
        %v2607 = vpack.c.b16 %v2443, %v2441
        %v2608 = vpack.c.b16 %v2444, %v2442
        %v2609 = vpack.c.b16 %v2447, %v2445
        %v2610 = vpack.c.b16 %v2448, %v2446
        %v2611 = vpack.c.b16 %v2451, %v2449
        %v2612 = vpack.c.b16 %v2452, %v2450
        %v2613 = vpack.c.b16 %v2455, %v2453
        %v2614 = vpack.c.b16 %v2456, %v2454
        %v2615 = vpack.c.b16 %v2459, %v2457
        %v2616 = vpack.c.b16 %v2460, %v2458
        %v2617 = vpack.c.b16 %v2463, %v2461
        %v2618 = vpack.c.b16 %v2464, %v2462
        %v2619 = vpack.c.b16 %v2467, %v2465
        %v2620 = vpack.c.b16 %v2468, %v2466
        %v2621 = vpack.c.b16 %v2471, %v2469
        %v2622 = vpack.c.b16 %v2472, %v2470
        %v2623 = vpack.c.b16 %v2475, %v2473
        %v2624 = vpack.c.b16 %v2476, %v2474
        %v2625 = vpack.c.b16 %v2479, %v2477
        %v2626 = vpack.c.b16 %v2480, %v2478
        %v2627 = vpack.c.b16 %v2483, %v2481
        %v2628 = vpack.c.b16 %v2484, %v2482
        %v2629 = vpack.c.b16 %v2487, %v2485
        %v2630 = vpack.c.b16 %v2488, %v2486
        %v2631 = vpack.c.b16 %v2491, %v2489
        %v2632 = vpack.c.b16 %v2492, %v2490
        %v2633 = vpack.c.b16 %v2495, %v2493
        %v2634 = vpack.c.b16 %v2496, %v2494
        %v2635 = vpack.c.b16 %v2499, %v2497
        %v2636 = vpack.c.b16 %v2500, %v2498
        %v2637 = vpack.c.b16 %v2503, %v2501
        %v2638 = vpack.c.b16 %v2504, %v2502
        %v2639 = vpack.c.b16 %v2507, %v2505
        %v2640 = vpack.c.b16 %v2508, %v2506
        %v2641 = vpack.c.b16 %v2511, %v2509
        %v2642 = vpack.c.b16 %v2512, %v2510
        %v2643 = vpack.c.b16 %v2515, %v2513
        %v2644 = vpack.c.b16 %v2516, %v2514
        %v2645 = vpack.c.b16 %v2519, %v2517
        %v2646 = vpack.c.b16 %v2520, %v2518
        %v2647 = vpack.c.b16 %v2523, %v2521
        %v2648 = vpack.c.b16 %v2524, %v2522
        %v2649 = vpack.c.b16 %v2527, %v2525
        %v2650 = vpack.c.b16 %v2528, %v2526
        %v2651 = vpack.c.b16 %v2531, %v2529
        %v2652 = vpack.c.b16 %v2532, %v2530
        %v2653 = vpack.c.b16 %v2535, %v2533
        %v2654 = vpack.c.b16 %v2536, %v2534
        %v2655 = vpack.c.b16 %v2539, %v2537
        %v2656 = vpack.c.b16 %v2540, %v2538
        %v2657 = vpack.c.b16 %v2543, %v2541
        %v2658 = vpack.c.b16 %v2544, %v2542
        %v2659 = vpack.c.b16 %v2547, %v2545
        %v2660 = vpack.c.b16 %v2548, %v2546
        %v2661 = vpack.c.b16 %v2551, %v2549
        %v2662 = vpack.c.b16 %v2552, %v2550
        %v2663 = vpack.c.b16 %v2555, %v2553
        %v2664 = vpack.c.b16 %v2556, %v2554
        %v2665 = vpack.c.b16 %v2559, %v2557
        %v2666 = vpack.c.b16 %v2560, %v2558
        %v2667 = vpack.c.b16 %v2563, %v2561
        %v2668 = vpack.c.b16 %v2564, %v2562
        %v2669 = vpack.c.b16 %v2567, %v2565
        %v2670 = vpack.c.b16 %v2568, %v2566
        %v2671 = vpack.c.b16 %v2571, %v2569
        %v2672 = vpack.c.b16 %v2572, %v2570
        %v2673 = vpack.c.b16 %v2575, %v2573
        %v2674 = vpack.c.b16 %v2576, %v2574
        %v2675 = vpack.c.b16 %v2579, %v2577
        %v2676 = vpack.c.b16 %v2580, %v2578
        %v2677 = vpack.c.b16 %v2583, %v2581
        %v2678 = vpack.c.b16 %v2584, %v2582
        %v2679 = vpack.c.b16 %v2587, %v2585
        %v2680 = vpack.c.b16 %v2588, %v2586
        %v2681 = vpack.c.b16 %v2591, %v2589
        %v2682 = vpack.c.b16 %v2592, %v2590
        %v2683 = vpack.c.b16 %v2595, %v2593
        %v2684 = vpack.c.b16 %v2596, %v2594
        %vm2771 = vcmask 482304
        %v2773 = vsel %vm2771, %v2238, 0
        %v2776 = vsel %vm2771, %v2244, 0
        %vm2778 = vcmask 1044480
        %vm2779 = vcmask 1045504
        %v2780 = vsel %vm2778, 4294967295, 65535
        %v2781 = vsel %vm2779, %v2780, 0
        %v2783 = vand.u32 %v2683, %v2781
        %v2786 = vand.u32 %v2684, %v2781
        %2788 = vmatpush.bf16.msra.mxu0 %v2611
        %2789 = vmatpush.bf16.msra.mxu0 %v2609
        %2790 = vmatpush.bf16.msra.mxu0 %v2607
        %2791 = vmatpush.bf16.msra.mxu0 %v2605
        %2792 = vmatpush.bf16.msra.mxu0 %v2603
        %2793 = vmatpush.bf16.msra.mxu0 %v2601
        %2794 = vmatpush.bf16.msra.mxu0 %v2599
        %2795 = vmatpush.bf16.msra.mxu0 %v2597
        %2796 = vmatmul.bf16.gmra.mxu0 %v2233
        %v2797 = vpop.f32.mrf.mxu0
        %v2798 = vadd.f32 0.0, %v2797
        %v2799 = vpop.f32.mrf.mxu0
        %v2800 = vadd.f32 0.0, %v2799
        %2801 = vmatmul.bf16.gmra.mxu0 %v2239
        %v2802 = vpop.f32.mrf.mxu0
        %v2803 = vadd.f32 0.0, %v2802
        %v2804 = vpop.f32.mrf.mxu0
        %v2805 = vadd.f32 0.0, %v2804
        %2806 = vdwg.mxu0
        %2807 = vmatpush.bf16.msra.mxu0 %v2627
        %2808 = vmatpush.bf16.msra.mxu0 %v2625
        %2809 = vmatpush.bf16.msra.mxu0 %v2623
        %2810 = vmatpush.bf16.msra.mxu0 %v2621
        %2811 = vmatpush.bf16.msra.mxu0 %v2619
        %2812 = vmatpush.bf16.msra.mxu0 %v2617
        %2813 = vmatpush.bf16.msra.mxu0 %v2615
        %2814 = vmatpush.bf16.msra.mxu0 %v2613
        %2815 = vmatmul.bf16.gmra.mxu0 %v2234
        %v2816 = vpop.f32.mrf.mxu0
        %v2817 = vadd.f32 %v2798, %v2816
        %v2818 = vpop.f32.mrf.mxu0
        %v2819 = vadd.f32 %v2800, %v2818
        %2820 = vmatmul.bf16.gmra.mxu0 %v2240
        %v2821 = vpop.f32.mrf.mxu0
        %v2822 = vadd.f32 %v2803, %v2821
        %v2823 = vpop.f32.mrf.mxu0
        %v2824 = vadd.f32 %v2805, %v2823
        %2825 = vdwg.mxu0
        %2826 = vmatpush.bf16.msra.mxu0 %v2643
        %2827 = vmatpush.bf16.msra.mxu0 %v2641
        %2828 = vmatpush.bf16.msra.mxu0 %v2639
        %2829 = vmatpush.bf16.msra.mxu0 %v2637
        %2830 = vmatpush.bf16.msra.mxu0 %v2635
        %2831 = vmatpush.bf16.msra.mxu0 %v2633
        %2832 = vmatpush.bf16.msra.mxu0 %v2631
        %2833 = vmatpush.bf16.msra.mxu0 %v2629
        %2834 = vmatmul.bf16.gmra.mxu0 %v2235
        %v2835 = vpop.f32.mrf.mxu0
        %v2836 = vadd.f32 %v2817, %v2835
        %v2837 = vpop.f32.mrf.mxu0
        %v2838 = vadd.f32 %v2819, %v2837
        %2839 = vmatmul.bf16.gmra.mxu0 %v2241
        %v2840 = vpop.f32.mrf.mxu0
        %v2841 = vadd.f32 %v2822, %v2840
        %v2842 = vpop.f32.mrf.mxu0
        %v2843 = vadd.f32 %v2824, %v2842
        %2844 = vdwg.mxu0
        %2845 = vmatpush.bf16.msra.mxu0 %v2659
        %2846 = vmatpush.bf16.msra.mxu0 %v2657
        %2847 = vmatpush.bf16.msra.mxu0 %v2655
        %2848 = vmatpush.bf16.msra.mxu0 %v2653
        %2849 = vmatpush.bf16.msra.mxu0 %v2651
        %2850 = vmatpush.bf16.msra.mxu0 %v2649
        %2851 = vmatpush.bf16.msra.mxu0 %v2647
        %2852 = vmatpush.bf16.msra.mxu0 %v2645
        %2853 = vmatmul.bf16.gmra.mxu0 %v2236
        %v2854 = vpop.f32.mrf.mxu0
        %v2855 = vadd.f32 %v2836, %v2854
        %v2856 = vpop.f32.mrf.mxu0
        %v2857 = vadd.f32 %v2838, %v2856
        %2858 = vmatmul.bf16.gmra.mxu0 %v2242
        %v2859 = vpop.f32.mrf.mxu0
        %v2860 = vadd.f32 %v2841, %v2859
        %v2861 = vpop.f32.mrf.mxu0
        %v2862 = vadd.f32 %v2843, %v2861
        %2863 = vdwg.mxu0
        %2864 = vmatpush.bf16.msra.mxu0 %v2675
        %2865 = vmatpush.bf16.msra.mxu0 %v2673
        %2866 = vmatpush.bf16.msra.mxu0 %v2671
        %2867 = vmatpush.bf16.msra.mxu0 %v2669
        %2868 = vmatpush.bf16.msra.mxu0 %v2667
        %2869 = vmatpush.bf16.msra.mxu0 %v2665
        %2870 = vmatpush.bf16.msra.mxu0 %v2663
        %2871 = vmatpush.bf16.msra.mxu0 %v2661
        %2872 = vmatmul.bf16.gmra.mxu0 %v2237
        %v2873 = vpop.f32.mrf.mxu0
        %v2874 = vadd.f32 %v2855, %v2873
        %v2875 = vpop.f32.mrf.mxu0
        %v2876 = vadd.f32 %v2857, %v2875
        %2877 = vmatmul.bf16.gmra.mxu0 %v2243
        %v2878 = vpop.f32.mrf.mxu0
        %v2879 = vadd.f32 %v2860, %v2878
        %v2880 = vpop.f32.mrf.mxu0
        %v2881 = vadd.f32 %v2862, %v2880
        %2882 = vdwg.mxu0
        %2883 = vmatpush.bf16.msra.mxu0 0
        %2884 = vmatpush.bf16.msra.mxu0 0
        %2885 = vmatpush.bf16.msra.mxu0 0
        %2886 = vmatpush.bf16.msra.mxu0 0
        %2887 = vmatpush.bf16.msra.mxu0 %v2783
        %2888 = vmatpush.bf16.msra.mxu0 %v2681
        %2889 = vmatpush.bf16.msra.mxu0 %v2679
        %2890 = vmatpush.bf16.msra.mxu0 %v2677
        %2891 = vmatmul.bf16.gmra.mxu0 %v2773
        %v2892 = vpop.f32.mrf.mxu0
        %v2893 = vadd.f32 %v2874, %v2892
        %v2894 = vpop.f32.mrf.mxu0
        %v2895 = vadd.f32 %v2876, %v2894
        %2896 = vmatmul.bf16.gmra.mxu0 %v2776
        %v2897 = vpop.f32.mrf.mxu0
        %v2898 = vadd.f32 %v2879, %v2897
        %v2899 = vpop.f32.mrf.mxu0
        %v2900 = vadd.f32 %v2881, %v2899
        %2901 = vdwg.mxu0
        %2902 = vmatpush.bf16.msra.mxu0 %v2612
        %2903 = vmatpush.bf16.msra.mxu0 %v2610
        %2904 = vmatpush.bf16.msra.mxu0 %v2608
        %2905 = vmatpush.bf16.msra.mxu0 %v2606
        %2906 = vmatpush.bf16.msra.mxu0 %v2604
        %2907 = vmatpush.bf16.msra.mxu0 %v2602
        %2908 = vmatpush.bf16.msra.mxu0 %v2600
        %2909 = vmatpush.bf16.msra.mxu0 %v2598
        %2910 = vmatmul.bf16.gmra.mxu0 %v2233
        %v2911 = vpop.f32.mrf.mxu0
        %v2912 = vadd.f32 0.0, %v2911
        %v2913 = vpop.f32.mrf.mxu0
        %v2914 = vadd.f32 0.0, %v2913
        %2915 = vmatmul.bf16.gmra.mxu0 %v2239
        %v2916 = vpop.f32.mrf.mxu0
        %v2917 = vadd.f32 0.0, %v2916
        %v2918 = vpop.f32.mrf.mxu0
        %v2919 = vadd.f32 0.0, %v2918
        %2920 = vdwg.mxu0
        %2921 = vmatpush.bf16.msra.mxu0 %v2628
        %2922 = vmatpush.bf16.msra.mxu0 %v2626
        %2923 = vmatpush.bf16.msra.mxu0 %v2624
        %2924 = vmatpush.bf16.msra.mxu0 %v2622
        %2925 = vmatpush.bf16.msra.mxu0 %v2620
        %2926 = vmatpush.bf16.msra.mxu0 %v2618
        %2927 = vmatpush.bf16.msra.mxu0 %v2616
        %2928 = vmatpush.bf16.msra.mxu0 %v2614
        %2929 = vmatmul.bf16.gmra.mxu0 %v2234
        %v2930 = vpop.f32.mrf.mxu0
        %v2931 = vadd.f32 %v2912, %v2930
        %v2932 = vpop.f32.mrf.mxu0
        %v2933 = vadd.f32 %v2914, %v2932
        %2934 = vmatmul.bf16.gmra.mxu0 %v2240
        %v2935 = vpop.f32.mrf.mxu0
        %v2936 = vadd.f32 %v2917, %v2935
        %v2937 = vpop.f32.mrf.mxu0
        %v2938 = vadd.f32 %v2919, %v2937
        %2939 = vdwg.mxu0
        %2940 = vmatpush.bf16.msra.mxu0 %v2644
        %2941 = vmatpush.bf16.msra.mxu0 %v2642
        %2942 = vmatpush.bf16.msra.mxu0 %v2640
        %2943 = vmatpush.bf16.msra.mxu0 %v2638
        %2944 = vmatpush.bf16.msra.mxu0 %v2636
        %2945 = vmatpush.bf16.msra.mxu0 %v2634
        %2946 = vmatpush.bf16.msra.mxu0 %v2632
        %2947 = vmatpush.bf16.msra.mxu0 %v2630
        %2948 = vmatmul.bf16.gmra.mxu0 %v2235
        %v2949 = vpop.f32.mrf.mxu0
        %v2950 = vadd.f32 %v2931, %v2949
        %v2951 = vpop.f32.mrf.mxu0
        %v2952 = vadd.f32 %v2933, %v2951
        %2953 = vmatmul.bf16.gmra.mxu0 %v2241
        %v2954 = vpop.f32.mrf.mxu0
        %v2955 = vadd.f32 %v2936, %v2954
        %v2956 = vpop.f32.mrf.mxu0
        %v2957 = vadd.f32 %v2938, %v2956
        %2958 = vdwg.mxu0
        %2959 = vmatpush.bf16.msra.mxu0 %v2660
        %2960 = vmatpush.bf16.msra.mxu0 %v2658
        %2961 = vmatpush.bf16.msra.mxu0 %v2656
        %2962 = vmatpush.bf16.msra.mxu0 %v2654
        %2963 = vmatpush.bf16.msra.mxu0 %v2652
        %2964 = vmatpush.bf16.msra.mxu0 %v2650
        %2965 = vmatpush.bf16.msra.mxu0 %v2648
        %2966 = vmatpush.bf16.msra.mxu0 %v2646
        %2967 = vmatmul.bf16.gmra.mxu0 %v2236
        %v2968 = vpop.f32.mrf.mxu0
        %v2969 = vadd.f32 %v2950, %v2968
        %v2970 = vpop.f32.mrf.mxu0
        %v2971 = vadd.f32 %v2952, %v2970
        %2972 = vmatmul.bf16.gmra.mxu0 %v2242
        %v2973 = vpop.f32.mrf.mxu0
        %v2974 = vadd.f32 %v2955, %v2973
        %v2975 = vpop.f32.mrf.mxu0
        %v2976 = vadd.f32 %v2957, %v2975
        %2977 = vdwg.mxu0
        %2978 = vmatpush.bf16.msra.mxu0 %v2676
        %2979 = vmatpush.bf16.msra.mxu0 %v2674
        %2980 = vmatpush.bf16.msra.mxu0 %v2672
        %2981 = vmatpush.bf16.msra.mxu0 %v2670
        %2982 = vmatpush.bf16.msra.mxu0 %v2668
        %2983 = vmatpush.bf16.msra.mxu0 %v2666
        %2984 = vmatpush.bf16.msra.mxu0 %v2664
        %2985 = vmatpush.bf16.msra.mxu0 %v2662
        %2986 = vmatmul.bf16.gmra.mxu0 %v2237
        %v2987 = vpop.f32.mrf.mxu0
        %v2988 = vadd.f32 %v2969, %v2987
        %v2989 = vpop.f32.mrf.mxu0
        %v2990 = vadd.f32 %v2971, %v2989
        %2991 = vmatmul.bf16.gmra.mxu0 %v2243
        %v2992 = vpop.f32.mrf.mxu0
        %v2993 = vadd.f32 %v2974, %v2992
        %v2994 = vpop.f32.mrf.mxu0
        %v2995 = vadd.f32 %v2976, %v2994
        %2996 = vdwg.mxu0
        %2997 = vmatpush.bf16.msra.mxu0 0
        %2998 = vmatpush.bf16.msra.mxu0 0
        %2999 = vmatpush.bf16.msra.mxu0 0
        %3000 = vmatpush.bf16.msra.mxu0 0
        %3001 = vmatpush.bf16.msra.mxu0 %v2786
        %3002 = vmatpush.bf16.msra.mxu0 %v2682
        %3003 = vmatpush.bf16.msra.mxu0 %v2680
        %3004 = vmatpush.bf16.msra.mxu0 %v2678
        %3005 = vmatmul.bf16.gmra.mxu0 %v2773
        %v3006 = vpop.f32.mrf.mxu0
        %v3007 = vadd.f32 %v2988, %v3006
        %v3008 = vpop.f32.mrf.mxu0
        %v3009 = vadd.f32 %v2990, %v3008
        %3010 = vmatmul.bf16.gmra.mxu0 %v2776
        %v3011 = vpop.f32.mrf.mxu0
        %v3012 = vadd.f32 %v2993, %v3011
        %v3013 = vpop.f32.mrf.mxu0
        %v3014 = vadd.f32 %v2995, %v3013
        %3015 = vdwg.mxu0
        %v3016 = vpack.c.bf16 %v3007, %v2893
        %v3017 = vpack.c.bf16 %v3009, %v2895
        %v3018 = vpack.c.bf16 %v3012, %v2898
        %v3019 = vpack.c.bf16 %v3014, %v2900
        %vm3020 = vcmask 1043456
        %vm3021 = vcmask 351236
        %vm3022 = vmor %vm3021, %vm3020
        %3023 = vst.msk [vmem:[%s211] sm:$0xff] %vm3022, %v3016
        %3024 = vst.msk [vmem:[%s211 + $0x8] sm:$0xff] %vm3022, %v3017
        %3025 = vst.msk [vmem:[%s211 + $0x10] sm:$0xff] %vm3022, %v3018
        %3026 = vst.msk [vmem:[%s211 + $0x18] sm:$0xff] %vm3022, %v3019
        %p3027 = scmp.lt.s32.totalorder %s16, 1
        %s3028 = scalar_select %p3027, %s16, 1
        %s3029 = smul.addr %s3028, 8
        %s3030 = smul.addr %s3029, 4
        %s3031 = scalar_lea.vmem %s4, %s3030
        // Predicated region
        $region41: #{letter_cnn_forward.3} parent=35 // pred_check
          %p3032 = pneg %p123
        $region42: #{letter_cnn_forward.3} parent=35 // pred_check_branch
          %3034 = sbr.rel (%p3032) target = $region44
        $region43: #{letter_cnn_forward.3} parent=35 // pred_region
          _
        $region44: #{letter_cnn_forward.3} parent=35 // pred_fallthru
          _
      $region36: #{letter_cnn_forward.3} parent=5 // pred_fallthru
        _
      %p3035 = scmp.le.s32.totalorder 2, %s11
      // Predicated region
      $region45: #{letter_cnn_forward.3} parent=5 // pred_check
        %p3036 = pneg %p3035
      $region46: #{letter_cnn_forward.3} parent=5 // pred_check_branch
        %3038 = sbr.rel (%p3036) target = $region48
      $region47: #{letter_cnn_forward.3} parent=5 // pred_region
        %s3039 = ssub.s32 %s11, 2
        // Predicated region
        $region49: #{letter_cnn_forward.3} parent=47 // pred_check
          %p3040 = pneg %p129
        $region50: #{letter_cnn_forward.3} parent=47 // pred_check_branch
          %3042 = sbr.rel (%p3040) target = $region52
        $region51: #{letter_cnn_forward.3} parent=47 // pred_region
          %p3043 = scmp.lt.s32.totalorder %s17, 1
          %s3044 = scalar_select %p3043, %s17, 1
          %s3045 = smul.addr %s3044, 8
          %s3046 = smul.addr %s3045, 4
          %s3047 = scalar_lea.vmem %s4, %s3046
        $region52: #{letter_cnn_forward.3} parent=47 // pred_fallthru
          _
      $region48: #{letter_cnn_forward.3} parent=5 // pred_fallthru
        _
    $region6: #{letter_cnn_forward.3} parent=1 // loop_footer
      %s15 = sadd.s32 1, %s11
    $region7: #{letter_cnn_forward.3} parent=1 // loop_footer_branch
      %10 = sbr.rel target = $region3
    $region8: #{letter_cnn_forward.3} parent=1 // loop_exit
      _
    %3048 = vsyncpa [#allocation3], 1
    %s3049 = scalar_lea.sflag [#allocation3], 1
    %3050 = vsyncpa %s3049, 1

</llo_original>
